<compile_context>
chip_gen: v6e
topology: v6e:2x2x1
jax: 0.10.0
libtpu: 0.0.40
codegen_flags: <defaults>
</compile_context>

<pallas_src>
import functools

import jax
import jax.numpy as jnp
from jax.experimental import pallas as pl
from jax.experimental.pallas import tpu as pltpu


# ----------------------------------------------------------------------------------
# Fused forward kernel (single grid point, whole batch)
# ----------------------------------------------------------------------------------
def _lenet_fused_kernel(x1_ref, w1c_ref, b1r_ref, r1_ref,
                        w2c_ref, b2r_ref, r2_ref,
                        chsum_ref, chbc_ref, gamma_ref, beta_ref,
                        w1f_ref, b1f_ref, w2f_ref, b2f_ref, w3f_ref, b3f_ref,
                        out_ref, m1_s, m2_s, x2_s, fc_s, *, n_batch, eps):
    f32 = jnp.float32

    # -------- conv1 + ReLU: ONE whole-batch matmul (M=n*28, K=480, N=168) ----------
    o1 = jnp.maximum(
        jnp.dot(x1_ref[...], w1c_ref[...], preferred_element_type=f32) + b1r_ref[...],
        0.0)                                                        # (n*28, 168)

    # -------- pool1 -----------------------------------------------------------------
    # column (width) max: two independent 0/1 selection matmuls over the whole slab
    m1_s[...] = jnp.maximum(
        jnp.dot(o1, r1_ref[0], preferred_element_type=f32),
        jnp.dot(o1, r1_ref[1], preferred_element_type=f32))         # (n*28, 84)
    # row (height) max: stride-2 sublane reads + VPU max (off the MXU path)
    p1 = jnp.maximum(m1_s[pl.ds(0, n_batch * 14, stride=2), :],
                     m1_s[pl.ds(1, n_batch * 14, stride=2), :])     # (n*14, 84)

    # -------- conv2 im2col scatter (VMEM only, 128-aligned K blocks) ----------------
    x2_s[...] = jnp.zeros_like(x2_s)          # zero the per-tap K-block padding
    for nn in range(n_batch):
        for i in range(5):
            win = p1[nn * 14 + i:nn * 14 + i + 10, :]               # (10, 84)
            x2_s[pl.ds(nn * 10, 10), pl.ds(i * 128, 84)] = win

    # -------- conv2 + ReLU: ONE whole-batch matmul (M=n*10, K=640, N=160) -----------
    o2 = jnp.maximum(
        jnp.dot(x2_s[...], w2c_ref[...], preferred_element_type=f32) + b2r_ref[...],
        0.0)                                                        # (n*10, 160)

    # -------- pool2 -----------------------------------------------------------------
    m2_s[...] = jnp.maximum(
        jnp.dot(o2, r2_ref[0], preferred_element_type=f32),
        jnp.dot(o2, r2_ref[1], preferred_element_type=f32))         # (n*10, 80)
    p2 = jnp.maximum(m2_s[pl.ds(0, n_batch * 5, stride=2), :],
                     m2_s[pl.ds(1, n_batch * 5, stride=2), :])      # (n*5, 80)

    # -------- BatchNorm (training-mode batch statistics), SINGLE pass ---------------
    colsum = jnp.sum(p2, axis=0, keepdims=True)                     # (1, 80)
    colsq = jnp.sum(p2 * p2, axis=0, keepdims=True)                 # (1, 80)
    ch_sum = jnp.dot(colsum, chsum_ref[...], preferred_element_type=f32)   # (1, 16)
    ch_sq = jnp.dot(colsq, chsum_ref[...], preferred_element_type=f32)     # (1, 16)
    count = float(n_batch * 5 * 5)
    mean = ch_sum / count
    var = ch_sq / count - mean * mean       # biased variance, as torch BN training mode
    inv = jax.lax.rsqrt(var + eps)
    scale = gamma_ref[...] * inv                                    # (1, 16)
    shift = beta_ref[...] - mean * scale                            # (1, 16)
    scale80 = jnp.dot(scale, chbc_ref[...], preferred_element_type=f32)    # (1, 80)
    shift80 = jnp.dot(shift, chbc_ref[...], preferred_element_type=f32)    # (1, 80)
    p2bn = p2 * scale80 + shift80           # one whole-slab FMA             (n*5, 80)

    # -------- fc1 LHS: regroup (n*5, 80) -> (n, 5*128) ------------------------------
    fc_s[...] = jnp.zeros_like(fc_s)
    for nn in range(n_batch):
        for y in range(5):
            fc_s[pl.ds(nn, 1), pl.ds(y * 128, 80)] = p2bn[nn * 5 + y:nn * 5 + y + 1, :]

    # -------- FC head: three whole-batch matmuls, one output store ------------------
    h1 = jnp.maximum(
        jnp.dot(fc_s[...], w1f_ref[...], preferred_element_type=f32) + b1f_ref[...],
        0.0)                                                        # (n, 120)
    h2 = jnp.maximum(
        jnp.dot(h1, w2f_ref[...], preferred_element_type=f32) + b2f_ref[...],
        0.0)                                                        # (n, 84)
    out_ref[...] = jnp.dot(h2, w3f_ref[...], preferred_element_type=f32) + b3f_ref[...]


# ----------------------------------------------------------------------------------
# Wrapper: single pallas_call, everything whole-array resident in VMEM
# ----------------------------------------------------------------------------------
def lenet_forward(x, kp, eps=1e-5):
    n = x.shape[0]
    f32 = jnp.float32

    # Wrapper-side im2col for conv1 (pure layout plumbing, ~54 KB/sample HBM traffic):
    # x1col[nn*28 + yo, i*96 + ci*32 + w] = x[nn, ci, yo + i, w]
    patches = jnp.stack([x[:, :, i:i + 28, :] for i in range(5)], axis=1)  # (n,5,3,28,32)
    x1col = patches.transpose(0, 3, 1, 2, 4).reshape(n * 28, 480).astype(f32)

    arg_names = ('w1col', 'b1row', 'r1', 'w2col', 'b2row', 'r2',
                 'chsum', 'chbc', 'gamma', 'beta',
                 'w1fc', 'b1f', 'w2fc', 'b2f', 'w3fc', 'b3f')
    args = (x1col,) + tuple(kp[k] for k in arg_names)

    vmem = pl.BlockSpec(memory_space=pltpu.MemorySpace.VMEM)
    bytes_accessed = sum(int(a.size) * 4 for a in args) + n * 10 * 4
    flops = (2 * (n * 28) * 480 * 168              # conv1
             + 2 * 2 * (n * 28) * 168 * 84         # pool1 column selection
             + 2 * (n * 10) * 640 * 160            # conv2
             + 2 * 2 * (n * 10) * 160 * 80         # pool2 column selection
             + 2 * 4 * 80 * 16                     # BN channel reduce / broadcast
             + 2 * n * (640 * 120 + 120 * 84 + 84 * 10))   # fc head

    return pl.pallas_call(
        functools.partial(_lenet_fused_kernel, n_batch=n, eps=eps),
        out_shape=jax.ShapeDtypeStruct((n, 10), f32),
        in_specs=[vmem] * len(args),
        out_specs=vmem,
        scratch_shapes=[pltpu.VMEM((n * 28, 84), f32),        # pool1 column-max slab
                        pltpu.VMEM((n * 10, 80), f32),        # pool2 column-max slab
                        pltpu.VMEM((n * 10, 5 * 128), f32),   # conv2 im2col slab
                        pltpu.VMEM((n, 5 * 128), f32)],       # fc1 LHS slab
        cost_estimate=pl.CostEstimate(flops=flops, transcendentals=16,
                                      bytes_accessed=bytes_accessed),
    )(*args)


# ----------------------------------------------------------------------------------
# One-time parameter preparation (plain JAX; PyTorch-layout params -> kernel format)
# ----------------------------------------------------------------------------------
def _shift_select(k, w_in, w_out):
    # T[j, w, v] = 1.0 iff w == v + j  (selects input column v+j for output column v)
    j = jnp.arange(k)[:, None, None]
    w = jnp.arange(w_in)[None, :, None]
    v = jnp.arange(w_out)[None, None, :]
    return (w == v + j).astype(jnp.float32)


def _pool_col_select(c, w):
    # (2, c*w, c*(w//2)); [b, ci*w + wi, co*wo + xo] = 1 iff ci==co and wi==2*xo+b
    wo = w // 2
    rin = jnp.arange(c * w)
    rout = jnp.arange(c * wo)
    ci, wi = rin[:, None] // w, rin[:, None] % w
    co, xo = rout[None, :] // wo, rout[None, :] % wo
    return jnp.stack([((ci == co) & (wi == 2 * xo + b)).astype(jnp.float32)
                      for b in range(2)])


def prepare_kernel_params(p):
    f32 = jnp.float32

    # conv1: banded (Toeplitz-over-width) weight with kh and cin folded into K=480.
    t1 = _shift_select(5, 32, 28)
    w1col = jnp.einsum('ocij,jwv->icwov', p['conv1_w'], t1).reshape(480, 6 * 28)

    # conv2: per-kh-tap banded weights, each K block zero-padded 84 -> 128 (K=640).
    t2 = _shift_select(5, 14, 10)
    g2 = jnp.einsum('ocij,jwv->icwov', p['conv2_w'], t2).reshape(5, 84, 160)
    w2col = jnp.pad(g2, ((0, 0), (0, 44), (0, 0))).reshape(640, 160)

    # fc1: fold PyTorch (c*25 + y*5 + x) flatten order; rows grouped by y into
    # 128-wide zero-padded K blocks matching the kernel's fc LHS layout.
    z = jnp.arange(80)[None, :]
    yy = jnp.arange(5)[:, None]
    idx = (z // 5) * 25 + yy * 5 + (z % 5)                  # (5, 80)
    w1k = p['fc1_w'].T[idx]                                 # (5, 80, 120)
    w1fc = jnp.pad(w1k, ((0, 0), (0, 48), (0, 0))).reshape(640, 120)

    # channel <-> column-block (of 5) maps for BN reductions / broadcasts.
    ch = (jnp.arange(80)[:, None] // 5 == jnp.arange(16)[None, :]).astype(f32)

    return dict(
        w1col=w1col.astype(f32),
        b1row=jnp.repeat(p['conv1_b'], 28)[None, :].astype(f32),
        r1=_pool_col_select(6, 28),
        w2col=w2col.astype(f32),
        b2row=jnp.repeat(p['conv2_b'], 10)[None, :].astype(f32),
        r2=_pool_col_select(16, 10),
        chsum=ch, chbc=ch.T,
        gamma=p['bn_gamma'][None, :].astype(f32),
        beta=p['bn_beta'][None, :].astype(f32),
        w1fc=w1fc.astype(f32), b1f=p['fc1_b'][None, :].astype(f32),
        w2fc=p['fc2_w'].T.astype(f32), b2f=p['fc2_b'][None, :].astype(f32),
        w3fc=p['fc3_w'].T.astype(f32), b3f=p['fc3_b'][None, :].astype(f32),
    )


# ----------------------------------------------------------------------------------
# PyTorch-layout parameter init (Conv2d/Linear default: U(-1/sqrt(fan_in), +))
# ----------------------------------------------------------------------------------
def _uniform(key, shape, bound):
    return jax.random.uniform(key, shape, jnp.float32, -bound, bound)


def init_params(key):
    ks = jax.random.split(key, 10)
    p = {}
    fan1 = 3 * 5 * 5
    p['conv1_w'] = _uniform(ks[0], (6, 3, 5, 5), 1.0 / jnp.sqrt(float(fan1)))
    p['conv1_b'] = _uniform(ks[1], (6,), 1.0 / jnp.sqrt(float(fan1)))
    fan2 = 6 * 5 * 5
    p['conv2_w'] = _uniform(ks[2], (16, 6, 5, 5), 1.0 / jnp.sqrt(float(fan2)))
    p['conv2_b'] = _uniform(ks[3], (16,), 1.0 / jnp.sqrt(float(fan2)))
    p['bn_gamma'] = jnp.ones((16,), jnp.float32)     # BatchNorm2d defaults
    p['bn_beta'] = jnp.zeros((16,), jnp.float32)
    p['fc1_w'] = _uniform(ks[4], (120, 400), 1.0 / jnp.sqrt(400.0))
    p['fc1_b'] = _uniform(ks[5], (120,), 1.0 / jnp.sqrt(400.0))
    p['fc2_w'] = _uniform(ks[6], (84, 120), 1.0 / jnp.sqrt(120.0))
    p['fc2_b'] = _uniform(ks[7], (84,), 1.0 / jnp.sqrt(120.0))
    p['fc3_w'] = _uniform(ks[8], (10, 84), 1.0 / jnp.sqrt(84.0))
    p['fc3_b'] = _uniform(ks[9], (10,), 1.0 / jnp.sqrt(84.0))
    return p


if __name__ == "__main__":
    key = jax.random.PRNGKey(0)
    pkey, xkey = jax.random.split(key)
    params = init_params(pkey)
    # One-time kernel-format parameter prep (outside the jitted hot path).
    kparams = jax.block_until_ready(prepare_kernel_params(params))

    # The module's 16*5*5 flatten implies 32x32 spatial input (CIFAR10); batch=2.
    x = jax.random.normal(xkey, (2, 3, 32, 32), jnp.float32)

    fwd = jax.jit(lambda xx: lenet_forward(xx, kparams))
    out = fwd(x)
    jax.block_until_ready(out)
    assert out.shape == (2, 10) and out.dtype == jnp.float32
    assert bool(jnp.all(jnp.isfinite(out)))
    print("KERNEL_OK")
</pallas_src>

<mosaic_0001>
module attributes {stable_mosaic.version = 11 : i64} {
  func.func @_lenet_fused_kernel(%arg0: memref<56x480xf32, #tpu.memory_space<vmem>>, %arg1: memref<480x168xf32, #tpu.memory_space<vmem>>, %arg2: memref<1x168xf32, #tpu.memory_space<vmem>>, %arg3: memref<2x168x84xf32, #tpu.memory_space<vmem>>, %arg4: memref<640x160xf32, #tpu.memory_space<vmem>>, %arg5: memref<1x160xf32, #tpu.memory_space<vmem>>, %arg6: memref<2x160x80xf32, #tpu.memory_space<vmem>>, %arg7: memref<80x16xf32, #tpu.memory_space<vmem>>, %arg8: memref<16x80xf32, #tpu.memory_space<vmem>>, %arg9: memref<1x16xf32, #tpu.memory_space<vmem>>, %arg10: memref<1x16xf32, #tpu.memory_space<vmem>>, %arg11: memref<640x120xf32, #tpu.memory_space<vmem>>, %arg12: memref<1x120xf32, #tpu.memory_space<vmem>>, %arg13: memref<120x84xf32, #tpu.memory_space<vmem>>, %arg14: memref<1x84xf32, #tpu.memory_space<vmem>>, %arg15: memref<84x10xf32, #tpu.memory_space<vmem>>, %arg16: memref<1x10xf32, #tpu.memory_space<vmem>>, %arg17: memref<2x10xf32, #tpu.memory_space<vmem>>, %arg18: memref<56x84xf32, #tpu.memory_space<vmem>>, %arg19: memref<20x80xf32, #tpu.memory_space<vmem>>, %arg20: memref<20x640xf32, #tpu.memory_space<vmem>>, %arg21: memref<2x640xf32, #tpu.memory_space<vmem>>) attributes {dimension_semantics = [], scalar_prefetch = 0 : i64, scratch_operands = 4 : i64, tpu.core_type = #tpu.core_type<tc>} {
    %c0 = arith.constant 0 : index
    %c0_0 = arith.constant 0 : index
    %0 = vector.load %arg0[%c0, %c0_0] : memref<56x480xf32, #tpu.memory_space<vmem>>, vector<56x480xf32>
    %c0_1 = arith.constant 0 : index
    %c0_2 = arith.constant 0 : index
    %1 = vector.load %arg1[%c0_1, %c0_2] : memref<480x168xf32, #tpu.memory_space<vmem>>, vector<480x168xf32>
    %cst = arith.constant dense<0.000000e+00> : vector<56x168xf32>
    %2 = tpu.matmul %0, %1, %cst {dimension_numbers = #tpu.dot_dimension_numbers<[1], [0], [0], [1], [0, 0, 1, 1], [], []>} : vector<56x480xf32>, vector<480x168xf32>, vector<56x168xf32> -> vector<56x168xf32>
    %c0_3 = arith.constant 0 : index
    %c0_4 = arith.constant 0 : index
    %3 = vector.load %arg2[%c0_3, %c0_4] : memref<1x168xf32, #tpu.memory_space<vmem>>, vector<1x168xf32>
    %4 = vector.broadcast %3 : vector<1x168xf32> to vector<56x168xf32>
    %5 = arith.addf %2, %4 : vector<56x168xf32>
    %cst_5 = arith.constant 0.000000e+00 : f32
    %6 = vector.broadcast %cst_5 : f32 to vector<56x168xf32>
    %7 = arith.maximumf %5, %6 : vector<56x168xf32>
    %c0_6 = arith.constant 0 : index
    %c0_7 = arith.constant 0 : index
    %c0_8 = arith.constant 0 : index
    %8 = vector.load %arg3[%c0_6, %c0_7, %c0_8] : memref<2x168x84xf32, #tpu.memory_space<vmem>>, vector<1x168x84xf32>
    %9 = vector.shape_cast %8 : vector<1x168x84xf32> to vector<168x84xf32>
    %cst_9 = arith.constant dense<0.000000e+00> : vector<56x84xf32>
    %10 = tpu.matmul %7, %9, %cst_9 {dimension_numbers = #tpu.dot_dimension_numbers<[1], [0], [0], [1], [0, 0, 1, 1], [], []>} : vector<56x168xf32>, vector<168x84xf32>, vector<56x84xf32> -> vector<56x84xf32>
    %c1 = arith.constant 1 : index
    %c0_10 = arith.constant 0 : index
    %c0_11 = arith.constant 0 : index
    %11 = vector.load %arg3[%c1, %c0_10, %c0_11] : memref<2x168x84xf32, #tpu.memory_space<vmem>>, vector<1x168x84xf32>
    %12 = vector.shape_cast %11 : vector<1x168x84xf32> to vector<168x84xf32>
    %cst_12 = arith.constant dense<0.000000e+00> : vector<56x84xf32>
    %13 = tpu.matmul %7, %12, %cst_12 {dimension_numbers = #tpu.dot_dimension_numbers<[1], [0], [0], [1], [0, 0, 1, 1], [], []>} : vector<56x168xf32>, vector<168x84xf32>, vector<56x84xf32> -> vector<56x84xf32>
    %14 = arith.maximumf %10, %13 : vector<56x84xf32>
    %c0_13 = arith.constant 0 : index
    %c0_14 = arith.constant 0 : index
    %15 = vector.load %arg18[%c0_13, %c0_14] : memref<56x84xf32, #tpu.memory_space<vmem>>, vector<56x84xf32>
    tpu.vector_store %arg18[%c0_13, %c0_14], %14 {strides = array<i32>} : memref<56x84xf32, #tpu.memory_space<vmem>>, vector<56x84xf32>,
    %c0_15 = arith.constant 0 : index
    %c0_16 = arith.constant 0 : index
    %16 = tpu.strided_load %arg18[%c0_15, %c0_16] {strides = array<i32: 2, 1>} : memref<56x84xf32, #tpu.memory_space<vmem>>, vector<28x84xf32>
    %c1_17 = arith.constant 1 : index
    %c0_18 = arith.constant 0 : index
    %17 = tpu.strided_load %arg18[%c1_17, %c0_18] {strides = array<i32: 2, 1>} : memref<56x84xf32, #tpu.memory_space<vmem>>, vector<28x84xf32>
    %18 = arith.maximumf %16, %17 : vector<28x84xf32>
    %cst_19 = arith.constant 0.000000e+00 : f32
    %19 = vector.broadcast %cst_19 : f32 to vector<20x640xf32>
    %c0_20 = arith.constant 0 : index
    %c0_21 = arith.constant 0 : index
    %20 = vector.load %arg20[%c0_20, %c0_21] : memref<20x640xf32, #tpu.memory_space<vmem>>, vector<20x640xf32>
    tpu.vector_store %arg20[%c0_20, %c0_21], %19 {strides = array<i32>} : memref<20x640xf32, #tpu.memory_space<vmem>>, vector<20x640xf32>,
    %21 = vector.extract_strided_slice %18 {offsets = [0, 0], sizes = [10, 84], strides = [1, 1]} : vector<28x84xf32> to vector<10x84xf32>
    %c0_22 = arith.constant 0 : index
    %c0_23 = arith.constant 0 : index
    %22 = vector.load %arg20[%c0_22, %c0_23] : memref<20x640xf32, #tpu.memory_space<vmem>>, vector<10x84xf32>
    tpu.vector_store %arg20[%c0_22, %c0_23], %21 {strides = array<i32>} : memref<20x640xf32, #tpu.memory_space<vmem>>, vector<10x84xf32>,
    %23 = vector.extract_strided_slice %18 {offsets = [1, 0], sizes = [10, 84], strides = [1, 1]} : vector<28x84xf32> to vector<10x84xf32>
    %c0_24 = arith.constant 0 : index
    %c128 = arith.constant 128 : index
    %24 = vector.load %arg20[%c0_24, %c128] : memref<20x640xf32, #tpu.memory_space<vmem>>, vector<10x84xf32>
    tpu.vector_store %arg20[%c0_24, %c128], %23 {strides = array<i32>} : memref<20x640xf32, #tpu.memory_space<vmem>>, vector<10x84xf32>,
    %25 = vector.extract_strided_slice %18 {offsets = [2, 0], sizes = [10, 84], strides = [1, 1]} : vector<28x84xf32> to vector<10x84xf32>
    %c0_25 = arith.constant 0 : index
    %c256 = arith.constant 256 : index
    %26 = vector.load %arg20[%c0_25, %c256] : memref<20x640xf32, #tpu.memory_space<vmem>>, vector<10x84xf32>
    tpu.vector_store %arg20[%c0_25, %c256], %25 {strides = array<i32>} : memref<20x640xf32, #tpu.memory_space<vmem>>, vector<10x84xf32>,
    %27 = vector.extract_strided_slice %18 {offsets = [3, 0], sizes = [10, 84], strides = [1, 1]} : vector<28x84xf32> to vector<10x84xf32>
    %c0_26 = arith.constant 0 : index
    %c384 = arith.constant 384 : index
    %28 = vector.load %arg20[%c0_26, %c384] : memref<20x640xf32, #tpu.memory_space<vmem>>, vector<10x84xf32>
    tpu.vector_store %arg20[%c0_26, %c384], %27 {strides = array<i32>} : memref<20x640xf32, #tpu.memory_space<vmem>>, vector<10x84xf32>,
    %29 = vector.extract_strided_slice %18 {offsets = [4, 0], sizes = [10, 84], strides = [1, 1]} : vector<28x84xf32> to vector<10x84xf32>
    %c0_27 = arith.constant 0 : index
    %c512 = arith.constant 512 : index
    %30 = vector.load %arg20[%c0_27, %c512] : memref<20x640xf32, #tpu.memory_space<vmem>>, vector<10x84xf32>
    tpu.vector_store %arg20[%c0_27, %c512], %29 {strides = array<i32>} : memref<20x640xf32, #tpu.memory_space<vmem>>, vector<10x84xf32>,
    %31 = vector.extract_strided_slice %18 {offsets = [14, 0], sizes = [10, 84], strides = [1, 1]} : vector<28x84xf32> to vector<10x84xf32>
    %c10 = arith.constant 10 : index
    %c0_28 = arith.constant 0 : index
    %32 = vector.load %arg20[%c10, %c0_28] : memref<20x640xf32, #tpu.memory_space<vmem>>, vector<10x84xf32>
    tpu.vector_store %arg20[%c10, %c0_28], %31 {strides = array<i32>} : memref<20x640xf32, #tpu.memory_space<vmem>>, vector<10x84xf32>,
    %33 = vector.extract_strided_slice %18 {offsets = [15, 0], sizes = [10, 84], strides = [1, 1]} : vector<28x84xf32> to vector<10x84xf32>
    %c10_29 = arith.constant 10 : index
    %c128_30 = arith.constant 128 : index
    %34 = vector.load %arg20[%c10_29, %c128_30] : memref<20x640xf32, #tpu.memory_space<vmem>>, vector<10x84xf32>
    tpu.vector_store %arg20[%c10_29, %c128_30], %33 {strides = array<i32>} : memref<20x640xf32, #tpu.memory_space<vmem>>, vector<10x84xf32>,
    %35 = vector.extract_strided_slice %18 {offsets = [16, 0], sizes = [10, 84], strides = [1, 1]} : vector<28x84xf32> to vector<10x84xf32>
    %c10_31 = arith.constant 10 : index
    %c256_32 = arith.constant 256 : index
    %36 = vector.load %arg20[%c10_31, %c256_32] : memref<20x640xf32, #tpu.memory_space<vmem>>, vector<10x84xf32>
    tpu.vector_store %arg20[%c10_31, %c256_32], %35 {strides = array<i32>} : memref<20x640xf32, #tpu.memory_space<vmem>>, vector<10x84xf32>,
    %37 = vector.extract_strided_slice %18 {offsets = [17, 0], sizes = [10, 84], strides = [1, 1]} : vector<28x84xf32> to vector<10x84xf32>
    %c10_33 = arith.constant 10 : index
    %c384_34 = arith.constant 384 : index
    %38 = vector.load %arg20[%c10_33, %c384_34] : memref<20x640xf32, #tpu.memory_space<vmem>>, vector<10x84xf32>
    tpu.vector_store %arg20[%c10_33, %c384_34], %37 {strides = array<i32>} : memref<20x640xf32, #tpu.memory_space<vmem>>, vector<10x84xf32>,
    %39 = vector.extract_strided_slice %18 {offsets = [18, 0], sizes = [10, 84], strides = [1, 1]} : vector<28x84xf32> to vector<10x84xf32>
    %c10_35 = arith.constant 10 : index
    %c512_36 = arith.constant 512 : index
    %40 = vector.load %arg20[%c10_35, %c512_36] : memref<20x640xf32, #tpu.memory_space<vmem>>, vector<10x84xf32>
    tpu.vector_store %arg20[%c10_35, %c512_36], %39 {strides = array<i32>} : memref<20x640xf32, #tpu.memory_space<vmem>>, vector<10x84xf32>,
    %c0_37 = arith.constant 0 : index
    %c0_38 = arith.constant 0 : index
    %41 = vector.load %arg20[%c0_37, %c0_38] : memref<20x640xf32, #tpu.memory_space<vmem>>, vector<20x640xf32>
    %c0_39 = arith.constant 0 : index
    %c0_40 = arith.constant 0 : index
    %42 = vector.load %arg4[%c0_39, %c0_40] : memref<640x160xf32, #tpu.memory_space<vmem>>, vector<640x160xf32>
    %cst_41 = arith.constant dense<0.000000e+00> : vector<20x160xf32>
    %43 = tpu.matmul %41, %42, %cst_41 {dimension_numbers = #tpu.dot_dimension_numbers<[1], [0], [0], [1], [0, 0, 1, 1], [], []>} : vector<20x640xf32>, vector<640x160xf32>, vector<20x160xf32> -> vector<20x160xf32>
    %c0_42 = arith.constant 0 : index
    %c0_43 = arith.constant 0 : index
    %44 = vector.load %arg5[%c0_42, %c0_43] : memref<1x160xf32, #tpu.memory_space<vmem>>, vector<1x160xf32>
    %45 = vector.broadcast %44 : vector<1x160xf32> to vector<20x160xf32>
    %46 = arith.addf %43, %45 : vector<20x160xf32>
    %cst_44 = arith.constant 0.000000e+00 : f32
    %47 = vector.broadcast %cst_44 : f32 to vector<20x160xf32>
    %48 = arith.maximumf %46, %47 : vector<20x160xf32>
    %c0_45 = arith.constant 0 : index
    %c0_46 = arith.constant 0 : index
    %c0_47 = arith.constant 0 : index
    %49 = vector.load %arg6[%c0_45, %c0_46, %c0_47] : memref<2x160x80xf32, #tpu.memory_space<vmem>>, vector<1x160x80xf32>
    %50 = vector.shape_cast %49 : vector<1x160x80xf32> to vector<160x80xf32>
    %cst_48 = arith.constant dense<0.000000e+00> : vector<20x80xf32>
    %51 = tpu.matmul %48, %50, %cst_48 {dimension_numbers = #tpu.dot_dimension_numbers<[1], [0], [0], [1], [0, 0, 1, 1], [], []>} : vector<20x160xf32>, vector<160x80xf32>, vector<20x80xf32> -> vector<20x80xf32>
    %c1_49 = arith.constant 1 : index
    %c0_50 = arith.constant 0 : index
    %c0_51 = arith.constant 0 : index
    %52 = vector.load %arg6[%c1_49, %c0_50, %c0_51] : memref<2x160x80xf32, #tpu.memory_space<vmem>>, vector<1x160x80xf32>
    %53 = vector.shape_cast %52 : vector<1x160x80xf32> to vector<160x80xf32>
    %cst_52 = arith.constant dense<0.000000e+00> : vector<20x80xf32>
    %54 = tpu.matmul %48, %53, %cst_52 {dimension_numbers = #tpu.dot_dimension_numbers<[1], [0], [0], [1], [0, 0, 1, 1], [], []>} : vector<20x160xf32>, vector<160x80xf32>, vector<20x80xf32> -> vector<20x80xf32>
    %55 = arith.maximumf %51, %54 : vector<20x80xf32>
    %c0_53 = arith.constant 0 : index
    %c0_54 = arith.constant 0 : index
    %56 = vector.load %arg19[%c0_53, %c0_54] : memref<20x80xf32, #tpu.memory_space<vmem>>, vector<20x80xf32>
    tpu.vector_store %arg19[%c0_53, %c0_54], %55 {strides = array<i32>} : memref<20x80xf32, #tpu.memory_space<vmem>>, vector<20x80xf32>,
    %c0_55 = arith.constant 0 : index
    %c0_56 = arith.constant 0 : index
    %57 = tpu.strided_load %arg19[%c0_55, %c0_56] {strides = array<i32: 2, 1>} : memref<20x80xf32, #tpu.memory_space<vmem>>, vector<10x80xf32>
    %c1_57 = arith.constant 1 : index
    %c0_58 = arith.constant 0 : index
    %58 = tpu.strided_load %arg19[%c1_57, %c0_58] {strides = array<i32: 2, 1>} : memref<20x80xf32, #tpu.memory_space<vmem>>, vector<10x80xf32>
    %59 = arith.maximumf %57, %58 : vector<10x80xf32>
    %cst_59 = arith.constant dense<0.000000e+00> : vector<80xf32>
    %60 = vector.multi_reduction <add>, %59, %cst_59 [0] : vector<10x80xf32> to vector<80xf32>
    %61 = vector.shape_cast %60 : vector<80xf32> to vector<1x80xf32>
    %62 = arith.mulf %59, %59 : vector<10x80xf32>
    %cst_60 = arith.constant dense<0.000000e+00> : vector<80xf32>
    %63 = vector.multi_reduction <add>, %62, %cst_60 [0] : vector<10x80xf32> to vector<80xf32>
    %64 = vector.shape_cast %63 : vector<80xf32> to vector<1x80xf32>
    %c0_61 = arith.constant 0 : index
    %c0_62 = arith.constant 0 : index
    %65 = vector.load %arg7[%c0_61, %c0_62] : memref<80x16xf32, #tpu.memory_space<vmem>>, vector<80x16xf32>
    %cst_63 = arith.constant dense<0.000000e+00> : vector<1x16xf32>
    %66 = tpu.matmul %61, %65, %cst_63 {dimension_numbers = #tpu.dot_dimension_numbers<[1], [0], [0], [1], [0, 0, 1, 1], [], []>} : vector<1x80xf32>, vector<80x16xf32>, vector<1x16xf32> -> vector<1x16xf32>
    %c0_64 = arith.constant 0 : index
    %c0_65 = arith.constant 0 : index
    %67 = vector.load %arg7[%c0_64, %c0_65] : memref<80x16xf32, #tpu.memory_space<vmem>>, vector<80x16xf32>
    %cst_66 = arith.constant dense<0.000000e+00> : vector<1x16xf32>
    %68 = tpu.matmul %64, %67, %cst_66 {dimension_numbers = #tpu.dot_dimension_numbers<[1], [0], [0], [1], [0, 0, 1, 1], [], []>} : vector<1x80xf32>, vector<80x16xf32>, vector<1x16xf32> -> vector<1x16xf32>
    %cst_67 = arith.constant 5.000000e+01 : f32
    %69 = vector.broadcast %cst_67 : f32 to vector<1x16xf32>
    %70 = arith.divf %66, %69 : vector<1x16xf32>
    %cst_68 = arith.constant 5.000000e+01 : f32
    %71 = vector.broadcast %cst_68 : f32 to vector<1x16xf32>
    %72 = arith.divf %68, %71 : vector<1x16xf32>
    %73 = arith.mulf %70, %70 : vector<1x16xf32>
    %74 = arith.subf %72, %73 : vector<1x16xf32>
    %cst_69 = arith.constant 9.99999974E-6 : f32
    %75 = vector.broadcast %cst_69 : f32 to vector<1x16xf32>
    %76 = arith.addf %74, %75 : vector<1x16xf32>
    %77 = math.rsqrt %76 : vector<1x16xf32>
    %c0_70 = arith.constant 0 : index
    %c0_71 = arith.constant 0 : index
    %78 = vector.load %arg9[%c0_70, %c0_71] : memref<1x16xf32, #tpu.memory_space<vmem>>, vector<1x16xf32>
    %79 = arith.mulf %78, %77 : vector<1x16xf32>
    %c0_72 = arith.constant 0 : index
    %c0_73 = arith.constant 0 : index
    %80 = vector.load %arg10[%c0_72, %c0_73] : memref<1x16xf32, #tpu.memory_space<vmem>>, vector<1x16xf32>
    %81 = arith.mulf %70, %79 : vector<1x16xf32>
    %82 = arith.subf %80, %81 : vector<1x16xf32>
    %c0_74 = arith.constant 0 : index
    %c0_75 = arith.constant 0 : index
    %83 = vector.load %arg8[%c0_74, %c0_75] : memref<16x80xf32, #tpu.memory_space<vmem>>, vector<16x80xf32>
    %cst_76 = arith.constant dense<0.000000e+00> : vector<1x80xf32>
    %84 = tpu.matmul %79, %83, %cst_76 {dimension_numbers = #tpu.dot_dimension_numbers<[1], [0], [0], [1], [0, 0, 1, 1], [], []>} : vector<1x16xf32>, vector<16x80xf32>, vector<1x80xf32> -> vector<1x80xf32>
    %c0_77 = arith.constant 0 : index
    %c0_78 = arith.constant 0 : index
    %85 = vector.load %arg8[%c0_77, %c0_78] : memref<16x80xf32, #tpu.memory_space<vmem>>, vector<16x80xf32>
    %cst_79 = arith.constant dense<0.000000e+00> : vector<1x80xf32>
    %86 = tpu.matmul %82, %85, %cst_79 {dimension_numbers = #tpu.dot_dimension_numbers<[1], [0], [0], [1], [0, 0, 1, 1], [], []>} : vector<1x16xf32>, vector<16x80xf32>, vector<1x80xf32> -> vector<1x80xf32>
    %87 = vector.broadcast %84 : vector<1x80xf32> to vector<10x80xf32>
    %88 = arith.mulf %59, %87 : vector<10x80xf32>
    %89 = vector.broadcast %86 : vector<1x80xf32> to vector<10x80xf32>
    %90 = arith.addf %88, %89 : vector<10x80xf32>
    %cst_80 = arith.constant 0.000000e+00 : f32
    %91 = vector.broadcast %cst_80 : f32 to vector<2x640xf32>
    %c0_81 = arith.constant 0 : index
    %c0_82 = arith.constant 0 : index
    %92 = vector.load %arg21[%c0_81, %c0_82] : memref<2x640xf32, #tpu.memory_space<vmem>>, vector<2x640xf32>
    tpu.vector_store %arg21[%c0_81, %c0_82], %91 {strides = array<i32>} : memref<2x640xf32, #tpu.memory_space<vmem>>, vector<2x640xf32>,
    %93 = vector.extract_strided_slice %90 {offsets = [0, 0], sizes = [1, 80], strides = [1, 1]} : vector<10x80xf32> to vector<1x80xf32>
    %c0_83 = arith.constant 0 : index
    %c0_84 = arith.constant 0 : index
    %94 = vector.load %arg21[%c0_83, %c0_84] : memref<2x640xf32, #tpu.memory_space<vmem>>, vector<1x80xf32>
    tpu.vector_store %arg21[%c0_83, %c0_84], %93 {strides = array<i32>} : memref<2x640xf32, #tpu.memory_space<vmem>>, vector<1x80xf32>,
    %95 = vector.extract_strided_slice %90 {offsets = [1, 0], sizes = [1, 80], strides = [1, 1]} : vector<10x80xf32> to vector<1x80xf32>
    %c0_85 = arith.constant 0 : index
    %c128_86 = arith.constant 128 : index
    %96 = vector.load %arg21[%c0_85, %c128_86] : memref<2x640xf32, #tpu.memory_space<vmem>>, vector<1x80xf32>
    tpu.vector_store %arg21[%c0_85, %c128_86], %95 {strides = array<i32>} : memref<2x640xf32, #tpu.memory_space<vmem>>, vector<1x80xf32>,
    %97 = vector.extract_strided_slice %90 {offsets = [2, 0], sizes = [1, 80], strides = [1, 1]} : vector<10x80xf32> to vector<1x80xf32>
    %c0_87 = arith.constant 0 : index
    %c256_88 = arith.constant 256 : index
    %98 = vector.load %arg21[%c0_87, %c256_88] : memref<2x640xf32, #tpu.memory_space<vmem>>, vector<1x80xf32>
    tpu.vector_store %arg21[%c0_87, %c256_88], %97 {strides = array<i32>} : memref<2x640xf32, #tpu.memory_space<vmem>>, vector<1x80xf32>,
    %99 = vector.extract_strided_slice %90 {offsets = [3, 0], sizes = [1, 80], strides = [1, 1]} : vector<10x80xf32> to vector<1x80xf32>
    %c0_89 = arith.constant 0 : index
    %c384_90 = arith.constant 384 : index
    %100 = vector.load %arg21[%c0_89, %c384_90] : memref<2x640xf32, #tpu.memory_space<vmem>>, vector<1x80xf32>
    tpu.vector_store %arg21[%c0_89, %c384_90], %99 {strides = array<i32>} : memref<2x640xf32, #tpu.memory_space<vmem>>, vector<1x80xf32>,
    %101 = vector.extract_strided_slice %90 {offsets = [4, 0], sizes = [1, 80], strides = [1, 1]} : vector<10x80xf32> to vector<1x80xf32>
    %c0_91 = arith.constant 0 : index
    %c512_92 = arith.constant 512 : index
    %102 = vector.load %arg21[%c0_91, %c512_92] : memref<2x640xf32, #tpu.memory_space<vmem>>, vector<1x80xf32>
    tpu.vector_store %arg21[%c0_91, %c512_92], %101 {strides = array<i32>} : memref<2x640xf32, #tpu.memory_space<vmem>>, vector<1x80xf32>,
    %103 = vector.extract_strided_slice %90 {offsets = [5, 0], sizes = [1, 80], strides = [1, 1]} : vector<10x80xf32> to vector<1x80xf32>
    %c1_93 = arith.constant 1 : index
    %c0_94 = arith.constant 0 : index
    %104 = vector.load %arg21[%c1_93, %c0_94] : memref<2x640xf32, #tpu.memory_space<vmem>>, vector<1x80xf32>
    tpu.vector_store %arg21[%c1_93, %c0_94], %103 {strides = array<i32>} : memref<2x640xf32, #tpu.memory_space<vmem>>, vector<1x80xf32>,
    %105 = vector.extract_strided_slice %90 {offsets = [6, 0], sizes = [1, 80], strides = [1, 1]} : vector<10x80xf32> to vector<1x80xf32>
    %c1_95 = arith.constant 1 : index
    %c128_96 = arith.constant 128 : index
    %106 = vector.load %arg21[%c1_95, %c128_96] : memref<2x640xf32, #tpu.memory_space<vmem>>, vector<1x80xf32>
    tpu.vector_store %arg21[%c1_95, %c128_96], %105 {strides = array<i32>} : memref<2x640xf32, #tpu.memory_space<vmem>>, vector<1x80xf32>,
    %107 = vector.extract_strided_slice %90 {offsets = [7, 0], sizes = [1, 80], strides = [1, 1]} : vector<10x80xf32> to vector<1x80xf32>
    %c1_97 = arith.constant 1 : index
    %c256_98 = arith.constant 256 : index
    %108 = vector.load %arg21[%c1_97, %c256_98] : memref<2x640xf32, #tpu.memory_space<vmem>>, vector<1x80xf32>
    tpu.vector_store %arg21[%c1_97, %c256_98], %107 {strides = array<i32>} : memref<2x640xf32, #tpu.memory_space<vmem>>, vector<1x80xf32>,
    %109 = vector.extract_strided_slice %90 {offsets = [8, 0], sizes = [1, 80], strides = [1, 1]} : vector<10x80xf32> to vector<1x80xf32>
    %c1_99 = arith.constant 1 : index
    %c384_100 = arith.constant 384 : index
    %110 = vector.load %arg21[%c1_99, %c384_100] : memref<2x640xf32, #tpu.memory_space<vmem>>, vector<1x80xf32>
    tpu.vector_store %arg21[%c1_99, %c384_100], %109 {strides = array<i32>} : memref<2x640xf32, #tpu.memory_space<vmem>>, vector<1x80xf32>,
    %111 = vector.extract_strided_slice %90 {offsets = [9, 0], sizes = [1, 80], strides = [1, 1]} : vector<10x80xf32> to vector<1x80xf32>
    %c1_101 = arith.constant 1 : index
    %c512_102 = arith.constant 512 : index
    %112 = vector.load %arg21[%c1_101, %c512_102] : memref<2x640xf32, #tpu.memory_space<vmem>>, vector<1x80xf32>
    tpu.vector_store %arg21[%c1_101, %c512_102], %111 {strides = array<i32>} : memref<2x640xf32, #tpu.memory_space<vmem>>, vector<1x80xf32>,
    %c0_103 = arith.constant 0 : index
    %c0_104 = arith.constant 0 : index
    %113 = vector.load %arg21[%c0_103, %c0_104] : memref<2x640xf32, #tpu.memory_space<vmem>>, vector<2x640xf32>
    %c0_105 = arith.constant 0 : index
    %c0_106 = arith.constant 0 : index
    %114 = vector.load %arg11[%c0_105, %c0_106] : memref<640x120xf32, #tpu.memory_space<vmem>>, vector<640x120xf32>
    %cst_107 = arith.constant dense<0.000000e+00> : vector<2x120xf32>
    %115 = tpu.matmul %113, %114, %cst_107 {dimension_numbers = #tpu.dot_dimension_numbers<[1], [0], [0], [1], [0, 0, 1, 1], [], []>} : vector<2x640xf32>, vector<640x120xf32>, vector<2x120xf32> -> vector<2x120xf32>
    %c0_108 = arith.constant 0 : index
    %c0_109 = arith.constant 0 : index
    %116 = vector.load %arg12[%c0_108, %c0_109] : memref<1x120xf32, #tpu.memory_space<vmem>>, vector<1x120xf32>
    %117 = vector.broadcast %116 : vector<1x120xf32> to vector<2x120xf32>
    %118 = arith.addf %115, %117 : vector<2x120xf32>
    %cst_110 = arith.constant 0.000000e+00 : f32
    %119 = vector.broadcast %cst_110 : f32 to vector<2x120xf32>
    %120 = arith.maximumf %118, %119 : vector<2x120xf32>
    %c0_111 = arith.constant 0 : index
    %c0_112 = arith.constant 0 : index
    %121 = vector.load %arg13[%c0_111, %c0_112] : memref<120x84xf32, #tpu.memory_space<vmem>>, vector<120x84xf32>
    %cst_113 = arith.constant dense<0.000000e+00> : vector<2x84xf32>
    %122 = tpu.matmul %120, %121, %cst_113 {dimension_numbers = #tpu.dot_dimension_numbers<[1], [0], [0], [1], [0, 0, 1, 1], [], []>} : vector<2x120xf32>, vector<120x84xf32>, vector<2x84xf32> -> vector<2x84xf32>
    %c0_114 = arith.constant 0 : index
    %c0_115 = arith.constant 0 : index
    %123 = vector.load %arg14[%c0_114, %c0_115] : memref<1x84xf32, #tpu.memory_space<vmem>>, vector<1x84xf32>
    %124 = vector.broadcast %123 : vector<1x84xf32> to vector<2x84xf32>
    %125 = arith.addf %122, %124 : vector<2x84xf32>
    %cst_116 = arith.constant 0.000000e+00 : f32
    %126 = vector.broadcast %cst_116 : f32 to vector<2x84xf32>
    %127 = arith.maximumf %125, %126 : vector<2x84xf32>
    %c0_117 = arith.constant 0 : index
    %c0_118 = arith.constant 0 : index
    %128 = vector.load %arg15[%c0_117, %c0_118] : memref<84x10xf32, #tpu.memory_space<vmem>>, vector<84x10xf32>
    %cst_119 = arith.constant dense<0.000000e+00> : vector<2x10xf32>
    %129 = tpu.matmul %127, %128, %cst_119 {dimension_numbers = #tpu.dot_dimension_numbers<[1], [0], [0], [1], [0, 0, 1, 1], [], []>} : vector<2x84xf32>, vector<84x10xf32>, vector<2x10xf32> -> vector<2x10xf32>
    %c0_120 = arith.constant 0 : index
    %c0_121 = arith.constant 0 : index
    %130 = vector.load %arg16[%c0_120, %c0_121] : memref<1x10xf32, #tpu.memory_space<vmem>>, vector<1x10xf32>
    %131 = vector.broadcast %130 : vector<1x10xf32> to vector<2x10xf32>
    %132 = arith.addf %129, %131 : vector<2x10xf32>
    %c0_122 = arith.constant 0 : index
    %c0_123 = arith.constant 0 : index
    %133 = vector.load %arg17[%c0_122, %c0_123] : memref<2x10xf32, #tpu.memory_space<vmem>>, vector<2x10xf32>
    tpu.vector_store %arg17[%c0_122, %c0_123], %132 {strides = array<i32>} : memref<2x10xf32, #tpu.memory_space<vmem>>, vector<2x10xf32>,
    return
  }
}

</mosaic_0001>

<llo_original>
// kernel: _lambda_.1
$region0: #{_lambda_.1}
  #allocation0 [shape = 'u32[]', space=smem, size = 0x4, offset = 0x4, fixed_abs, tag = 'smem constant byte address 0x4 - core index']
  #allocation1 [shape = 'u32[144,128]{1,0:T(1,128)}', space=vmem, size = 0x12000, scoped, tag = 'internal scratch']
  #allocation2 [shape = 'f32[56,84]{1,0:T(8,128)}', space=vmem, size = 0x7000, scoped, tag = 'scratch operand']
  #allocation3 [shape = 'f32[20,80]{1,0:T(8,128)}', space=vmem, size = 0x3000, scoped, tag = 'scratch operand']
  #allocation4 [shape = 'f32[20,640]{1,0:T(8,128)}', space=vmem, size = 0xf000, scoped, tag = 'scratch operand']
  #allocation5 [shape = 'f32[2,640]{1,0:T(2,128)}', space=vmem, size = 0x1400, scoped, tag = 'scratch operand']
  %s0 = inlined_call_operand.vmem [shape: f32[56,480], index: 0, kind: input, shape index: {}]
  %s1 = inlined_call_operand.vmem [shape: f32[480,168], index: 1, kind: input, shape index: {}]
  %s2 = inlined_call_operand.vmem [shape: f32[1,168], index: 2, kind: input, shape index: {}]
  %s3 = inlined_call_operand.vmem [shape: f32[2,168,84], index: 3, kind: input, shape index: {}]
  %s4 = inlined_call_operand.vmem [shape: f32[640,160], index: 4, kind: input, shape index: {}]
  %s5 = inlined_call_operand.vmem [shape: f32[1,160], index: 5, kind: input, shape index: {}]
  %s6 = inlined_call_operand.vmem [shape: f32[2,160,80], index: 6, kind: input, shape index: {}]
  %s7 = inlined_call_operand.vmem [shape: f32[80,16], index: 7, kind: input, shape index: {}]
  %s8 = inlined_call_operand.vmem [shape: f32[16,80], index: 8, kind: input, shape index: {}]
  %s9 = inlined_call_operand.vmem [shape: f32[1,16], index: 9, kind: input, shape index: {}]
  %s10 = inlined_call_operand.vmem [shape: f32[1,16], index: 10, kind: input, shape index: {}]
  %s11 = inlined_call_operand.vmem [shape: f32[640,120], index: 11, kind: input, shape index: {}]
  %s12 = inlined_call_operand.vmem [shape: f32[1,120], index: 12, kind: input, shape index: {}]
  %s13 = inlined_call_operand.vmem [shape: f32[120,84], index: 13, kind: input, shape index: {}]
  %s14 = inlined_call_operand.vmem [shape: f32[1,84], index: 14, kind: input, shape index: {}]
  %s15 = inlined_call_operand.vmem [shape: f32[84,10], index: 15, kind: input, shape index: {}]
  %s16 = inlined_call_operand.vmem [shape: f32[1,10], index: 16, kind: input, shape index: {}]
  %s17 = inlined_call_operand.hbm [shape: f32[2,10], index: 17, kind: output, shape index: {}]
  %s18 = sld [smem:[#allocation0]]
  $region78: #{_lambda_.1} parent=0
    _
  %s20 = ssub.s32 1, %s18
  %s21 = scalar_select 0, %s20, %s18
  $region1: #{_lambda_.1} parent=0
    #allocation6 [shape = 'u8[1024]{0}', space=vmem, size = 0x400, scoped, tag = 'output window, operand 0, single buffered']
    #allocation7 [shape = 's32[1]{0}', space=sflag, size = 0x4, scoped, tag = 'scoped memory for _lambda_.1']
    %22 = vsyncpa [#allocation7], 0
    // Predicated region
    $region2: #{_lambda_.1} parent=1 // pred_check
      _
    $region3: #{_lambda_.1} parent=1 // pred_check_branch
      %24 = sbr.rel (0) target = $region5
    $region4: #{_lambda_.1} parent=1 // pred_region
      _
    $region5: #{_lambda_.1} parent=1 // pred_fallthru
      _
    // Predicated region
    $region6: #{_lambda_.1} parent=1 // pred_check
      _
    $region7: #{_lambda_.1} parent=1 // pred_check_branch
      %26 = sbr.rel (0) target = $region9
    $region8: #{_lambda_.1} parent=1 // pred_region
      _
    $region9: #{_lambda_.1} parent=1 // pred_fallthru
      _
    // Predicated region
    $region10: #{_lambda_.1} parent=1 // pred_check
      _
    $region11: #{_lambda_.1} parent=1 // pred_check_branch
      %28 = sbr.rel (0) target = $region13
    $region12: #{_lambda_.1} parent=1 // pred_region
      _
    $region13: #{_lambda_.1} parent=1 // pred_fallthru
      _
    // Predicated region
    $region14: #{_lambda_.1} parent=1 // pred_check
      _
    $region15: #{_lambda_.1} parent=1 // pred_check_branch
      %30 = sbr.rel (0) target = $region17
    $region16: #{_lambda_.1} parent=1 // pred_region
      _
    $region17: #{_lambda_.1} parent=1 // pred_fallthru
      _
    // Predicated region
    $region18: #{_lambda_.1} parent=1 // pred_check
      _
    $region19: #{_lambda_.1} parent=1 // pred_check_branch
      %32 = sbr.rel (0) target = $region21
    $region20: #{_lambda_.1} parent=1 // pred_region
      _
    $region21: #{_lambda_.1} parent=1 // pred_fallthru
      _
    // Predicated region
    $region22: #{_lambda_.1} parent=1 // pred_check
      _
    $region23: #{_lambda_.1} parent=1 // pred_check_branch
      %34 = sbr.rel (0) target = $region25
    $region24: #{_lambda_.1} parent=1 // pred_region
      _
    $region25: #{_lambda_.1} parent=1 // pred_fallthru
      _
    // Predicated region
    $region26: #{_lambda_.1} parent=1 // pred_check
      _
    $region27: #{_lambda_.1} parent=1 // pred_check_branch
      %36 = sbr.rel (0) target = $region29
    $region28: #{_lambda_.1} parent=1 // pred_region
      _
    $region29: #{_lambda_.1} parent=1 // pred_fallthru
      _
    // Predicated region
    $region30: #{_lambda_.1} parent=1 // pred_check
      _
    $region31: #{_lambda_.1} parent=1 // pred_check_branch
      %38 = sbr.rel (0) target = $region33
    $region32: #{_lambda_.1} parent=1 // pred_region
      _
    $region33: #{_lambda_.1} parent=1 // pred_fallthru
      _
    // Predicated region
    $region34: #{_lambda_.1} parent=1 // pred_check
      _
    $region35: #{_lambda_.1} parent=1 // pred_check_branch
      %40 = sbr.rel (0) target = $region37
    $region36: #{_lambda_.1} parent=1 // pred_region
      _
    $region37: #{_lambda_.1} parent=1 // pred_fallthru
      _
    // Predicated region
    $region38: #{_lambda_.1} parent=1 // pred_check
      _
    $region39: #{_lambda_.1} parent=1 // pred_check_branch
      %42 = sbr.rel (0) target = $region41
    $region40: #{_lambda_.1} parent=1 // pred_region
      _
    $region41: #{_lambda_.1} parent=1 // pred_fallthru
      _
    // Predicated region
    $region42: #{_lambda_.1} parent=1 // pred_check
      _
    $region43: #{_lambda_.1} parent=1 // pred_check_branch
      %44 = sbr.rel (0) target = $region45
    $region44: #{_lambda_.1} parent=1 // pred_region
      _
    $region45: #{_lambda_.1} parent=1 // pred_fallthru
      _
    // Predicated region
    $region46: #{_lambda_.1} parent=1 // pred_check
      _
    $region47: #{_lambda_.1} parent=1 // pred_check_branch
      %46 = sbr.rel (0) target = $region49
    $region48: #{_lambda_.1} parent=1 // pred_region
      _
    $region49: #{_lambda_.1} parent=1 // pred_fallthru
      _
    // Predicated region
    $region50: #{_lambda_.1} parent=1 // pred_check
      _
    $region51: #{_lambda_.1} parent=1 // pred_check_branch
      %48 = sbr.rel (0) target = $region53
    $region52: #{_lambda_.1} parent=1 // pred_region
      _
    $region53: #{_lambda_.1} parent=1 // pred_fallthru
      _
    // Predicated region
    $region54: #{_lambda_.1} parent=1 // pred_check
      _
    $region55: #{_lambda_.1} parent=1 // pred_check_branch
      %50 = sbr.rel (0) target = $region57
    $region56: #{_lambda_.1} parent=1 // pred_region
      _
    $region57: #{_lambda_.1} parent=1 // pred_fallthru
      _
    // Predicated region
    $region58: #{_lambda_.1} parent=1 // pred_check
      _
    $region59: #{_lambda_.1} parent=1 // pred_check_branch
      %52 = sbr.rel (0) target = $region61
    $region60: #{_lambda_.1} parent=1 // pred_region
      _
    $region61: #{_lambda_.1} parent=1 // pred_fallthru
      _
    // Predicated region
    $region62: #{_lambda_.1} parent=1 // pred_check
      _
    $region63: #{_lambda_.1} parent=1 // pred_check_branch
      %54 = sbr.rel (0) target = $region65
    $region64: #{_lambda_.1} parent=1 // pred_region
      _
    $region65: #{_lambda_.1} parent=1 // pred_fallthru
      _
    // Predicated region
    $region66: #{_lambda_.1} parent=1 // pred_check
      _
    $region67: #{_lambda_.1} parent=1 // pred_check_branch
      %56 = sbr.rel (0) target = $region69
    $region68: #{_lambda_.1} parent=1 // pred_region
      _
    $region69: #{_lambda_.1} parent=1 // pred_fallthru
      _
    %v57 = vld [vmem:[%s0] sm:$0xff]
    %v58 = vld [vmem:[%s0 + $0x8] sm:$0xff]
    %v59 = vld [vmem:[%s0 + $0x10] sm:$0xff]
    %v60 = vld [vmem:[%s0 + $0x18] sm:$0xff]
    %v61 = vld [vmem:[%s0 + $0x20] sm:$0xff]
    %v62 = vld [vmem:[%s0 + $0x28] sm:$0xff]
    %v63 = vld [vmem:[%s0 + $0x30] sm:$0xff]
    %v64 = vld [vmem:[%s0 + $0x38] sm:$0xff]
    %v65 = vld [vmem:[%s0 + $0x40] sm:$0xff]
    %v66 = vld [vmem:[%s0 + $0x48] sm:$0xff]
    %v67 = vld [vmem:[%s0 + $0x50] sm:$0xff]
    %v68 = vld [vmem:[%s0 + $0x58] sm:$0xff]
    %v69 = vld [vmem:[%s0 + $0x60] sm:$0xff]
    %v70 = vld [vmem:[%s0 + $0x68] sm:$0xff]
    %v71 = vld [vmem:[%s0 + $0x70] sm:$0xff]
    %v72 = vld [vmem:[%s0 + $0x78] sm:$0xff]
    %v73 = vld [vmem:[%s0 + $0x80] sm:$0xff]
    %v74 = vld [vmem:[%s0 + $0x88] sm:$0xff]
    %v75 = vld [vmem:[%s0 + $0x90] sm:$0xff]
    %v76 = vld [vmem:[%s0 + $0x98] sm:$0xff]
    %v77 = vld [vmem:[%s0 + $0xa0] sm:$0xff]
    %v78 = vld [vmem:[%s0 + $0xa8] sm:$0xff]
    %v79 = vld [vmem:[%s0 + $0xb0] sm:$0xff]
    %v80 = vld [vmem:[%s0 + $0xb8] sm:$0xff]
    %v81 = vld [vmem:[%s0 + $0xc0] sm:$0xff]
    %v82 = vld [vmem:[%s0 + $0xc8] sm:$0xff]
    %v83 = vld [vmem:[%s0 + $0xd0] sm:$0xff]
    %v84 = vld [vmem:[%s0 + $0xd8] sm:$0xff]
    %v85 = vld [vmem:[%s1] sm:$0xff]
    %v86 = vld [vmem:[%s1 + $0x8] sm:$0xff]
    %v87 = vld [vmem:[%s1 + $0x10] sm:$0xff]
    %v88 = vld [vmem:[%s1 + $0x18] sm:$0xff]
    %v89 = vld [vmem:[%s1 + $0x20] sm:$0xff]
    %v90 = vld [vmem:[%s1 + $0x28] sm:$0xff]
    %v91 = vld [vmem:[%s1 + $0x30] sm:$0xff]
    %v92 = vld [vmem:[%s1 + $0x38] sm:$0xff]
    %v93 = vld [vmem:[%s1 + $0x40] sm:$0xff]
    %v94 = vld [vmem:[%s1 + $0x48] sm:$0xff]
    %v95 = vld [vmem:[%s1 + $0x50] sm:$0xff]
    %v96 = vld [vmem:[%s1 + $0x58] sm:$0xff]
    %v97 = vld [vmem:[%s1 + $0x60] sm:$0xff]
    %v98 = vld [vmem:[%s1 + $0x68] sm:$0xff]
    %v99 = vld [vmem:[%s1 + $0x70] sm:$0xff]
    %v100 = vld [vmem:[%s1 + $0x78] sm:$0xff]
    %v101 = vld [vmem:[%s1 + $0x80] sm:$0xff]
    %v102 = vld [vmem:[%s1 + $0x88] sm:$0xff]
    %v103 = vld [vmem:[%s1 + $0x90] sm:$0xff]
    %v104 = vld [vmem:[%s1 + $0x98] sm:$0xff]
    %v105 = vld [vmem:[%s1 + $0xa0] sm:$0xff]
    %v106 = vld [vmem:[%s1 + $0xa8] sm:$0xff]
    %v107 = vld [vmem:[%s1 + $0xb0] sm:$0xff]
    %v108 = vld [vmem:[%s1 + $0xb8] sm:$0xff]
    %v109 = vld [vmem:[%s1 + $0xc0] sm:$0xff]
    %v110 = vld [vmem:[%s1 + $0xc8] sm:$0xff]
    %v111 = vld [vmem:[%s1 + $0xd0] sm:$0xff]
    %v112 = vld [vmem:[%s1 + $0xd8] sm:$0xff]
    %v113 = vld [vmem:[%s1 + $0xe0] sm:$0xff]
    %v114 = vld [vmem:[%s1 + $0xe8] sm:$0xff]
    %v115 = vld [vmem:[%s1 + $0xf0] sm:$0xff]
    %v116 = vld [vmem:[%s1 + $0xf8] sm:$0xff]
    %v117 = vld [vmem:[%s1 + $0x100] sm:$0xff]
    %v118 = vld [vmem:[%s1 + $0x108] sm:$0xff]
    %v119 = vld [vmem:[%s1 + $0x110] sm:$0xff]
    %v120 = vld [vmem:[%s1 + $0x118] sm:$0xff]
    %v121 = vld [vmem:[%s1 + $0x120] sm:$0xff]
    %v122 = vld [vmem:[%s1 + $0x128] sm:$0xff]
    %v123 = vld [vmem:[%s1 + $0x130] sm:$0xff]
    %v124 = vld [vmem:[%s1 + $0x138] sm:$0xff]
    %v125 = vld [vmem:[%s1 + $0x140] sm:$0xff]
    %v126 = vld [vmem:[%s1 + $0x148] sm:$0xff]
    %v127 = vld [vmem:[%s1 + $0x150] sm:$0xff]
    %v128 = vld [vmem:[%s1 + $0x158] sm:$0xff]
    %v129 = vld [vmem:[%s1 + $0x160] sm:$0xff]
    %v130 = vld [vmem:[%s1 + $0x168] sm:$0xff]
    %v131 = vld [vmem:[%s1 + $0x170] sm:$0xff]
    %v132 = vld [vmem:[%s1 + $0x178] sm:$0xff]
    %v133 = vld [vmem:[%s1 + $0x180] sm:$0xff]
    %v134 = vld [vmem:[%s1 + $0x188] sm:$0xff]
    %v135 = vld [vmem:[%s1 + $0x190] sm:$0xff]
    %v136 = vld [vmem:[%s1 + $0x198] sm:$0xff]
    %v137 = vld [vmem:[%s1 + $0x1a0] sm:$0xff]
    %v138 = vld [vmem:[%s1 + $0x1a8] sm:$0xff]
    %v139 = vld [vmem:[%s1 + $0x1b0] sm:$0xff]
    %v140 = vld [vmem:[%s1 + $0x1b8] sm:$0xff]
    %v141 = vld [vmem:[%s1 + $0x1c0] sm:$0xff]
    %v142 = vld [vmem:[%s1 + $0x1c8] sm:$0xff]
    %v143 = vld [vmem:[%s1 + $0x1d0] sm:$0xff]
    %v144 = vld [vmem:[%s1 + $0x1d8] sm:$0xff]
    %v145 = vld [vmem:[%s1 + $0x1e0] sm:$0xff]
    %v146 = vld [vmem:[%s1 + $0x1e8] sm:$0xff]
    %v147 = vld [vmem:[%s1 + $0x1f0] sm:$0xff]
    %v148 = vld [vmem:[%s1 + $0x1f8] sm:$0xff]
    %v149 = vld [vmem:[%s1 + $0x200] sm:$0xff]
    %v150 = vld [vmem:[%s1 + $0x208] sm:$0xff]
    %v151 = vld [vmem:[%s1 + $0x210] sm:$0xff]
    %v152 = vld [vmem:[%s1 + $0x218] sm:$0xff]
    %v153 = vld [vmem:[%s1 + $0x220] sm:$0xff]
    %v154 = vld [vmem:[%s1 + $0x228] sm:$0xff]
    %v155 = vld [vmem:[%s1 + $0x230] sm:$0xff]
    %v156 = vld [vmem:[%s1 + $0x238] sm:$0xff]
    %v157 = vld [vmem:[%s1 + $0x240] sm:$0xff]
    %v158 = vld [vmem:[%s1 + $0x248] sm:$0xff]
    %v159 = vld [vmem:[%s1 + $0x250] sm:$0xff]
    %v160 = vld [vmem:[%s1 + $0x258] sm:$0xff]
    %v161 = vld [vmem:[%s1 + $0x260] sm:$0xff]
    %v162 = vld [vmem:[%s1 + $0x268] sm:$0xff]
    %v163 = vld [vmem:[%s1 + $0x270] sm:$0xff]
    %v164 = vld [vmem:[%s1 + $0x278] sm:$0xff]
    %v165 = vld [vmem:[%s1 + $0x280] sm:$0xff]
    %v166 = vld [vmem:[%s1 + $0x288] sm:$0xff]
    %v167 = vld [vmem:[%s1 + $0x290] sm:$0xff]
    %v168 = vld [vmem:[%s1 + $0x298] sm:$0xff]
    %v169 = vld [vmem:[%s1 + $0x2a0] sm:$0xff]
    %v170 = vld [vmem:[%s1 + $0x2a8] sm:$0xff]
    %v171 = vld [vmem:[%s1 + $0x2b0] sm:$0xff]
    %v172 = vld [vmem:[%s1 + $0x2b8] sm:$0xff]
    %v173 = vld [vmem:[%s1 + $0x2c0] sm:$0xff]
    %v174 = vld [vmem:[%s1 + $0x2c8] sm:$0xff]
    %v175 = vld [vmem:[%s1 + $0x2d0] sm:$0xff]
    %v176 = vld [vmem:[%s1 + $0x2d8] sm:$0xff]
    %v177 = vld [vmem:[%s1 + $0x2e0] sm:$0xff]
    %v178 = vld [vmem:[%s1 + $0x2e8] sm:$0xff]
    %v179 = vld [vmem:[%s1 + $0x2f0] sm:$0xff]
    %v180 = vld [vmem:[%s1 + $0x2f8] sm:$0xff]
    %v181 = vld [vmem:[%s1 + $0x300] sm:$0xff]
    %v182 = vld [vmem:[%s1 + $0x308] sm:$0xff]
    %v183 = vld [vmem:[%s1 + $0x310] sm:$0xff]
    %v184 = vld [vmem:[%s1 + $0x318] sm:$0xff]
    %v185 = vld [vmem:[%s1 + $0x320] sm:$0xff]
    %v186 = vld [vmem:[%s1 + $0x328] sm:$0xff]
    %v187 = vld [vmem:[%s1 + $0x330] sm:$0xff]
    %v188 = vld [vmem:[%s1 + $0x338] sm:$0xff]
    %v189 = vld [vmem:[%s1 + $0x340] sm:$0xff]
    %v190 = vld [vmem:[%s1 + $0x348] sm:$0xff]
    %v191 = vld [vmem:[%s1 + $0x350] sm:$0xff]
    %v192 = vld [vmem:[%s1 + $0x358] sm:$0xff]
    %v193 = vld [vmem:[%s1 + $0x360] sm:$0xff]
    %v194 = vld [vmem:[%s1 + $0x368] sm:$0xff]
    %v195 = vld [vmem:[%s1 + $0x370] sm:$0xff]
    %v196 = vld [vmem:[%s1 + $0x378] sm:$0xff]
    %v197 = vld [vmem:[%s1 + $0x380] sm:$0xff]
    %v198 = vld [vmem:[%s1 + $0x388] sm:$0xff]
    %v199 = vld [vmem:[%s1 + $0x390] sm:$0xff]
    %v200 = vld [vmem:[%s1 + $0x398] sm:$0xff]
    %v201 = vld [vmem:[%s1 + $0x3a0] sm:$0xff]
    %v202 = vld [vmem:[%s1 + $0x3a8] sm:$0xff]
    %v203 = vld [vmem:[%s1 + $0x3b0] sm:$0xff]
    %v204 = vld [vmem:[%s1 + $0x3b8] sm:$0xff]
    %v205 = vld [vmem:[%s2] sm:$0x3]
    %v207 = vlaneseq
    %v208 = vshrl.u32 %v207, 7
    %v209 = vsub.s32 0, %v208
    %v210 = vrot.slane %v205, %v209
    %v211 = vlaneseq
    %v212 = vshrl.u32 %v211, 7
    %v213 = vsub.s32 1, %v212
    %v214 = vrot.slane %v205, %v213
    %vm217 = vcmask 785408
    %v219 = vsel %vm217, %v60, 0
    %v222 = vsel %vm217, %v64, 0
    %v225 = vsel %vm217, %v68, 0
    %v228 = vsel %vm217, %v72, 0
    %v231 = vsel %vm217, %v76, 0
    %v234 = vsel %vm217, %v80, 0
    %v237 = vsel %vm217, %v84, 0
    %239 = vmatprep.subr.mxu0 %v116
    %240 = vmatpush1.msra.mxu0 %v115
    %241 = vmatprep.subr.mxu0 %v114
    %242 = vmatpush1.msra.mxu0 %v113
    %243 = vmatprep.subr.mxu0 %v112
    %244 = vmatpush1.msra.mxu0 %v111
    %245 = vmatprep.subr.mxu0 %v110
    %246 = vmatpush1.msra.mxu0 %v109
    %247 = vmatprep.subr.mxu0 %v108
    %248 = vmatpush1.msra.mxu0 %v107
    %249 = vmatprep.subr.mxu0 %v106
    %250 = vmatpush1.msra.mxu0 %v105
    %251 = vmatprep.subr.mxu0 %v104
    %252 = vmatpush1.msra.mxu0 %v103
    %253 = vmatprep.subr.mxu0 %v102
    %254 = vmatpush1.msra.mxu0 %v101
    %255 = vmatprep.subr.mxu0 %v100
    %256 = vmatpush1.msra.mxu0 %v99
    %257 = vmatprep.subr.mxu0 %v98
    %258 = vmatpush1.msra.mxu0 %v97
    %259 = vmatprep.subr.mxu0 %v96
    %260 = vmatpush1.msra.mxu0 %v95
    %261 = vmatprep.subr.mxu0 %v94
    %262 = vmatpush1.msra.mxu0 %v93
    %263 = vmatprep.subr.mxu0 %v92
    %264 = vmatpush1.msra.mxu0 %v91
    %265 = vmatprep.subr.mxu0 %v90
    %266 = vmatpush1.msra.mxu0 %v89
    %267 = vmatprep.subr.mxu0 %v88
    %268 = vmatpush1.msra.mxu0 %v87
    %269 = vmatprep.subr.mxu0 %v86
    %270 = vmatpush1.msra.mxu0 %v85
    %271 = vmatprep.subr.mxu0 %v148
    %272 = vmatpush2.msra.mxu0 %v147
    %273 = vmatprep.subr.mxu0 %v146
    %274 = vmatpush2.msra.mxu0 %v145
    %275 = vmatprep.subr.mxu0 %v144
    %276 = vmatpush2.msra.mxu0 %v143
    %277 = vmatprep.subr.mxu0 %v142
    %278 = vmatpush2.msra.mxu0 %v141
    %279 = vmatprep.subr.mxu0 %v140
    %280 = vmatpush2.msra.mxu0 %v139
    %281 = vmatprep.subr.mxu0 %v138
    %282 = vmatpush2.msra.mxu0 %v137
    %283 = vmatprep.subr.mxu0 %v136
    %284 = vmatpush2.msra.mxu0 %v135
    %285 = vmatprep.subr.mxu0 %v134
    %286 = vmatpush2.msra.mxu0 %v133
    %287 = vmatprep.subr.mxu0 %v132
    %288 = vmatpush2.msra.mxu0 %v131
    %289 = vmatprep.subr.mxu0 %v130
    %290 = vmatpush2.msra.mxu0 %v129
    %291 = vmatprep.subr.mxu0 %v128
    %292 = vmatpush2.msra.mxu0 %v127
    %293 = vmatprep.subr.mxu0 %v126
    %294 = vmatpush2.msra.mxu0 %v125
    %295 = vmatprep.subr.mxu0 %v124
    %296 = vmatpush2.msra.mxu0 %v123
    %297 = vmatprep.subr.mxu0 %v122
    %298 = vmatpush2.msra.mxu0 %v121
    %299 = vmatprep.subr.mxu0 %v120
    %300 = vmatpush2.msra.mxu0 %v119
    %301 = vmatprep.subr.mxu0 %v118
    %302 = vmatpush2.msra.mxu0 %v117
    %303 = vmatprep.mubr.f32.mxu0 %v58
    %304 = vmatmul.mubr.f32.gmra.mxu0 %v57
    %v305 = vpop.f32.mrf.mxu0
    %v306 = vadd.f32 %v210, %v305
    %v307 = vpop.f32.mrf.mxu0
    %v308 = vadd.f32 %v214, %v307
    %309 = vmatprep.mubr.f32.mxu0 %v62
    %310 = vmatmul.mubr.f32.gmra.mxu0 %v61
    %v311 = vpop.f32.mrf.mxu0
    %v312 = vadd.f32 %v210, %v311
    %v313 = vpop.f32.mrf.mxu0
    %v314 = vadd.f32 %v214, %v313
    %315 = vmatprep.mubr.f32.mxu0 %v66
    %316 = vmatmul.mubr.f32.gmra.mxu0 %v65
    %v317 = vpop.f32.mrf.mxu0
    %v318 = vadd.f32 %v210, %v317
    %v319 = vpop.f32.mrf.mxu0
    %v320 = vadd.f32 %v214, %v319
    %321 = vmatprep.mubr.f32.mxu0 %v70
    %322 = vmatmul.mubr.f32.gmra.mxu0 %v69
    %v323 = vpop.f32.mrf.mxu0
    %v324 = vadd.f32 %v210, %v323
    %v325 = vpop.f32.mrf.mxu0
    %v326 = vadd.f32 %v214, %v325
    %327 = vmatprep.mubr.f32.mxu0 %v74
    %328 = vmatmul.mubr.f32.gmra.mxu0 %v73
    %v329 = vpop.f32.mrf.mxu0
    %v330 = vadd.f32 %v210, %v329
    %v331 = vpop.f32.mrf.mxu0
    %v332 = vadd.f32 %v214, %v331
    %333 = vmatprep.mubr.f32.mxu0 %v78
    %334 = vmatmul.mubr.f32.gmra.mxu0 %v77
    %v335 = vpop.f32.mrf.mxu0
    %v336 = vadd.f32 %v210, %v335
    %v337 = vpop.f32.mrf.mxu0
    %v338 = vadd.f32 %v214, %v337
    %339 = vmatprep.mubr.f32.mxu0 %v82
    %340 = vmatmul.mubr.f32.gmra.mxu0 %v81
    %v341 = vpop.f32.mrf.mxu0
    %v342 = vadd.f32 %v210, %v341
    %v343 = vpop.f32.mrf.mxu0
    %v344 = vadd.f32 %v214, %v343
    %345 = vdwg.mxu0
    %346 = vmatprep.subr.mxu0 %v180
    %347 = vmatpush1.msra.mxu0 %v179
    %348 = vmatprep.subr.mxu0 %v178
    %349 = vmatpush1.msra.mxu0 %v177
    %350 = vmatprep.subr.mxu0 %v176
    %351 = vmatpush1.msra.mxu0 %v175
    %352 = vmatprep.subr.mxu0 %v174
    %353 = vmatpush1.msra.mxu0 %v173
    %354 = vmatprep.subr.mxu0 %v172
    %355 = vmatpush1.msra.mxu0 %v171
    %356 = vmatprep.subr.mxu0 %v170
    %357 = vmatpush1.msra.mxu0 %v169
    %358 = vmatprep.subr.mxu0 %v168
    %359 = vmatpush1.msra.mxu0 %v167
    %360 = vmatprep.subr.mxu0 %v166
    %361 = vmatpush1.msra.mxu0 %v165
    %362 = vmatprep.subr.mxu0 %v164
    %363 = vmatpush1.msra.mxu0 %v163
    %364 = vmatprep.subr.mxu0 %v162
    %365 = vmatpush1.msra.mxu0 %v161
    %366 = vmatprep.subr.mxu0 %v160
    %367 = vmatpush1.msra.mxu0 %v159
    %368 = vmatprep.subr.mxu0 %v158
    %369 = vmatpush1.msra.mxu0 %v157
    %370 = vmatprep.subr.mxu0 %v156
    %371 = vmatpush1.msra.mxu0 %v155
    %372 = vmatprep.subr.mxu0 %v154
    %373 = vmatpush1.msra.mxu0 %v153
    %374 = vmatprep.subr.mxu0 %v152
    %375 = vmatpush1.msra.mxu0 %v151
    %376 = vmatprep.subr.mxu0 %v150
    %377 = vmatpush1.msra.mxu0 %v149
    %378 = vmatprep.subr.mxu0 0.0
    %379 = vmatpush2.msra.mxu0 0.0
    %380 = vmatprep.subr.mxu0 0.0
    %381 = vmatpush2.msra.mxu0 0.0
    %382 = vmatprep.subr.mxu0 0.0
    %383 = vmatpush2.msra.mxu0 0.0
    %384 = vmatprep.subr.mxu0 0.0
    %385 = vmatpush2.msra.mxu0 0.0
    %386 = vmatprep.subr.mxu0 %v204
    %387 = vmatpush2.msra.mxu0 %v203
    %388 = vmatprep.subr.mxu0 %v202
    %389 = vmatpush2.msra.mxu0 %v201
    %390 = vmatprep.subr.mxu0 %v200
    %391 = vmatpush2.msra.mxu0 %v199
    %392 = vmatprep.subr.mxu0 %v198
    %393 = vmatpush2.msra.mxu0 %v197
    %394 = vmatprep.subr.mxu0 %v196
    %395 = vmatpush2.msra.mxu0 %v195
    %396 = vmatprep.subr.mxu0 %v194
    %397 = vmatpush2.msra.mxu0 %v193
    %398 = vmatprep.subr.mxu0 %v192
    %399 = vmatpush2.msra.mxu0 %v191
    %400 = vmatprep.subr.mxu0 %v190
    %401 = vmatpush2.msra.mxu0 %v189
    %402 = vmatprep.subr.mxu0 %v188
    %403 = vmatpush2.msra.mxu0 %v187
    %404 = vmatprep.subr.mxu0 %v186
    %405 = vmatpush2.msra.mxu0 %v185
    %406 = vmatprep.subr.mxu0 %v184
    %407 = vmatpush2.msra.mxu0 %v183
    %408 = vmatprep.subr.mxu0 %v182
    %409 = vmatpush2.msra.mxu0 %v181
    %410 = vmatprep.mubr.f32.mxu0 %v219
    %411 = vmatmul.mubr.f32.gmra.mxu0 %v59
    %v412 = vpop.f32.mrf.mxu0
    %v413 = vadd.f32 %v306, %v412
    %v414 = vpop.f32.mrf.mxu0
    %v415 = vadd.f32 %v308, %v414
    %416 = vmatprep.mubr.f32.mxu0 %v222
    %417 = vmatmul.mubr.f32.gmra.mxu0 %v63
    %v418 = vpop.f32.mrf.mxu0
    %v419 = vadd.f32 %v312, %v418
    %v420 = vpop.f32.mrf.mxu0
    %v421 = vadd.f32 %v314, %v420
    %422 = vmatprep.mubr.f32.mxu0 %v225
    %423 = vmatmul.mubr.f32.gmra.mxu0 %v67
    %v424 = vpop.f32.mrf.mxu0
    %v425 = vadd.f32 %v318, %v424
    %v426 = vpop.f32.mrf.mxu0
    %v427 = vadd.f32 %v320, %v426
    %428 = vmatprep.mubr.f32.mxu0 %v228
    %429 = vmatmul.mubr.f32.gmra.mxu0 %v71
    %v430 = vpop.f32.mrf.mxu0
    %v431 = vadd.f32 %v324, %v430
    %v432 = vpop.f32.mrf.mxu0
    %v433 = vadd.f32 %v326, %v432
    %434 = vmatprep.mubr.f32.mxu0 %v231
    %435 = vmatmul.mubr.f32.gmra.mxu0 %v75
    %v436 = vpop.f32.mrf.mxu0
    %v437 = vadd.f32 %v330, %v436
    %v438 = vpop.f32.mrf.mxu0
    %v439 = vadd.f32 %v332, %v438
    %440 = vmatprep.mubr.f32.mxu0 %v234
    %441 = vmatmul.mubr.f32.gmra.mxu0 %v79
    %v442 = vpop.f32.mrf.mxu0
    %v443 = vadd.f32 %v336, %v442
    %v444 = vpop.f32.mrf.mxu0
    %v445 = vadd.f32 %v338, %v444
    %446 = vmatprep.mubr.f32.mxu0 %v237
    %447 = vmatmul.mubr.f32.gmra.mxu0 %v83
    %v448 = vpop.f32.mrf.mxu0
    %v449 = vadd.f32 %v342, %v448
    %v450 = vpop.f32.mrf.mxu0
    %v451 = vadd.f32 %v344, %v450
    %452 = vdwg.mxu0
    %v453 = vmax.f32 %v413, 0.0
    %v454 = vmax.f32 %v415, 0.0
    %v455 = vmax.f32 %v419, 0.0
    %v456 = vmax.f32 %v421, 0.0
    %v457 = vmax.f32 %v425, 0.0
    %v458 = vmax.f32 %v427, 0.0
    %v459 = vmax.f32 %v431, 0.0
    %v460 = vmax.f32 %v433, 0.0
    %v461 = vmax.f32 %v437, 0.0
    %v462 = vmax.f32 %v439, 0.0
    %v463 = vmax.f32 %v443, 0.0
    %v464 = vmax.f32 %v445, 0.0
    %v465 = vmax.f32 %v449, 0.0
    %v466 = vmax.f32 %v451, 0.0
    %v467 = vld [vmem:[%s3] sm:$0xff]
    %v468 = vld [vmem:[%s3 + $0x8] sm:$0xff]
    %v469 = vld [vmem:[%s3 + $0x10] sm:$0xff]
    %v470 = vld [vmem:[%s3 + $0x18] sm:$0xff]
    %v471 = vld [vmem:[%s3 + $0x20] sm:$0xff]
    %v472 = vld [vmem:[%s3 + $0x28] sm:$0xff]
    %v473 = vld [vmem:[%s3 + $0x30] sm:$0xff]
    %v474 = vld [vmem:[%s3 + $0x38] sm:$0xff]
    %v475 = vld [vmem:[%s3 + $0x40] sm:$0xff]
    %v476 = vld [vmem:[%s3 + $0x48] sm:$0xff]
    %v477 = vld [vmem:[%s3 + $0x50] sm:$0xff]
    %v478 = vld [vmem:[%s3 + $0x58] sm:$0xff]
    %v479 = vld [vmem:[%s3 + $0x60] sm:$0xff]
    %v480 = vld [vmem:[%s3 + $0x68] sm:$0xff]
    %v481 = vld [vmem:[%s3 + $0x70] sm:$0xff]
    %v482 = vld [vmem:[%s3 + $0x78] sm:$0xff]
    %v483 = vld [vmem:[%s3 + $0x80] sm:$0xff]
    %v484 = vld [vmem:[%s3 + $0x88] sm:$0xff]
    %v485 = vld [vmem:[%s3 + $0x90] sm:$0xff]
    %v486 = vld [vmem:[%s3 + $0x98] sm:$0xff]
    %v487 = vld [vmem:[%s3 + $0xa0] sm:$0xff]
    %vm488 = vcmask 326656
    %v490 = vsel %vm488, %v454, 0
    %v493 = vsel %vm488, %v456, 0
    %v496 = vsel %vm488, %v458, 0
    %v499 = vsel %vm488, %v460, 0
    %v502 = vsel %vm488, %v462, 0
    %v505 = vsel %vm488, %v464, 0
    %v508 = vsel %vm488, %v466, 0
    %510 = vmatprep.subr.mxu0 0.0
    %511 = vmatpush1.msra.mxu0 %v482
    %512 = vmatprep.subr.mxu0 0.0
    %513 = vmatpush1.msra.mxu0 %v481
    %514 = vmatprep.subr.mxu0 0.0
    %515 = vmatpush1.msra.mxu0 %v480
    %516 = vmatprep.subr.mxu0 0.0
    %517 = vmatpush1.msra.mxu0 %v479
    %518 = vmatprep.subr.mxu0 0.0
    %519 = vmatpush1.msra.mxu0 %v478
    %520 = vmatprep.subr.mxu0 0.0
    %521 = vmatpush1.msra.mxu0 %v477
    %522 = vmatprep.subr.mxu0 0.0
    %523 = vmatpush1.msra.mxu0 %v476
    %524 = vmatprep.subr.mxu0 0.0
    %525 = vmatpush1.msra.mxu0 %v475
    %526 = vmatprep.subr.mxu0 0.0
    %527 = vmatpush1.msra.mxu0 %v474
    %528 = vmatprep.subr.mxu0 0.0
    %529 = vmatpush1.msra.mxu0 %v473
    %530 = vmatprep.subr.mxu0 0.0
    %531 = vmatpush1.msra.mxu0 %v472
    %532 = vmatprep.subr.mxu0 0.0
    %533 = vmatpush1.msra.mxu0 %v471
    %534 = vmatprep.subr.mxu0 0.0
    %535 = vmatpush1.msra.mxu0 %v470
    %536 = vmatprep.subr.mxu0 0.0
    %537 = vmatpush1.msra.mxu0 %v469
    %538 = vmatprep.subr.mxu0 0.0
    %539 = vmatpush1.msra.mxu0 %v468
    %540 = vmatprep.subr.mxu0 0.0
    %541 = vmatpush1.msra.mxu0 %v467
    %542 = vmatprep.subr.mxu0 0.0
    %543 = vmatpush2.msra.mxu0 0.0
    %544 = vmatprep.subr.mxu0 0.0
    %545 = vmatpush2.msra.mxu0 0.0
    %546 = vmatprep.subr.mxu0 0.0
    %547 = vmatpush2.msra.mxu0 0.0
    %548 = vmatprep.subr.mxu0 0.0
    %549 = vmatpush2.msra.mxu0 0.0
    %550 = vmatprep.subr.mxu0 0.0
    %551 = vmatpush2.msra.mxu0 0.0
    %552 = vmatprep.subr.mxu0 0.0
    %553 = vmatpush2.msra.mxu0 0.0
    %554 = vmatprep.subr.mxu0 0.0
    %555 = vmatpush2.msra.mxu0 0.0
    %556 = vmatprep.subr.mxu0 0.0
    %557 = vmatpush2.msra.mxu0 0.0
    %558 = vmatprep.subr.mxu0 0.0
    %559 = vmatpush2.msra.mxu0 0.0
    %560 = vmatprep.subr.mxu0 0.0
    %561 = vmatpush2.msra.mxu0 0.0
    %562 = vmatprep.subr.mxu0 0.0
    %563 = vmatpush2.msra.mxu0 0.0
    %564 = vmatprep.subr.mxu0 0.0
    %565 = vmatpush2.msra.mxu0 %v487
    %566 = vmatprep.subr.mxu0 0.0
    %567 = vmatpush2.msra.mxu0 %v486
    %568 = vmatprep.subr.mxu0 0.0
    %569 = vmatpush2.msra.mxu0 %v485
    %570 = vmatprep.subr.mxu0 0.0
    %571 = vmatpush2.msra.mxu0 %v484
    %572 = vmatprep.subr.mxu0 0.0
    %573 = vmatpush2.msra.mxu0 %v483
    %574 = vmatprep.mubr.f32.mxu0 %v490
    %575 = vmatmul.mubr.f32.gmra.mxu0 %v453
    %v576 = vpop.f32.mrf.mxu0
    %v577 = vadd.f32 0.0, %v576
    %v578 = vpop.f32.mrf.mxu0
    %579 = vmatprep.mubr.f32.mxu0 %v493
    %580 = vmatmul.mubr.f32.gmra.mxu0 %v455
    %v581 = vpop.f32.mrf.mxu0
    %v582 = vadd.f32 0.0, %v581
    %v583 = vpop.f32.mrf.mxu0
    %584 = vmatprep.mubr.f32.mxu0 %v496
    %585 = vmatmul.mubr.f32.gmra.mxu0 %v457
    %v586 = vpop.f32.mrf.mxu0
    %v587 = vadd.f32 0.0, %v586
    %v588 = vpop.f32.mrf.mxu0
    %589 = vmatprep.mubr.f32.mxu0 %v499
    %590 = vmatmul.mubr.f32.gmra.mxu0 %v459
    %v591 = vpop.f32.mrf.mxu0
    %v592 = vadd.f32 0.0, %v591
    %v593 = vpop.f32.mrf.mxu0
    %594 = vmatprep.mubr.f32.mxu0 %v502
    %595 = vmatmul.mubr.f32.gmra.mxu0 %v461
    %v596 = vpop.f32.mrf.mxu0
    %v597 = vadd.f32 0.0, %v596
    %v598 = vpop.f32.mrf.mxu0
    %599 = vmatprep.mubr.f32.mxu0 %v505
    %600 = vmatmul.mubr.f32.gmra.mxu0 %v463
    %v601 = vpop.f32.mrf.mxu0
    %v602 = vadd.f32 0.0, %v601
    %v603 = vpop.f32.mrf.mxu0
    %604 = vmatprep.mubr.f32.mxu0 %v508
    %605 = vmatmul.mubr.f32.gmra.mxu0 %v465
    %v606 = vpop.f32.mrf.mxu0
    %v607 = vadd.f32 0.0, %v606
    %v608 = vpop.f32.mrf.mxu0
    %609 = vdwg.mxu0
    %s610 = scalar_lea.vmem %s3, 168
    %v611 = vld [vmem:[%s610] sm:$0xff]
    %v612 = vld [vmem:[%s610 + $0x8] sm:$0xff]
    %v613 = vld [vmem:[%s610 + $0x10] sm:$0xff]
    %v614 = vld [vmem:[%s610 + $0x18] sm:$0xff]
    %v615 = vld [vmem:[%s610 + $0x20] sm:$0xff]
    %v616 = vld [vmem:[%s610 + $0x28] sm:$0xff]
    %v617 = vld [vmem:[%s610 + $0x30] sm:$0xff]
    %v618 = vld [vmem:[%s610 + $0x38] sm:$0xff]
    %v619 = vld [vmem:[%s610 + $0x40] sm:$0xff]
    %v620 = vld [vmem:[%s610 + $0x48] sm:$0xff]
    %v621 = vld [vmem:[%s610 + $0x50] sm:$0xff]
    %v622 = vld [vmem:[%s610 + $0x58] sm:$0xff]
    %v623 = vld [vmem:[%s610 + $0x60] sm:$0xff]
    %v624 = vld [vmem:[%s610 + $0x68] sm:$0xff]
    %v625 = vld [vmem:[%s610 + $0x70] sm:$0xff]
    %v626 = vld [vmem:[%s610 + $0x78] sm:$0xff]
    %v627 = vld [vmem:[%s610 + $0x80] sm:$0xff]
    %v628 = vld [vmem:[%s610 + $0x88] sm:$0xff]
    %v629 = vld [vmem:[%s610 + $0x90] sm:$0xff]
    %v630 = vld [vmem:[%s610 + $0x98] sm:$0xff]
    %v631 = vld [vmem:[%s610 + $0xa0] sm:$0xff]
    %632 = vmatprep.subr.mxu0 0.0
    %633 = vmatpush1.msra.mxu0 %v626
    %634 = vmatprep.subr.mxu0 0.0
    %635 = vmatpush1.msra.mxu0 %v625
    %636 = vmatprep.subr.mxu0 0.0
    %637 = vmatpush1.msra.mxu0 %v624
    %638 = vmatprep.subr.mxu0 0.0
    %639 = vmatpush1.msra.mxu0 %v623
    %640 = vmatprep.subr.mxu0 0.0
    %641 = vmatpush1.msra.mxu0 %v622
    %642 = vmatprep.subr.mxu0 0.0
    %643 = vmatpush1.msra.mxu0 %v621
    %644 = vmatprep.subr.mxu0 0.0
    %645 = vmatpush1.msra.mxu0 %v620
    %646 = vmatprep.subr.mxu0 0.0
    %647 = vmatpush1.msra.mxu0 %v619
    %648 = vmatprep.subr.mxu0 0.0
    %649 = vmatpush1.msra.mxu0 %v618
    %650 = vmatprep.subr.mxu0 0.0
    %651 = vmatpush1.msra.mxu0 %v617
    %652 = vmatprep.subr.mxu0 0.0
    %653 = vmatpush1.msra.mxu0 %v616
    %654 = vmatprep.subr.mxu0 0.0
    %655 = vmatpush1.msra.mxu0 %v615
    %656 = vmatprep.subr.mxu0 0.0
    %657 = vmatpush1.msra.mxu0 %v614
    %658 = vmatprep.subr.mxu0 0.0
    %659 = vmatpush1.msra.mxu0 %v613
    %660 = vmatprep.subr.mxu0 0.0
    %661 = vmatpush1.msra.mxu0 %v612
    %662 = vmatprep.subr.mxu0 0.0
    %663 = vmatpush1.msra.mxu0 %v611
    %664 = vmatprep.subr.mxu0 0.0
    %665 = vmatpush2.msra.mxu0 0.0
    %666 = vmatprep.subr.mxu0 0.0
    %667 = vmatpush2.msra.mxu0 0.0
    %668 = vmatprep.subr.mxu0 0.0
    %669 = vmatpush2.msra.mxu0 0.0
    %670 = vmatprep.subr.mxu0 0.0
    %671 = vmatpush2.msra.mxu0 0.0
    %672 = vmatprep.subr.mxu0 0.0
    %673 = vmatpush2.msra.mxu0 0.0
    %674 = vmatprep.subr.mxu0 0.0
    %675 = vmatpush2.msra.mxu0 0.0
    %676 = vmatprep.subr.mxu0 0.0
    %677 = vmatpush2.msra.mxu0 0.0
    %678 = vmatprep.subr.mxu0 0.0
    %679 = vmatpush2.msra.mxu0 0.0
    %680 = vmatprep.subr.mxu0 0.0
    %681 = vmatpush2.msra.mxu0 0.0
    %682 = vmatprep.subr.mxu0 0.0
    %683 = vmatpush2.msra.mxu0 0.0
    %684 = vmatprep.subr.mxu0 0.0
    %685 = vmatpush2.msra.mxu0 0.0
    %686 = vmatprep.subr.mxu0 0.0
    %687 = vmatpush2.msra.mxu0 %v631
    %688 = vmatprep.subr.mxu0 0.0
    %689 = vmatpush2.msra.mxu0 %v630
    %690 = vmatprep.subr.mxu0 0.0
    %691 = vmatpush2.msra.mxu0 %v629
    %692 = vmatprep.subr.mxu0 0.0
    %693 = vmatpush2.msra.mxu0 %v628
    %694 = vmatprep.subr.mxu0 0.0
    %695 = vmatpush2.msra.mxu0 %v627
    %696 = vmatprep.mubr.f32.mxu0 %v490
    %697 = vmatmul.mubr.f32.gmra.mxu0 %v453
    %v698 = vpop.f32.mrf.mxu0
    %v699 = vadd.f32 0.0, %v698
    %v700 = vpop.f32.mrf.mxu0
    %701 = vmatprep.mubr.f32.mxu0 %v493
    %702 = vmatmul.mubr.f32.gmra.mxu0 %v455
    %v703 = vpop.f32.mrf.mxu0
    %v704 = vadd.f32 0.0, %v703
    %v705 = vpop.f32.mrf.mxu0
    %706 = vmatprep.mubr.f32.mxu0 %v496
    %707 = vmatmul.mubr.f32.gmra.mxu0 %v457
    %v708 = vpop.f32.mrf.mxu0
    %v709 = vadd.f32 0.0, %v708
    %v710 = vpop.f32.mrf.mxu0
    %711 = vmatprep.mubr.f32.mxu0 %v499
    %712 = vmatmul.mubr.f32.gmra.mxu0 %v459
    %v713 = vpop.f32.mrf.mxu0
    %v714 = vadd.f32 0.0, %v713
    %v715 = vpop.f32.mrf.mxu0
    %716 = vmatprep.mubr.f32.mxu0 %v502
    %717 = vmatmul.mubr.f32.gmra.mxu0 %v461
    %v718 = vpop.f32.mrf.mxu0
    %v719 = vadd.f32 0.0, %v718
    %v720 = vpop.f32.mrf.mxu0
    %721 = vmatprep.mubr.f32.mxu0 %v505
    %722 = vmatmul.mubr.f32.gmra.mxu0 %v463
    %v723 = vpop.f32.mrf.mxu0
    %v724 = vadd.f32 0.0, %v723
    %v725 = vpop.f32.mrf.mxu0
    %726 = vmatprep.mubr.f32.mxu0 %v508
    %727 = vmatmul.mubr.f32.gmra.mxu0 %v465
    %v728 = vpop.f32.mrf.mxu0
    %v729 = vadd.f32 0.0, %v728
    %v730 = vpop.f32.mrf.mxu0
    %731 = vdwg.mxu0
    %v732 = vmax.f32 %v577, %v699
    %v733 = vmax.f32 %v582, %v704
    %v734 = vmax.f32 %v587, %v709
    %v735 = vmax.f32 %v592, %v714
    %v736 = vmax.f32 %v597, %v719
    %v737 = vmax.f32 %v602, %v724
    %v738 = vmax.f32 %v607, %v729
    %vm739 = vcmask 687104
    %740 = vst.msk [vmem:[#allocation2] sm:$0xff] %vm739, %v732
    %741 = vst.msk [vmem:[#allocation2 + $0x8] sm:$0xff] %vm739, %v733
    %742 = vst.msk [vmem:[#allocation2 + $0x10] sm:$0xff] %vm739, %v734
    %743 = vst.msk [vmem:[#allocation2 + $0x18] sm:$0xff] %vm739, %v735
    %744 = vst.msk [vmem:[#allocation2 + $0x20] sm:$0xff] %vm739, %v736
    %745 = vst.msk [vmem:[#allocation2 + $0x28] sm:$0xff] %vm739, %v737
    %746 = vst.msk [vmem:[#allocation2 + $0x30] sm:$0xff] %vm739, %v738
    %v747 = vld [vmem:[#allocation2] ss:$2 sm:$0xff]
    %s748 = scalar_lea.vmem [#allocation2], 16
    %v749 = vld [vmem:[%s748] ss:$2 sm:$0xff]
    %s750 = scalar_lea.vmem [#allocation2], 32
    %v751 = vld [vmem:[%s750] ss:$2 sm:$0xff]
    %s752 = scalar_lea.vmem [#allocation2], 48
    %v753 = vld [vmem:[%s752] ss:$2 sm:$0xf]
    %s754 = scalar_lea.vmem [#allocation2], 1
    %v755 = vld [vmem:[%s754] ss:$2 sm:$0xff]
    %s756 = scalar_lea.vmem [#allocation2], 17
    %v757 = vld [vmem:[%s756] ss:$2 sm:$0xff]
    %s758 = scalar_lea.vmem [#allocation2], 33
    %v759 = vld [vmem:[%s758] ss:$2 sm:$0xff]
    %s760 = scalar_lea.vmem [#allocation2], 49
    %v761 = vld [vmem:[%s760] ss:$2 sm:$0xf]
    %v762 = vmax.f32 %v747, %v755
    %v763 = vmax.f32 %v749, %v757
    %v764 = vmax.f32 %v751, %v759
    %v765 = vmax.f32 %v753, %v761
    %766 = vst [vmem:[#allocation4] sm:$0xff] 0.0
    %767 = vst [vmem:[#allocation4 + $0x8] sm:$0xff] 0.0
    %768 = vst [vmem:[#allocation4 + $0x10] sm:$0xff] 0.0
    %769 = vst [vmem:[#allocation4 + $0x18] sm:$0xff] 0.0
    %770 = vst [vmem:[#allocation4 + $0x20] sm:$0xff] 0.0
    %771 = vst [vmem:[#allocation4 + $0x28] sm:$0xff] 0.0
    %772 = vst [vmem:[#allocation4 + $0x30] sm:$0xff] 0.0
    %773 = vst [vmem:[#allocation4 + $0x38] sm:$0xff] 0.0
    %774 = vst [vmem:[#allocation4 + $0x40] sm:$0xff] 0.0
    %775 = vst [vmem:[#allocation4 + $0x48] sm:$0xff] 0.0
    %776 = vst [vmem:[#allocation4 + $0x50] sm:$0xf] 0.0
    %777 = vst [vmem:[#allocation4 + $0x58] sm:$0xf] 0.0
    %778 = vst [vmem:[#allocation4 + $0x60] sm:$0xf] 0.0
    %779 = vst [vmem:[#allocation4 + $0x68] sm:$0xf] 0.0
    %780 = vst [vmem:[#allocation4 + $0x70] sm:$0xf] 0.0
    %781 = vst.msk [vmem:[#allocation4] sm:$0xff] %vm739, %v762
    %vm782 = vcmask 680960
    %783 = vst.msk [vmem:[#allocation4 + $0x28] sm:$0x3] %vm782, %v763
    %vm786 = vcmask 1046528
    %v787 = vrot.slane %v762, 1
    %v788 = vrot.slane %v763, 1
    %v789 = vsel %vm786, %v787, %v788
    %792 = vst.msk [vmem:[#allocation4 + $0x8] sm:$0xff] %vm739, %v789
    %793 = vst.msk [vmem:[#allocation4 + $0x30] sm:$0x3] %vm782, %v788
    %vm794 = vcmask 1045504
    %v795 = vrot.slane %v762, 2
    %v796 = vrot.slane %v763, 2
    %v797 = vsel %vm794, %v795, %v796
    %800 = vst.msk [vmem:[#allocation4 + $0x10] sm:$0xff] %vm739, %v797
    %801 = vst.msk [vmem:[#allocation4 + $0x38] sm:$0x3] %vm782, %v796
    %vm802 = vcmask 1044480
    %v803 = vrot.slane %v762, 3
    %v804 = vrot.slane %v763, 3
    %v805 = vsel %vm802, %v803, %v804
    %808 = vst.msk [vmem:[#allocation4 + $0x18] sm:$0xff] %vm739, %v805
    %809 = vst.msk [vmem:[#allocation4 + $0x40] sm:$0x3] %vm782, %v804
    %vm810 = vcmask 1043456
    %v811 = vrot.slane %v762, 4
    %v812 = vrot.slane %v763, 4
    %v813 = vsel %vm810, %v811, %v812
    %816 = vst.msk [vmem:[#allocation4 + $0x20] sm:$0xff] %vm739, %v813
    %817 = vst.msk [vmem:[#allocation4 + $0x48] sm:$0x3] %vm782, %v812
    %v819 = vrot.slane %v764, 4
    %v820 = vsel %vm810, %v812, %v819
    %vm823 = vcmask 687106
    %824 = vst.msk [vmem:[#allocation4 + $0x28] sm:$0xfc] %vm823, %v820
    %vm825 = vcmask 683008
    %826 = vst.msk [vmem:[#allocation4 + $0x50] sm:$0xf] %vm825, %v819
    %vm828 = vcmask 1042432
    %v829 = vrot.slane %v763, 5
    %v830 = vrot.slane %v764, 5
    %v831 = vsel %vm828, %v829, %v830
    %v832 = vrot.slane %v765, 5
    %v833 = vsel %vm828, %v830, %v832
    %836 = vst.msk [vmem:[#allocation4 + $0x30] sm:$0xfc] %vm823, %v831
    %837 = vst.msk [vmem:[#allocation4 + $0x58] sm:$0xf] %vm825, %v833
    %vm838 = vcmask 1041408
    %v839 = vrot.slane %v764, 6
    %v840 = vrot.slane %v765, 6
    %v841 = vsel %vm838, %v839, %v840
    %844 = vst.msk [vmem:[#allocation4 + $0x38] sm:$0xfc] %vm823, %v839
    %845 = vst.msk [vmem:[#allocation4 + $0x60] sm:$0xf] %vm825, %v841
    %vm846 = vcmask 1040384
    %v847 = vrot.slane %v764, 7
    %v848 = vrot.slane %v765, 7
    %v849 = vsel %vm846, %v847, %v848
    %852 = vst.msk [vmem:[#allocation4 + $0x40] sm:$0xfc] %vm823, %v847
    %853 = vst.msk [vmem:[#allocation4 + $0x68] sm:$0xf] %vm825, %v849
    %854 = vst.msk [vmem:[#allocation4 + $0x48] sm:$0xfc] %vm823, %v764
    %855 = vst.msk [vmem:[#allocation4 + $0x70] sm:$0xf] %vm825, %v765
    %v856 = vld [vmem:[#allocation4] sm:$0xff]
    %v857 = vld [vmem:[#allocation4 + $0x8] sm:$0xff]
    %v858 = vld [vmem:[#allocation4 + $0x10] sm:$0xff]
    %v859 = vld [vmem:[#allocation4 + $0x18] sm:$0xff]
    %v860 = vld [vmem:[#allocation4 + $0x20] sm:$0xff]
    %v861 = vld [vmem:[#allocation4 + $0x28] sm:$0xff]
    %v862 = vld [vmem:[#allocation4 + $0x30] sm:$0xff]
    %v863 = vld [vmem:[#allocation4 + $0x38] sm:$0xff]
    %v864 = vld [vmem:[#allocation4 + $0x40] sm:$0xff]
    %v865 = vld [vmem:[#allocation4 + $0x48] sm:$0xff]
    %v866 = vld [vmem:[#allocation4 + $0x50] sm:$0xf]
    %v867 = vld [vmem:[#allocation4 + $0x58] sm:$0xf]
    %v868 = vld [vmem:[#allocation4 + $0x60] sm:$0xf]
    %v869 = vld [vmem:[#allocation4 + $0x68] sm:$0xf]
    %v870 = vld [vmem:[#allocation4 + $0x70] sm:$0xf]
    %v871 = vld [vmem:[%s4] sm:$0xff]
    %v872 = vld [vmem:[%s4 + $0x8] sm:$0xff]
    %v873 = vld [vmem:[%s4 + $0x10] sm:$0xff]
    %v874 = vld [vmem:[%s4 + $0x18] sm:$0xff]
    %v875 = vld [vmem:[%s4 + $0x20] sm:$0xff]
    %v876 = vld [vmem:[%s4 + $0x28] sm:$0xff]
    %v877 = vld [vmem:[%s4 + $0x30] sm:$0xff]
    %v878 = vld [vmem:[%s4 + $0x38] sm:$0xff]
    %v879 = vld [vmem:[%s4 + $0x40] sm:$0xff]
    %v880 = vld [vmem:[%s4 + $0x48] sm:$0xff]
    %v881 = vld [vmem:[%s4 + $0x50] sm:$0xff]
    %v882 = vld [vmem:[%s4 + $0x58] sm:$0xff]
    %v883 = vld [vmem:[%s4 + $0x60] sm:$0xff]
    %v884 = vld [vmem:[%s4 + $0x68] sm:$0xff]
    %v885 = vld [vmem:[%s4 + $0x70] sm:$0xff]
    %v886 = vld [vmem:[%s4 + $0x78] sm:$0xff]
    %v887 = vld [vmem:[%s4 + $0x80] sm:$0xff]
    %v888 = vld [vmem:[%s4 + $0x88] sm:$0xff]
    %v889 = vld [vmem:[%s4 + $0x90] sm:$0xff]
    %v890 = vld [vmem:[%s4 + $0x98] sm:$0xff]
    %v891 = vld [vmem:[%s4 + $0xa0] sm:$0xff]
    %v892 = vld [vmem:[%s4 + $0xa8] sm:$0xff]
    %v893 = vld [vmem:[%s4 + $0xb0] sm:$0xff]
    %v894 = vld [vmem:[%s4 + $0xb8] sm:$0xff]
    %v895 = vld [vmem:[%s4 + $0xc0] sm:$0xff]
    %v896 = vld [vmem:[%s4 + $0xc8] sm:$0xff]
    %v897 = vld [vmem:[%s4 + $0xd0] sm:$0xff]
    %v898 = vld [vmem:[%s4 + $0xd8] sm:$0xff]
    %v899 = vld [vmem:[%s4 + $0xe0] sm:$0xff]
    %v900 = vld [vmem:[%s4 + $0xe8] sm:$0xff]
    %v901 = vld [vmem:[%s4 + $0xf0] sm:$0xff]
    %v902 = vld [vmem:[%s4 + $0xf8] sm:$0xff]
    %v903 = vld [vmem:[%s4 + $0x100] sm:$0xff]
    %v904 = vld [vmem:[%s4 + $0x108] sm:$0xff]
    %v905 = vld [vmem:[%s4 + $0x110] sm:$0xff]
    %v906 = vld [vmem:[%s4 + $0x118] sm:$0xff]
    %v907 = vld [vmem:[%s4 + $0x120] sm:$0xff]
    %v908 = vld [vmem:[%s4 + $0x128] sm:$0xff]
    %v909 = vld [vmem:[%s4 + $0x130] sm:$0xff]
    %v910 = vld [vmem:[%s4 + $0x138] sm:$0xff]
    %v911 = vld [vmem:[%s4 + $0x140] sm:$0xff]
    %v912 = vld [vmem:[%s4 + $0x148] sm:$0xff]
    %v913 = vld [vmem:[%s4 + $0x150] sm:$0xff]
    %v914 = vld [vmem:[%s4 + $0x158] sm:$0xff]
    %v915 = vld [vmem:[%s4 + $0x160] sm:$0xff]
    %v916 = vld [vmem:[%s4 + $0x168] sm:$0xff]
    %v917 = vld [vmem:[%s4 + $0x170] sm:$0xff]
    %v918 = vld [vmem:[%s4 + $0x178] sm:$0xff]
    %v919 = vld [vmem:[%s4 + $0x180] sm:$0xff]
    %v920 = vld [vmem:[%s4 + $0x188] sm:$0xff]
    %v921 = vld [vmem:[%s4 + $0x190] sm:$0xff]
    %v922 = vld [vmem:[%s4 + $0x198] sm:$0xff]
    %v923 = vld [vmem:[%s4 + $0x1a0] sm:$0xff]
    %v924 = vld [vmem:[%s4 + $0x1a8] sm:$0xff]
    %v925 = vld [vmem:[%s4 + $0x1b0] sm:$0xff]
    %v926 = vld [vmem:[%s4 + $0x1b8] sm:$0xff]
    %v927 = vld [vmem:[%s4 + $0x1c0] sm:$0xff]
    %v928 = vld [vmem:[%s4 + $0x1c8] sm:$0xff]
    %v929 = vld [vmem:[%s4 + $0x1d0] sm:$0xff]
    %v930 = vld [vmem:[%s4 + $0x1d8] sm:$0xff]
    %v931 = vld [vmem:[%s4 + $0x1e0] sm:$0xff]
    %v932 = vld [vmem:[%s4 + $0x1e8] sm:$0xff]
    %v933 = vld [vmem:[%s4 + $0x1f0] sm:$0xff]
    %v934 = vld [vmem:[%s4 + $0x1f8] sm:$0xff]
    %v935 = vld [vmem:[%s4 + $0x200] sm:$0xff]
    %v936 = vld [vmem:[%s4 + $0x208] sm:$0xff]
    %v937 = vld [vmem:[%s4 + $0x210] sm:$0xff]
    %v938 = vld [vmem:[%s4 + $0x218] sm:$0xff]
    %v939 = vld [vmem:[%s4 + $0x220] sm:$0xff]
    %v940 = vld [vmem:[%s4 + $0x228] sm:$0xff]
    %v941 = vld [vmem:[%s4 + $0x230] sm:$0xff]
    %v942 = vld [vmem:[%s4 + $0x238] sm:$0xff]
    %v943 = vld [vmem:[%s4 + $0x240] sm:$0xff]
    %v944 = vld [vmem:[%s4 + $0x248] sm:$0xff]
    %v945 = vld [vmem:[%s4 + $0x250] sm:$0xff]
    %v946 = vld [vmem:[%s4 + $0x258] sm:$0xff]
    %v947 = vld [vmem:[%s4 + $0x260] sm:$0xff]
    %v948 = vld [vmem:[%s4 + $0x268] sm:$0xff]
    %v949 = vld [vmem:[%s4 + $0x270] sm:$0xff]
    %v950 = vld [vmem:[%s4 + $0x278] sm:$0xff]
    %v951 = vld [vmem:[%s4 + $0x280] sm:$0xff]
    %v952 = vld [vmem:[%s4 + $0x288] sm:$0xff]
    %v953 = vld [vmem:[%s4 + $0x290] sm:$0xff]
    %v954 = vld [vmem:[%s4 + $0x298] sm:$0xff]
    %v955 = vld [vmem:[%s4 + $0x2a0] sm:$0xff]
    %v956 = vld [vmem:[%s4 + $0x2a8] sm:$0xff]
    %v957 = vld [vmem:[%s4 + $0x2b0] sm:$0xff]
    %v958 = vld [vmem:[%s4 + $0x2b8] sm:$0xff]
    %v959 = vld [vmem:[%s4 + $0x2c0] sm:$0xff]
    %v960 = vld [vmem:[%s4 + $0x2c8] sm:$0xff]
    %v961 = vld [vmem:[%s4 + $0x2d0] sm:$0xff]
    %v962 = vld [vmem:[%s4 + $0x2d8] sm:$0xff]
    %v963 = vld [vmem:[%s4 + $0x2e0] sm:$0xff]
    %v964 = vld [vmem:[%s4 + $0x2e8] sm:$0xff]
    %v965 = vld [vmem:[%s4 + $0x2f0] sm:$0xff]
    %v966 = vld [vmem:[%s4 + $0x2f8] sm:$0xff]
    %v967 = vld [vmem:[%s4 + $0x300] sm:$0xff]
    %v968 = vld [vmem:[%s4 + $0x308] sm:$0xff]
    %v969 = vld [vmem:[%s4 + $0x310] sm:$0xff]
    %v970 = vld [vmem:[%s4 + $0x318] sm:$0xff]
    %v971 = vld [vmem:[%s4 + $0x320] sm:$0xff]
    %v972 = vld [vmem:[%s4 + $0x328] sm:$0xff]
    %v973 = vld [vmem:[%s4 + $0x330] sm:$0xff]
    %v974 = vld [vmem:[%s4 + $0x338] sm:$0xff]
    %v975 = vld [vmem:[%s4 + $0x340] sm:$0xff]
    %v976 = vld [vmem:[%s4 + $0x348] sm:$0xff]
    %v977 = vld [vmem:[%s4 + $0x350] sm:$0xff]
    %v978 = vld [vmem:[%s4 + $0x358] sm:$0xff]
    %v979 = vld [vmem:[%s4 + $0x360] sm:$0xff]
    %v980 = vld [vmem:[%s4 + $0x368] sm:$0xff]
    %v981 = vld [vmem:[%s4 + $0x370] sm:$0xff]
    %v982 = vld [vmem:[%s4 + $0x378] sm:$0xff]
    %v983 = vld [vmem:[%s4 + $0x380] sm:$0xff]
    %v984 = vld [vmem:[%s4 + $0x388] sm:$0xff]
    %v985 = vld [vmem:[%s4 + $0x390] sm:$0xff]
    %v986 = vld [vmem:[%s4 + $0x398] sm:$0xff]
    %v987 = vld [vmem:[%s4 + $0x3a0] sm:$0xff]
    %v988 = vld [vmem:[%s4 + $0x3a8] sm:$0xff]
    %v989 = vld [vmem:[%s4 + $0x3b0] sm:$0xff]
    %v990 = vld [vmem:[%s4 + $0x3b8] sm:$0xff]
    %v991 = vld [vmem:[%s4 + $0x3c0] sm:$0xff]
    %v992 = vld [vmem:[%s4 + $0x3c8] sm:$0xff]
    %v993 = vld [vmem:[%s4 + $0x3d0] sm:$0xff]
    %v994 = vld [vmem:[%s4 + $0x3d8] sm:$0xff]
    %v995 = vld [vmem:[%s4 + $0x3e0] sm:$0xff]
    %v996 = vld [vmem:[%s4 + $0x3e8] sm:$0xff]
    %v997 = vld [vmem:[%s4 + $0x3f0] sm:$0xff]
    %v998 = vld [vmem:[%s4 + $0x3f8] sm:$0xff]
    %v999 = vld [vmem:[%s4 + $0x400] sm:$0xff]
    %v1000 = vld [vmem:[%s4 + $0x408] sm:$0xff]
    %v1001 = vld [vmem:[%s4 + $0x410] sm:$0xff]
    %v1002 = vld [vmem:[%s4 + $0x418] sm:$0xff]
    %v1003 = vld [vmem:[%s4 + $0x420] sm:$0xff]
    %v1004 = vld [vmem:[%s4 + $0x428] sm:$0xff]
    %v1005 = vld [vmem:[%s4 + $0x430] sm:$0xff]
    %v1006 = vld [vmem:[%s4 + $0x438] sm:$0xff]
    %v1007 = vld [vmem:[%s4 + $0x440] sm:$0xff]
    %v1008 = vld [vmem:[%s4 + $0x448] sm:$0xff]
    %v1009 = vld [vmem:[%s4 + $0x450] sm:$0xff]
    %v1010 = vld [vmem:[%s4 + $0x458] sm:$0xff]
    %v1011 = vld [vmem:[%s4 + $0x460] sm:$0xff]
    %v1012 = vld [vmem:[%s4 + $0x468] sm:$0xff]
    %v1013 = vld [vmem:[%s4 + $0x470] sm:$0xff]
    %v1014 = vld [vmem:[%s4 + $0x478] sm:$0xff]
    %v1015 = vld [vmem:[%s4 + $0x480] sm:$0xff]
    %v1016 = vld [vmem:[%s4 + $0x488] sm:$0xff]
    %v1017 = vld [vmem:[%s4 + $0x490] sm:$0xff]
    %v1018 = vld [vmem:[%s4 + $0x498] sm:$0xff]
    %v1019 = vld [vmem:[%s4 + $0x4a0] sm:$0xff]
    %v1020 = vld [vmem:[%s4 + $0x4a8] sm:$0xff]
    %v1021 = vld [vmem:[%s4 + $0x4b0] sm:$0xff]
    %v1022 = vld [vmem:[%s4 + $0x4b8] sm:$0xff]
    %v1023 = vld [vmem:[%s4 + $0x4c0] sm:$0xff]
    %v1024 = vld [vmem:[%s4 + $0x4c8] sm:$0xff]
    %v1025 = vld [vmem:[%s4 + $0x4d0] sm:$0xff]
    %v1026 = vld [vmem:[%s4 + $0x4d8] sm:$0xff]
    %v1027 = vld [vmem:[%s4 + $0x4e0] sm:$0xff]
    %v1028 = vld [vmem:[%s4 + $0x4e8] sm:$0xff]
    %v1029 = vld [vmem:[%s4 + $0x4f0] sm:$0xff]
    %v1030 = vld [vmem:[%s4 + $0x4f8] sm:$0xff]
    %v1031 = vld [vmem:[%s5] sm:$0x3]
    %v1033 = vlaneseq
    %v1034 = vshrl.u32 %v1033, 7
    %v1035 = vsub.s32 0, %v1034
    %v1036 = vrot.slane %v1031, %v1035
    %v1037 = vlaneseq
    %v1038 = vshrl.u32 %v1037, 7
    %v1039 = vsub.s32 1, %v1038
    %v1040 = vrot.slane %v1031, %v1039
    %1043 = vmatprep.subr.mxu0 %v902
    %1044 = vmatpush1.msra.mxu0 %v901
    %1045 = vmatprep.subr.mxu0 %v900
    %1046 = vmatpush1.msra.mxu0 %v899
    %1047 = vmatprep.subr.mxu0 %v898
    %1048 = vmatpush1.msra.mxu0 %v897
    %1049 = vmatprep.subr.mxu0 %v896
    %1050 = vmatpush1.msra.mxu0 %v895
    %1051 = vmatprep.subr.mxu0 %v894
    %1052 = vmatpush1.msra.mxu0 %v893
    %1053 = vmatprep.subr.mxu0 %v892
    %1054 = vmatpush1.msra.mxu0 %v891
    %1055 = vmatprep.subr.mxu0 %v890
    %1056 = vmatpush1.msra.mxu0 %v889
    %1057 = vmatprep.subr.mxu0 %v888
    %1058 = vmatpush1.msra.mxu0 %v887
    %1059 = vmatprep.subr.mxu0 %v886
    %1060 = vmatpush1.msra.mxu0 %v885
    %1061 = vmatprep.subr.mxu0 %v884
    %1062 = vmatpush1.msra.mxu0 %v883
    %1063 = vmatprep.subr.mxu0 %v882
    %1064 = vmatpush1.msra.mxu0 %v881
    %1065 = vmatprep.subr.mxu0 %v880
    %1066 = vmatpush1.msra.mxu0 %v879
    %1067 = vmatprep.subr.mxu0 %v878
    %1068 = vmatpush1.msra.mxu0 %v877
    %1069 = vmatprep.subr.mxu0 %v876
    %1070 = vmatpush1.msra.mxu0 %v875
    %1071 = vmatprep.subr.mxu0 %v874
    %1072 = vmatpush1.msra.mxu0 %v873
    %1073 = vmatprep.subr.mxu0 %v872
    %1074 = vmatpush1.msra.mxu0 %v871
    %1075 = vmatprep.subr.mxu0 %v934
    %1076 = vmatpush2.msra.mxu0 %v933
    %1077 = vmatprep.subr.mxu0 %v932
    %1078 = vmatpush2.msra.mxu0 %v931
    %1079 = vmatprep.subr.mxu0 %v930
    %1080 = vmatpush2.msra.mxu0 %v929
    %1081 = vmatprep.subr.mxu0 %v928
    %1082 = vmatpush2.msra.mxu0 %v927
    %1083 = vmatprep.subr.mxu0 %v926
    %1084 = vmatpush2.msra.mxu0 %v925
    %1085 = vmatprep.subr.mxu0 %v924
    %1086 = vmatpush2.msra.mxu0 %v923
    %1087 = vmatprep.subr.mxu0 %v922
    %1088 = vmatpush2.msra.mxu0 %v921
    %1089 = vmatprep.subr.mxu0 %v920
    %1090 = vmatpush2.msra.mxu0 %v919
    %1091 = vmatprep.subr.mxu0 %v918
    %1092 = vmatpush2.msra.mxu0 %v917
    %1093 = vmatprep.subr.mxu0 %v916
    %1094 = vmatpush2.msra.mxu0 %v915
    %1095 = vmatprep.subr.mxu0 %v914
    %1096 = vmatpush2.msra.mxu0 %v913
    %1097 = vmatprep.subr.mxu0 %v912
    %1098 = vmatpush2.msra.mxu0 %v911
    %1099 = vmatprep.subr.mxu0 %v910
    %1100 = vmatpush2.msra.mxu0 %v909
    %1101 = vmatprep.subr.mxu0 %v908
    %1102 = vmatpush2.msra.mxu0 %v907
    %1103 = vmatprep.subr.mxu0 %v906
    %1104 = vmatpush2.msra.mxu0 %v905
    %1105 = vmatprep.subr.mxu0 %v904
    %1106 = vmatpush2.msra.mxu0 %v903
    %1107 = vmatprep.mubr.f32.mxu0 %v857
    %1108 = vmatmul.mubr.f32.gmra.mxu0 %v856
    %v1109 = vpop.f32.mrf.mxu0
    %v1110 = vadd.f32 %v1036, %v1109
    %v1111 = vpop.f32.mrf.mxu0
    %v1112 = vadd.f32 %v1040, %v1111
    %1113 = vmatprep.mubr.f32.mxu0 %v862
    %1114 = vmatmul.mubr.f32.gmra.mxu0 %v861
    %v1115 = vpop.f32.mrf.mxu0
    %v1116 = vadd.f32 %v1036, %v1115
    %v1117 = vpop.f32.mrf.mxu0
    %v1118 = vadd.f32 %v1040, %v1117
    %1119 = vmatprep.mubr.f32.mxu0 %v867
    %1120 = vmatmul.mubr.f32.gmra.mxu0 %v866
    %v1121 = vpop.f32.mrf.mxu0
    %v1122 = vadd.f32 %v1036, %v1121
    %v1123 = vpop.f32.mrf.mxu0
    %v1124 = vadd.f32 %v1040, %v1123
    %1125 = vdwg.mxu0
    %1126 = vmatprep.subr.mxu0 %v966
    %1127 = vmatpush1.msra.mxu0 %v965
    %1128 = vmatprep.subr.mxu0 %v964
    %1129 = vmatpush1.msra.mxu0 %v963
    %1130 = vmatprep.subr.mxu0 %v962
    %1131 = vmatpush1.msra.mxu0 %v961
    %1132 = vmatprep.subr.mxu0 %v960
    %1133 = vmatpush1.msra.mxu0 %v959
    %1134 = vmatprep.subr.mxu0 %v958
    %1135 = vmatpush1.msra.mxu0 %v957
    %1136 = vmatprep.subr.mxu0 %v956
    %1137 = vmatpush1.msra.mxu0 %v955
    %1138 = vmatprep.subr.mxu0 %v954
    %1139 = vmatpush1.msra.mxu0 %v953
    %1140 = vmatprep.subr.mxu0 %v952
    %1141 = vmatpush1.msra.mxu0 %v951
    %1142 = vmatprep.subr.mxu0 %v950
    %1143 = vmatpush1.msra.mxu0 %v949
    %1144 = vmatprep.subr.mxu0 %v948
    %1145 = vmatpush1.msra.mxu0 %v947
    %1146 = vmatprep.subr.mxu0 %v946
    %1147 = vmatpush1.msra.mxu0 %v945
    %1148 = vmatprep.subr.mxu0 %v944
    %1149 = vmatpush1.msra.mxu0 %v943
    %1150 = vmatprep.subr.mxu0 %v942
    %1151 = vmatpush1.msra.mxu0 %v941
    %1152 = vmatprep.subr.mxu0 %v940
    %1153 = vmatpush1.msra.mxu0 %v939
    %1154 = vmatprep.subr.mxu0 %v938
    %1155 = vmatpush1.msra.mxu0 %v937
    %1156 = vmatprep.subr.mxu0 %v936
    %1157 = vmatpush1.msra.mxu0 %v935
    %1158 = vmatprep.subr.mxu0 %v998
    %1159 = vmatpush2.msra.mxu0 %v997
    %1160 = vmatprep.subr.mxu0 %v996
    %1161 = vmatpush2.msra.mxu0 %v995
    %1162 = vmatprep.subr.mxu0 %v994
    %1163 = vmatpush2.msra.mxu0 %v993
    %1164 = vmatprep.subr.mxu0 %v992
    %1165 = vmatpush2.msra.mxu0 %v991
    %1166 = vmatprep.subr.mxu0 %v990
    %1167 = vmatpush2.msra.mxu0 %v989
    %1168 = vmatprep.subr.mxu0 %v988
    %1169 = vmatpush2.msra.mxu0 %v987
    %1170 = vmatprep.subr.mxu0 %v986
    %1171 = vmatpush2.msra.mxu0 %v985
    %1172 = vmatprep.subr.mxu0 %v984
    %1173 = vmatpush2.msra.mxu0 %v983
    %1174 = vmatprep.subr.mxu0 %v982
    %1175 = vmatpush2.msra.mxu0 %v981
    %1176 = vmatprep.subr.mxu0 %v980
    %1177 = vmatpush2.msra.mxu0 %v979
    %1178 = vmatprep.subr.mxu0 %v978
    %1179 = vmatpush2.msra.mxu0 %v977
    %1180 = vmatprep.subr.mxu0 %v976
    %1181 = vmatpush2.msra.mxu0 %v975
    %1182 = vmatprep.subr.mxu0 %v974
    %1183 = vmatpush2.msra.mxu0 %v973
    %1184 = vmatprep.subr.mxu0 %v972
    %1185 = vmatpush2.msra.mxu0 %v971
    %1186 = vmatprep.subr.mxu0 %v970
    %1187 = vmatpush2.msra.mxu0 %v969
    %1188 = vmatprep.subr.mxu0 %v968
    %1189 = vmatpush2.msra.mxu0 %v967
    %1190 = vmatprep.mubr.f32.mxu0 %v859
    %1191 = vmatmul.mubr.f32.gmra.mxu0 %v858
    %v1192 = vpop.f32.mrf.mxu0
    %v1193 = vadd.f32 %v1110, %v1192
    %v1194 = vpop.f32.mrf.mxu0
    %v1195 = vadd.f32 %v1112, %v1194
    %1196 = vmatprep.mubr.f32.mxu0 %v864
    %1197 = vmatmul.mubr.f32.gmra.mxu0 %v863
    %v1198 = vpop.f32.mrf.mxu0
    %v1199 = vadd.f32 %v1116, %v1198
    %v1200 = vpop.f32.mrf.mxu0
    %v1201 = vadd.f32 %v1118, %v1200
    %1202 = vmatprep.mubr.f32.mxu0 %v869
    %1203 = vmatmul.mubr.f32.gmra.mxu0 %v868
    %v1204 = vpop.f32.mrf.mxu0
    %v1205 = vadd.f32 %v1122, %v1204
    %v1206 = vpop.f32.mrf.mxu0
    %v1207 = vadd.f32 %v1124, %v1206
    %1208 = vdwg.mxu0
    %1209 = vmatprep.subr.mxu0 %v1030
    %1210 = vmatpush1.msra.mxu0 %v1029
    %1211 = vmatprep.subr.mxu0 %v1028
    %1212 = vmatpush1.msra.mxu0 %v1027
    %1213 = vmatprep.subr.mxu0 %v1026
    %1214 = vmatpush1.msra.mxu0 %v1025
    %1215 = vmatprep.subr.mxu0 %v1024
    %1216 = vmatpush1.msra.mxu0 %v1023
    %1217 = vmatprep.subr.mxu0 %v1022
    %1218 = vmatpush1.msra.mxu0 %v1021
    %1219 = vmatprep.subr.mxu0 %v1020
    %1220 = vmatpush1.msra.mxu0 %v1019
    %1221 = vmatprep.subr.mxu0 %v1018
    %1222 = vmatpush1.msra.mxu0 %v1017
    %1223 = vmatprep.subr.mxu0 %v1016
    %1224 = vmatpush1.msra.mxu0 %v1015
    %1225 = vmatprep.subr.mxu0 %v1014
    %1226 = vmatpush1.msra.mxu0 %v1013
    %1227 = vmatprep.subr.mxu0 %v1012
    %1228 = vmatpush1.msra.mxu0 %v1011
    %1229 = vmatprep.subr.mxu0 %v1010
    %1230 = vmatpush1.msra.mxu0 %v1009
    %1231 = vmatprep.subr.mxu0 %v1008
    %1232 = vmatpush1.msra.mxu0 %v1007
    %1233 = vmatprep.subr.mxu0 %v1006
    %1234 = vmatpush1.msra.mxu0 %v1005
    %1235 = vmatprep.subr.mxu0 %v1004
    %1236 = vmatpush1.msra.mxu0 %v1003
    %1237 = vmatprep.subr.mxu0 %v1002
    %1238 = vmatpush1.msra.mxu0 %v1001
    %1239 = vmatprep.subr.mxu0 %v1000
    %1240 = vmatpush1.msra.mxu0 %v999
    %1241 = vmatprep.subr.mxu0 0.0
    %1242 = vmatpush2.msra.mxu0 0.0
    %1243 = vmatprep.subr.mxu0 0.0
    %1244 = vmatpush2.msra.mxu0 0.0
    %1245 = vmatprep.subr.mxu0 0.0
    %1246 = vmatpush2.msra.mxu0 0.0
    %1247 = vmatprep.subr.mxu0 0.0
    %1248 = vmatpush2.msra.mxu0 0.0
    %1249 = vmatprep.subr.mxu0 0.0
    %1250 = vmatpush2.msra.mxu0 0.0
    %1251 = vmatprep.subr.mxu0 0.0
    %1252 = vmatpush2.msra.mxu0 0.0
    %1253 = vmatprep.subr.mxu0 0.0
    %1254 = vmatpush2.msra.mxu0 0.0
    %1255 = vmatprep.subr.mxu0 0.0
    %1256 = vmatpush2.msra.mxu0 0.0
    %1257 = vmatprep.subr.mxu0 0.0
    %1258 = vmatpush2.msra.mxu0 0.0
    %1259 = vmatprep.subr.mxu0 0.0
    %1260 = vmatpush2.msra.mxu0 0.0
    %1261 = vmatprep.subr.mxu0 0.0
    %1262 = vmatpush2.msra.mxu0 0.0
    %1263 = vmatprep.subr.mxu0 0.0
    %1264 = vmatpush2.msra.mxu0 0.0
    %1265 = vmatprep.subr.mxu0 0.0
    %1266 = vmatpush2.msra.mxu0 0.0
    %1267 = vmatprep.subr.mxu0 0.0
    %1268 = vmatpush2.msra.mxu0 0.0
    %1269 = vmatprep.subr.mxu0 0.0
    %1270 = vmatpush2.msra.mxu0 0.0
    %1271 = vmatprep.subr.mxu0 0.0
    %1272 = vmatpush2.msra.mxu0 0.0
    %1273 = vmatprep.mubr.f32.mxu0 0.0
    %1274 = vmatmul.mubr.f32.gmra.mxu0 %v860
    %v1275 = vpop.f32.mrf.mxu0
    %v1276 = vadd.f32 %v1193, %v1275
    %v1277 = vpop.f32.mrf.mxu0
    %v1278 = vadd.f32 %v1195, %v1277
    %1279 = vmatprep.mubr.f32.mxu0 0.0
    %1280 = vmatmul.mubr.f32.gmra.mxu0 %v865
    %v1281 = vpop.f32.mrf.mxu0
    %v1282 = vadd.f32 %v1199, %v1281
    %v1283 = vpop.f32.mrf.mxu0
    %v1284 = vadd.f32 %v1201, %v1283
    %1285 = vmatprep.mubr.f32.mxu0 0.0
    %1286 = vmatmul.mubr.f32.gmra.mxu0 %v870
    %v1287 = vpop.f32.mrf.mxu0
    %v1288 = vadd.f32 %v1205, %v1287
    %v1289 = vpop.f32.mrf.mxu0
    %v1290 = vadd.f32 %v1207, %v1289
    %1291 = vdwg.mxu0
    %v1292 = vmax.f32 %v1276, 0.0
    %v1293 = vmax.f32 %v1278, 0.0
    %v1294 = vmax.f32 %v1282, 0.0
    %v1295 = vmax.f32 %v1284, 0.0
    %v1296 = vmax.f32 %v1288, 0.0
    %v1297 = vmax.f32 %v1290, 0.0
    %v1298 = vld [vmem:[%s6] sm:$0xff]
    %v1299 = vld [vmem:[%s6 + $0x8] sm:$0xff]
    %v1300 = vld [vmem:[%s6 + $0x10] sm:$0xff]
    %v1301 = vld [vmem:[%s6 + $0x18] sm:$0xff]
    %v1302 = vld [vmem:[%s6 + $0x20] sm:$0xff]
    %v1303 = vld [vmem:[%s6 + $0x28] sm:$0xff]
    %v1304 = vld [vmem:[%s6 + $0x30] sm:$0xff]
    %v1305 = vld [vmem:[%s6 + $0x38] sm:$0xff]
    %v1306 = vld [vmem:[%s6 + $0x40] sm:$0xff]
    %v1307 = vld [vmem:[%s6 + $0x48] sm:$0xff]
    %v1308 = vld [vmem:[%s6 + $0x50] sm:$0xff]
    %v1309 = vld [vmem:[%s6 + $0x58] sm:$0xff]
    %v1310 = vld [vmem:[%s6 + $0x60] sm:$0xff]
    %v1311 = vld [vmem:[%s6 + $0x68] sm:$0xff]
    %v1312 = vld [vmem:[%s6 + $0x70] sm:$0xff]
    %v1313 = vld [vmem:[%s6 + $0x78] sm:$0xff]
    %v1314 = vld [vmem:[%s6 + $0x80] sm:$0xff]
    %v1315 = vld [vmem:[%s6 + $0x88] sm:$0xff]
    %v1316 = vld [vmem:[%s6 + $0x90] sm:$0xff]
    %v1317 = vld [vmem:[%s6 + $0x98] sm:$0xff]
    %vm1318 = vcmask 261120
    %v1320 = vsel %vm1318, %v1293, 0
    %v1323 = vsel %vm1318, %v1295, 0
    %v1326 = vsel %vm1318, %v1297, 0
    %1328 = vmatprep.subr.mxu0 0.0
    %1329 = vmatpush1.msra.mxu0 %v1313
    %1330 = vmatprep.subr.mxu0 0.0
    %1331 = vmatpush1.msra.mxu0 %v1312
    %1332 = vmatprep.subr.mxu0 0.0
    %1333 = vmatpush1.msra.mxu0 %v1311
    %1334 = vmatprep.subr.mxu0 0.0
    %1335 = vmatpush1.msra.mxu0 %v1310
    %1336 = vmatprep.subr.mxu0 0.0
    %1337 = vmatpush1.msra.mxu0 %v1309
    %1338 = vmatprep.subr.mxu0 0.0
    %1339 = vmatpush1.msra.mxu0 %v1308
    %1340 = vmatprep.subr.mxu0 0.0
    %1341 = vmatpush1.msra.mxu0 %v1307
    %1342 = vmatprep.subr.mxu0 0.0
    %1343 = vmatpush1.msra.mxu0 %v1306
    %1344 = vmatprep.subr.mxu0 0.0
    %1345 = vmatpush1.msra.mxu0 %v1305
    %1346 = vmatprep.subr.mxu0 0.0
    %1347 = vmatpush1.msra.mxu0 %v1304
    %1348 = vmatprep.subr.mxu0 0.0
    %1349 = vmatpush1.msra.mxu0 %v1303
    %1350 = vmatprep.subr.mxu0 0.0
    %1351 = vmatpush1.msra.mxu0 %v1302
    %1352 = vmatprep.subr.mxu0 0.0
    %1353 = vmatpush1.msra.mxu0 %v1301
    %1354 = vmatprep.subr.mxu0 0.0
    %1355 = vmatpush1.msra.mxu0 %v1300
    %1356 = vmatprep.subr.mxu0 0.0
    %1357 = vmatpush1.msra.mxu0 %v1299
    %1358 = vmatprep.subr.mxu0 0.0
    %1359 = vmatpush1.msra.mxu0 %v1298
    %1360 = vmatprep.subr.mxu0 0.0
    %1361 = vmatpush2.msra.mxu0 0.0
    %1362 = vmatprep.subr.mxu0 0.0
    %1363 = vmatpush2.msra.mxu0 0.0
    %1364 = vmatprep.subr.mxu0 0.0
    %1365 = vmatpush2.msra.mxu0 0.0
    %1366 = vmatprep.subr.mxu0 0.0
    %1367 = vmatpush2.msra.mxu0 0.0
    %1368 = vmatprep.subr.mxu0 0.0
    %1369 = vmatpush2.msra.mxu0 0.0
    %1370 = vmatprep.subr.mxu0 0.0
    %1371 = vmatpush2.msra.mxu0 0.0
    %1372 = vmatprep.subr.mxu0 0.0
    %1373 = vmatpush2.msra.mxu0 0.0
    %1374 = vmatprep.subr.mxu0 0.0
    %1375 = vmatpush2.msra.mxu0 0.0
    %1376 = vmatprep.subr.mxu0 0.0
    %1377 = vmatpush2.msra.mxu0 0.0
    %1378 = vmatprep.subr.mxu0 0.0
    %1379 = vmatpush2.msra.mxu0 0.0
    %1380 = vmatprep.subr.mxu0 0.0
    %1381 = vmatpush2.msra.mxu0 0.0
    %1382 = vmatprep.subr.mxu0 0.0
    %1383 = vmatpush2.msra.mxu0 0.0
    %1384 = vmatprep.subr.mxu0 0.0
    %1385 = vmatpush2.msra.mxu0 %v1317
    %1386 = vmatprep.subr.mxu0 0.0
    %1387 = vmatpush2.msra.mxu0 %v1316
    %1388 = vmatprep.subr.mxu0 0.0
    %1389 = vmatpush2.msra.mxu0 %v1315
    %1390 = vmatprep.subr.mxu0 0.0
    %1391 = vmatpush2.msra.mxu0 %v1314
    %1392 = vmatprep.mubr.f32.mxu0 %v1320
    %1393 = vmatmul.mubr.f32.gmra.mxu0 %v1292
    %v1394 = vpop.f32.mrf.mxu0
    %v1395 = vadd.f32 0.0, %v1394
    %v1396 = vpop.f32.mrf.mxu0
    %1397 = vmatprep.mubr.f32.mxu0 %v1323
    %1398 = vmatmul.mubr.f32.gmra.mxu0 %v1294
    %v1399 = vpop.f32.mrf.mxu0
    %v1400 = vadd.f32 0.0, %v1399
    %v1401 = vpop.f32.mrf.mxu0
    %1402 = vmatprep.mubr.f32.mxu0 %v1326
    %1403 = vmatmul.mubr.f32.gmra.mxu0 %v1296
    %v1404 = vpop.f32.mrf.mxu0
    %v1405 = vadd.f32 0.0, %v1404
    %v1406 = vpop.f32.mrf.mxu0
    %1407 = vdwg.mxu0
    %s1408 = scalar_lea.vmem %s6, 160
    %v1409 = vld [vmem:[%s1408] sm:$0xff]
    %v1410 = vld [vmem:[%s1408 + $0x8] sm:$0xff]
    %v1411 = vld [vmem:[%s1408 + $0x10] sm:$0xff]
    %v1412 = vld [vmem:[%s1408 + $0x18] sm:$0xff]
    %v1413 = vld [vmem:[%s1408 + $0x20] sm:$0xff]
    %v1414 = vld [vmem:[%s1408 + $0x28] sm:$0xff]
    %v1415 = vld [vmem:[%s1408 + $0x30] sm:$0xff]
    %v1416 = vld [vmem:[%s1408 + $0x38] sm:$0xff]
    %v1417 = vld [vmem:[%s1408 + $0x40] sm:$0xff]
    %v1418 = vld [vmem:[%s1408 + $0x48] sm:$0xff]
    %v1419 = vld [vmem:[%s1408 + $0x50] sm:$0xff]
    %v1420 = vld [vmem:[%s1408 + $0x58] sm:$0xff]
    %v1421 = vld [vmem:[%s1408 + $0x60] sm:$0xff]
    %v1422 = vld [vmem:[%s1408 + $0x68] sm:$0xff]
    %v1423 = vld [vmem:[%s1408 + $0x70] sm:$0xff]
    %v1424 = vld [vmem:[%s1408 + $0x78] sm:$0xff]
    %v1425 = vld [vmem:[%s1408 + $0x80] sm:$0xff]
    %v1426 = vld [vmem:[%s1408 + $0x88] sm:$0xff]
    %v1427 = vld [vmem:[%s1408 + $0x90] sm:$0xff]
    %v1428 = vld [vmem:[%s1408 + $0x98] sm:$0xff]
    %1429 = vmatprep.subr.mxu0 0.0
    %1430 = vmatpush1.msra.mxu0 %v1424
    %1431 = vmatprep.subr.mxu0 0.0
    %1432 = vmatpush1.msra.mxu0 %v1423
    %1433 = vmatprep.subr.mxu0 0.0
    %1434 = vmatpush1.msra.mxu0 %v1422
    %1435 = vmatprep.subr.mxu0 0.0
    %1436 = vmatpush1.msra.mxu0 %v1421
    %1437 = vmatprep.subr.mxu0 0.0
    %1438 = vmatpush1.msra.mxu0 %v1420
    %1439 = vmatprep.subr.mxu0 0.0
    %1440 = vmatpush1.msra.mxu0 %v1419
    %1441 = vmatprep.subr.mxu0 0.0
    %1442 = vmatpush1.msra.mxu0 %v1418
    %1443 = vmatprep.subr.mxu0 0.0
    %1444 = vmatpush1.msra.mxu0 %v1417
    %1445 = vmatprep.subr.mxu0 0.0
    %1446 = vmatpush1.msra.mxu0 %v1416
    %1447 = vmatprep.subr.mxu0 0.0
    %1448 = vmatpush1.msra.mxu0 %v1415
    %1449 = vmatprep.subr.mxu0 0.0
    %1450 = vmatpush1.msra.mxu0 %v1414
    %1451 = vmatprep.subr.mxu0 0.0
    %1452 = vmatpush1.msra.mxu0 %v1413
    %1453 = vmatprep.subr.mxu0 0.0
    %1454 = vmatpush1.msra.mxu0 %v1412
    %1455 = vmatprep.subr.mxu0 0.0
    %1456 = vmatpush1.msra.mxu0 %v1411
    %1457 = vmatprep.subr.mxu0 0.0
    %1458 = vmatpush1.msra.mxu0 %v1410
    %1459 = vmatprep.subr.mxu0 0.0
    %1460 = vmatpush1.msra.mxu0 %v1409
    %1461 = vmatprep.subr.mxu0 0.0
    %1462 = vmatpush2.msra.mxu0 0.0
    %1463 = vmatprep.subr.mxu0 0.0
    %1464 = vmatpush2.msra.mxu0 0.0
    %1465 = vmatprep.subr.mxu0 0.0
    %1466 = vmatpush2.msra.mxu0 0.0
    %1467 = vmatprep.subr.mxu0 0.0
    %1468 = vmatpush2.msra.mxu0 0.0
    %1469 = vmatprep.subr.mxu0 0.0
    %1470 = vmatpush2.msra.mxu0 0.0
    %1471 = vmatprep.subr.mxu0 0.0
    %1472 = vmatpush2.msra.mxu0 0.0
    %1473 = vmatprep.subr.mxu0 0.0
    %1474 = vmatpush2.msra.mxu0 0.0
    %1475 = vmatprep.subr.mxu0 0.0
    %1476 = vmatpush2.msra.mxu0 0.0
    %1477 = vmatprep.subr.mxu0 0.0
    %1478 = vmatpush2.msra.mxu0 0.0
    %1479 = vmatprep.subr.mxu0 0.0
    %1480 = vmatpush2.msra.mxu0 0.0
    %1481 = vmatprep.subr.mxu0 0.0
    %1482 = vmatpush2.msra.mxu0 0.0
    %1483 = vmatprep.subr.mxu0 0.0
    %1484 = vmatpush2.msra.mxu0 0.0
    %1485 = vmatprep.subr.mxu0 0.0
    %1486 = vmatpush2.msra.mxu0 %v1428
    %1487 = vmatprep.subr.mxu0 0.0
    %1488 = vmatpush2.msra.mxu0 %v1427
    %1489 = vmatprep.subr.mxu0 0.0
    %1490 = vmatpush2.msra.mxu0 %v1426
    %1491 = vmatprep.subr.mxu0 0.0
    %1492 = vmatpush2.msra.mxu0 %v1425
    %1493 = vmatprep.mubr.f32.mxu0 %v1320
    %1494 = vmatmul.mubr.f32.gmra.mxu0 %v1292
    %v1495 = vpop.f32.mrf.mxu0
    %v1496 = vadd.f32 0.0, %v1495
    %v1497 = vpop.f32.mrf.mxu0
    %1498 = vmatprep.mubr.f32.mxu0 %v1323
    %1499 = vmatmul.mubr.f32.gmra.mxu0 %v1294
    %v1500 = vpop.f32.mrf.mxu0
    %v1501 = vadd.f32 0.0, %v1500
    %v1502 = vpop.f32.mrf.mxu0
    %1503 = vmatprep.mubr.f32.mxu0 %v1326
    %1504 = vmatmul.mubr.f32.gmra.mxu0 %v1296
    %v1505 = vpop.f32.mrf.mxu0
    %v1506 = vadd.f32 0.0, %v1505
    %v1507 = vpop.f32.mrf.mxu0
    %1508 = vdwg.mxu0
    %v1509 = vmax.f32 %v1395, %v1496
    %v1510 = vmax.f32 %v1400, %v1501
    %v1511 = vmax.f32 %v1405, %v1506
    %vm1512 = vcmask 654336
    %1513 = vst.msk [vmem:[#allocation3] sm:$0xff] %vm1512, %v1509
    %1514 = vst.msk [vmem:[#allocation3 + $0x8] sm:$0xff] %vm1512, %v1510
    %vm1515 = vcmask 650240
    %1516 = vst.msk [vmem:[#allocation3 + $0x10] sm:$0xf] %vm1515, %v1511
    %v1517 = vld [vmem:[#allocation3] ss:$2 sm:$0xff]
    %s1518 = scalar_lea.vmem [#allocation3], 16
    %v1519 = vld [vmem:[%s1518] ss:$2 sm:$0x3]
    %s1520 = scalar_lea.vmem [#allocation3], 1
    %v1521 = vld [vmem:[%s1520] ss:$2 sm:$0xff]
    %s1522 = scalar_lea.vmem [#allocation3], 17
    %v1523 = vld [vmem:[%s1522] ss:$2 sm:$0x3]
    %v1524 = vmax.f32 %v1517, %v1521
    %v1525 = vmax.f32 %v1519, %v1523
    %v1526 = vsel %vm1512, %v1524, 0.0
    %vm1527 = vcmask 648192
    %v1528 = vsel %vm1527, %v1525, 0.0
    %v1529 = vadd.f32 %v1526, %v1528
    %v1530 = vrot.slane %v1529, 4
    %v1531 = vadd.f32 %v1529, %v1530
    %v1532 = vrot.slane %v1531, 2
    %v1533 = vadd.f32 %v1531, %v1532
    %v1534 = vrot.slane %v1533, 1
    %v1535 = vadd.f32 %v1533, %v1534
    %v1536 = vmul.f32 %v1524, %v1524
    %v1537 = vmul.f32 %v1525, %v1525
    %v1538 = vsel %vm1512, %v1536, 0.0
    %v1539 = vsel %vm1527, %v1537, 0.0
    %v1540 = vadd.f32 %v1538, %v1539
    %v1541 = vrot.slane %v1540, 4
    %v1542 = vadd.f32 %v1540, %v1541
    %v1543 = vrot.slane %v1542, 2
    %v1544 = vadd.f32 %v1542, %v1543
    %v1545 = vrot.slane %v1544, 1
    %v1546 = vadd.f32 %v1544, %v1545
    %v1547 = vld [vmem:[%s7] sm:$0xff]
    %v1548 = vld [vmem:[%s7 + $0x8] sm:$0xff]
    %v1549 = vld [vmem:[%s7 + $0x10] sm:$0xff]
    %v1550 = vld [vmem:[%s7 + $0x18] sm:$0xff]
    %v1551 = vld [vmem:[%s7 + $0x20] sm:$0xff]
    %v1552 = vld [vmem:[%s7 + $0x28] sm:$0xff]
    %v1553 = vld [vmem:[%s7 + $0x30] sm:$0xff]
    %v1554 = vld [vmem:[%s7 + $0x38] sm:$0xff]
    %v1555 = vld [vmem:[%s7 + $0x40] sm:$0xff]
    %v1556 = vld [vmem:[%s7 + $0x48] sm:$0xff]
    %v1558 = vsel %vm1512, %v1535, 0
    %1560 = vmatprep.subr.mxu0 0.0
    %1561 = vmatpush1.msra.mxu0 0.0
    %1562 = vmatprep.subr.mxu0 0.0
    %1563 = vmatpush1.msra.mxu0 0.0
    %1564 = vmatprep.subr.mxu0 0.0
    %1565 = vmatpush1.msra.mxu0 0.0
    %1566 = vmatprep.subr.mxu0 0.0
    %1567 = vmatpush1.msra.mxu0 0.0
    %1568 = vmatprep.subr.mxu0 0.0
    %1569 = vmatpush1.msra.mxu0 0.0
    %1570 = vmatprep.subr.mxu0 0.0
    %1571 = vmatpush1.msra.mxu0 0.0
    %1572 = vmatprep.subr.mxu0 0.0
    %1573 = vmatpush1.msra.mxu0 %v1556
    %1574 = vmatprep.subr.mxu0 0.0
    %1575 = vmatpush1.msra.mxu0 %v1555
    %1576 = vmatprep.subr.mxu0 0.0
    %1577 = vmatpush1.msra.mxu0 %v1554
    %1578 = vmatprep.subr.mxu0 0.0
    %1579 = vmatpush1.msra.mxu0 %v1553
    %1580 = vmatprep.subr.mxu0 0.0
    %1581 = vmatpush1.msra.mxu0 %v1552
    %1582 = vmatprep.subr.mxu0 0.0
    %1583 = vmatpush1.msra.mxu0 %v1551
    %1584 = vmatprep.subr.mxu0 0.0
    %1585 = vmatpush1.msra.mxu0 %v1550
    %1586 = vmatprep.subr.mxu0 0.0
    %1587 = vmatpush1.msra.mxu0 %v1549
    %1588 = vmatprep.subr.mxu0 0.0
    %1589 = vmatpush1.msra.mxu0 %v1548
    %1590 = vmatprep.subr.mxu0 0.0
    %1591 = vmatpush1.msra.mxu0 %v1547
    %1592 = vmatprep.subr.mxu0 0.0
    %1593 = vmatpush2.msra.mxu0 0.0
    %1594 = vmatprep.subr.mxu0 0.0
    %1595 = vmatpush2.msra.mxu0 0.0
    %1596 = vmatprep.subr.mxu0 0.0
    %1597 = vmatpush2.msra.mxu0 0.0
    %1598 = vmatprep.subr.mxu0 0.0
    %1599 = vmatpush2.msra.mxu0 0.0
    %1600 = vmatprep.subr.mxu0 0.0
    %1601 = vmatpush2.msra.mxu0 0.0
    %1602 = vmatprep.subr.mxu0 0.0
    %1603 = vmatpush2.msra.mxu0 0.0
    %1604 = vmatprep.subr.mxu0 0.0
    %1605 = vmatpush2.msra.mxu0 0.0
    %1606 = vmatprep.subr.mxu0 0.0
    %1607 = vmatpush2.msra.mxu0 0.0
    %1608 = vmatprep.subr.mxu0 0.0
    %1609 = vmatpush2.msra.mxu0 0.0
    %1610 = vmatprep.subr.mxu0 0.0
    %1611 = vmatpush2.msra.mxu0 0.0
    %1612 = vmatprep.subr.mxu0 0.0
    %1613 = vmatpush2.msra.mxu0 0.0
    %1614 = vmatprep.subr.mxu0 0.0
    %1615 = vmatpush2.msra.mxu0 0.0
    %1616 = vmatprep.subr.mxu0 0.0
    %1617 = vmatpush2.msra.mxu0 0.0
    %1618 = vmatprep.subr.mxu0 0.0
    %1619 = vmatpush2.msra.mxu0 0.0
    %1620 = vmatprep.subr.mxu0 0.0
    %1621 = vmatpush2.msra.mxu0 0.0
    %1622 = vmatprep.subr.mxu0 0.0
    %1623 = vmatpush2.msra.mxu0 0.0
    %1624 = vmatprep.mubr.f32.mxu0 0.0
    %1625 = vmatmul.mubr.f32.gmra.mxu0 %v1558
    %v1626 = vpop.f32.mrf.mxu0
    %v1627 = vadd.f32 0.0, %v1626
    %v1628 = vpop.f32.mrf.mxu0
    %1629 = vdwg.mxu0
    %v1631 = vsel %vm1512, %v1546, 0
    %1633 = vmatprep.subr.mxu0 0.0
    %1634 = vmatpush1.msra.mxu0 0.0
    %1635 = vmatprep.subr.mxu0 0.0
    %1636 = vmatpush1.msra.mxu0 0.0
    %1637 = vmatprep.subr.mxu0 0.0
    %1638 = vmatpush1.msra.mxu0 0.0
    %1639 = vmatprep.subr.mxu0 0.0
    %1640 = vmatpush1.msra.mxu0 0.0
    %1641 = vmatprep.subr.mxu0 0.0
    %1642 = vmatpush1.msra.mxu0 0.0
    %1643 = vmatprep.subr.mxu0 0.0
    %1644 = vmatpush1.msra.mxu0 0.0
    %1645 = vmatprep.subr.mxu0 0.0
    %1646 = vmatpush1.msra.mxu0 %v1556
    %1647 = vmatprep.subr.mxu0 0.0
    %1648 = vmatpush1.msra.mxu0 %v1555
    %1649 = vmatprep.subr.mxu0 0.0
    %1650 = vmatpush1.msra.mxu0 %v1554
    %1651 = vmatprep.subr.mxu0 0.0
    %1652 = vmatpush1.msra.mxu0 %v1553
    %1653 = vmatprep.subr.mxu0 0.0
    %1654 = vmatpush1.msra.mxu0 %v1552
    %1655 = vmatprep.subr.mxu0 0.0
    %1656 = vmatpush1.msra.mxu0 %v1551
    %1657 = vmatprep.subr.mxu0 0.0
    %1658 = vmatpush1.msra.mxu0 %v1550
    %1659 = vmatprep.subr.mxu0 0.0
    %1660 = vmatpush1.msra.mxu0 %v1549
    %1661 = vmatprep.subr.mxu0 0.0
    %1662 = vmatpush1.msra.mxu0 %v1548
    %1663 = vmatprep.subr.mxu0 0.0
    %1664 = vmatpush1.msra.mxu0 %v1547
    %1665 = vmatprep.subr.mxu0 0.0
    %1666 = vmatpush2.msra.mxu0 0.0
    %1667 = vmatprep.subr.mxu0 0.0
    %1668 = vmatpush2.msra.mxu0 0.0
    %1669 = vmatprep.subr.mxu0 0.0
    %1670 = vmatpush2.msra.mxu0 0.0
    %1671 = vmatprep.subr.mxu0 0.0
    %1672 = vmatpush2.msra.mxu0 0.0
    %1673 = vmatprep.subr.mxu0 0.0
    %1674 = vmatpush2.msra.mxu0 0.0
    %1675 = vmatprep.subr.mxu0 0.0
    %1676 = vmatpush2.msra.mxu0 0.0
    %1677 = vmatprep.subr.mxu0 0.0
    %1678 = vmatpush2.msra.mxu0 0.0
    %1679 = vmatprep.subr.mxu0 0.0
    %1680 = vmatpush2.msra.mxu0 0.0
    %1681 = vmatprep.subr.mxu0 0.0
    %1682 = vmatpush2.msra.mxu0 0.0
    %1683 = vmatprep.subr.mxu0 0.0
    %1684 = vmatpush2.msra.mxu0 0.0
    %1685 = vmatprep.subr.mxu0 0.0
    %1686 = vmatpush2.msra.mxu0 0.0
    %1687 = vmatprep.subr.mxu0 0.0
    %1688 = vmatpush2.msra.mxu0 0.0
    %1689 = vmatprep.subr.mxu0 0.0
    %1690 = vmatpush2.msra.mxu0 0.0
    %1691 = vmatprep.subr.mxu0 0.0
    %1692 = vmatpush2.msra.mxu0 0.0
    %1693 = vmatprep.subr.mxu0 0.0
    %1694 = vmatpush2.msra.mxu0 0.0
    %1695 = vmatprep.subr.mxu0 0.0
    %1696 = vmatpush2.msra.mxu0 0.0
    %1697 = vmatprep.mubr.f32.mxu0 0.0
    %1698 = vmatmul.mubr.f32.gmra.mxu0 %v1631
    %v1699 = vpop.f32.mrf.mxu0
    %v1700 = vadd.f32 0.0, %v1699
    %v1701 = vpop.f32.mrf.mxu0
    %1702 = vdwg.mxu0
    %v1703 = vrcp.pop 50.0
    %v1704 = vmul.f32 %v1627, %v1703
    %v1705 = vmul.f32 %v1700, %v1703
    %v1706 = vmul.f32 %v1704, %v1704
    %v1707 = vsub.f32 %v1705, %v1706
    %v1708 = vadd.f32 %v1707, 1e-05
    %v1709 = vrsqrt.pop %v1708
    %v1710 = vld [vmem:[%s9] sm:$0x1]
    %v1711 = vmul.f32 %v1710, %v1709
    %v1712 = vld [vmem:[%s10] sm:$0x1]
    %v1713 = vmul.f32 %v1704, %v1711
    %v1714 = vsub.f32 %v1712, %v1713
    %v1715 = vld [vmem:[%s8] sm:$0xff]
    %v1716 = vld [vmem:[%s8 + $0x8] sm:$0xff]
    %vm1717 = vcmask 130048
    %v1719 = vsel %vm1717, %v1711, 0
    %1721 = vmatprep.subr.mxu0 0.0
    %1722 = vmatpush1.msra.mxu0 0.0
    %1723 = vmatprep.subr.mxu0 0.0
    %1724 = vmatpush1.msra.mxu0 0.0
    %1725 = vmatprep.subr.mxu0 0.0
    %1726 = vmatpush1.msra.mxu0 0.0
    %1727 = vmatprep.subr.mxu0 0.0
    %1728 = vmatpush1.msra.mxu0 0.0
    %1729 = vmatprep.subr.mxu0 0.0
    %1730 = vmatpush1.msra.mxu0 0.0
    %1731 = vmatprep.subr.mxu0 0.0
    %1732 = vmatpush1.msra.mxu0 0.0
    %1733 = vmatprep.subr.mxu0 0.0
    %1734 = vmatpush1.msra.mxu0 0.0
    %1735 = vmatprep.subr.mxu0 0.0
    %1736 = vmatpush1.msra.mxu0 0.0
    %1737 = vmatprep.subr.mxu0 0.0
    %1738 = vmatpush1.msra.mxu0 0.0
    %1739 = vmatprep.subr.mxu0 0.0
    %1740 = vmatpush1.msra.mxu0 0.0
    %1741 = vmatprep.subr.mxu0 0.0
    %1742 = vmatpush1.msra.mxu0 0.0
    %1743 = vmatprep.subr.mxu0 0.0
    %1744 = vmatpush1.msra.mxu0 0.0
    %1745 = vmatprep.subr.mxu0 0.0
    %1746 = vmatpush1.msra.mxu0 0.0
    %1747 = vmatprep.subr.mxu0 0.0
    %1748 = vmatpush1.msra.mxu0 0.0
    %1749 = vmatprep.subr.mxu0 0.0
    %1750 = vmatpush1.msra.mxu0 %v1716
    %1751 = vmatprep.subr.mxu0 0.0
    %1752 = vmatpush1.msra.mxu0 %v1715
    %1753 = vmatprep.subr.mxu0 0.0
    %1754 = vmatpush2.msra.mxu0 0.0
    %1755 = vmatprep.subr.mxu0 0.0
    %1756 = vmatpush2.msra.mxu0 0.0
    %1757 = vmatprep.subr.mxu0 0.0
    %1758 = vmatpush2.msra.mxu0 0.0
    %1759 = vmatprep.subr.mxu0 0.0
    %1760 = vmatpush2.msra.mxu0 0.0
    %1761 = vmatprep.subr.mxu0 0.0
    %1762 = vmatpush2.msra.mxu0 0.0
    %1763 = vmatprep.subr.mxu0 0.0
    %1764 = vmatpush2.msra.mxu0 0.0
    %1765 = vmatprep.subr.mxu0 0.0
    %1766 = vmatpush2.msra.mxu0 0.0
    %1767 = vmatprep.subr.mxu0 0.0
    %1768 = vmatpush2.msra.mxu0 0.0
    %1769 = vmatprep.subr.mxu0 0.0
    %1770 = vmatpush2.msra.mxu0 0.0
    %1771 = vmatprep.subr.mxu0 0.0
    %1772 = vmatpush2.msra.mxu0 0.0
    %1773 = vmatprep.subr.mxu0 0.0
    %1774 = vmatpush2.msra.mxu0 0.0
    %1775 = vmatprep.subr.mxu0 0.0
    %1776 = vmatpush2.msra.mxu0 0.0
    %1777 = vmatprep.subr.mxu0 0.0
    %1778 = vmatpush2.msra.mxu0 0.0
    %1779 = vmatprep.subr.mxu0 0.0
    %1780 = vmatpush2.msra.mxu0 0.0
    %1781 = vmatprep.subr.mxu0 0.0
    %1782 = vmatpush2.msra.mxu0 0.0
    %1783 = vmatprep.subr.mxu0 0.0
    %1784 = vmatpush2.msra.mxu0 0.0
    %1785 = vmatprep.mubr.f32.mxu0 0.0
    %1786 = vmatmul.mubr.f32.gmra.mxu0 %v1719
    %v1787 = vpop.f32.mrf.mxu0
    %v1788 = vadd.f32 0.0, %v1787
    %v1789 = vpop.f32.mrf.mxu0
    %1790 = vdwg.mxu0
    %v1792 = vsel %vm1717, %v1714, 0
    %1794 = vmatprep.subr.mxu0 0.0
    %1795 = vmatpush1.msra.mxu0 0.0
    %1796 = vmatprep.subr.mxu0 0.0
    %1797 = vmatpush1.msra.mxu0 0.0
    %1798 = vmatprep.subr.mxu0 0.0
    %1799 = vmatpush1.msra.mxu0 0.0
    %1800 = vmatprep.subr.mxu0 0.0
    %1801 = vmatpush1.msra.mxu0 0.0
    %1802 = vmatprep.subr.mxu0 0.0
    %1803 = vmatpush1.msra.mxu0 0.0
    %1804 = vmatprep.subr.mxu0 0.0
    %1805 = vmatpush1.msra.mxu0 0.0
    %1806 = vmatprep.subr.mxu0 0.0
    %1807 = vmatpush1.msra.mxu0 0.0
    %1808 = vmatprep.subr.mxu0 0.0
    %1809 = vmatpush1.msra.mxu0 0.0
    %1810 = vmatprep.subr.mxu0 0.0
    %1811 = vmatpush1.msra.mxu0 0.0
    %1812 = vmatprep.subr.mxu0 0.0
    %1813 = vmatpush1.msra.mxu0 0.0
    %1814 = vmatprep.subr.mxu0 0.0
    %1815 = vmatpush1.msra.mxu0 0.0
    %1816 = vmatprep.subr.mxu0 0.0
    %1817 = vmatpush1.msra.mxu0 0.0
    %1818 = vmatprep.subr.mxu0 0.0
    %1819 = vmatpush1.msra.mxu0 0.0
    %1820 = vmatprep.subr.mxu0 0.0
    %1821 = vmatpush1.msra.mxu0 0.0
    %1822 = vmatprep.subr.mxu0 0.0
    %1823 = vmatpush1.msra.mxu0 %v1716
    %1824 = vmatprep.subr.mxu0 0.0
    %1825 = vmatpush1.msra.mxu0 %v1715
    %1826 = vmatprep.subr.mxu0 0.0
    %1827 = vmatpush2.msra.mxu0 0.0
    %1828 = vmatprep.subr.mxu0 0.0
    %1829 = vmatpush2.msra.mxu0 0.0
    %1830 = vmatprep.subr.mxu0 0.0
    %1831 = vmatpush2.msra.mxu0 0.0
    %1832 = vmatprep.subr.mxu0 0.0
    %1833 = vmatpush2.msra.mxu0 0.0
    %1834 = vmatprep.subr.mxu0 0.0
    %1835 = vmatpush2.msra.mxu0 0.0
    %1836 = vmatprep.subr.mxu0 0.0
    %1837 = vmatpush2.msra.mxu0 0.0
    %1838 = vmatprep.subr.mxu0 0.0
    %1839 = vmatpush2.msra.mxu0 0.0
    %1840 = vmatprep.subr.mxu0 0.0
    %1841 = vmatpush2.msra.mxu0 0.0
    %1842 = vmatprep.subr.mxu0 0.0
    %1843 = vmatpush2.msra.mxu0 0.0
    %1844 = vmatprep.subr.mxu0 0.0
    %1845 = vmatpush2.msra.mxu0 0.0
    %1846 = vmatprep.subr.mxu0 0.0
    %1847 = vmatpush2.msra.mxu0 0.0
    %1848 = vmatprep.subr.mxu0 0.0
    %1849 = vmatpush2.msra.mxu0 0.0
    %1850 = vmatprep.subr.mxu0 0.0
    %1851 = vmatpush2.msra.mxu0 0.0
    %1852 = vmatprep.subr.mxu0 0.0
    %1853 = vmatpush2.msra.mxu0 0.0
    %1854 = vmatprep.subr.mxu0 0.0
    %1855 = vmatpush2.msra.mxu0 0.0
    %1856 = vmatprep.subr.mxu0 0.0
    %1857 = vmatpush2.msra.mxu0 0.0
    %1858 = vmatprep.mubr.f32.mxu0 0.0
    %1859 = vmatmul.mubr.f32.gmra.mxu0 %v1792
    %v1860 = vpop.f32.mrf.mxu0
    %v1861 = vadd.f32 0.0, %v1860
    %v1862 = vpop.f32.mrf.mxu0
    %1863 = vdwg.mxu0
    %v1864 = vlaneseq
    %v1865 = vshrl.u32 %v1864, 7
    %v1866 = vsub.s32 0, %v1865
    %v1867 = vrot.slane %v1788, %v1866
    %v1868 = vmul.f32 %v1524, %v1867
    %v1869 = vmul.f32 %v1525, %v1867
    %v1870 = vlaneseq
    %v1871 = vshrl.u32 %v1870, 7
    %v1872 = vsub.s32 0, %v1871
    %v1873 = vrot.slane %v1861, %v1872
    %v1874 = vadd.f32 %v1868, %v1873
    %v1875 = vadd.f32 %v1869, %v1873
    %1876 = vst [vmem:[#allocation5] sm:$0xff] 0.0
    %1877 = vst [vmem:[#allocation5 + $0x8] sm:$0x3] 0.0
    %vm1878 = vcmask 647168
    %1879 = vst.msk [vmem:[#allocation5] sm:$0x1] %vm1878, %v1874
    %v1882 = vunpack.c.l.s4 1983009808
    %v1883 = vunpack.c.0.s8 %v1882
    %v1884 = vlaneseq
    %v1885 = vshrl.u32 %v1884, 7
    %v1886 = vsub.s32 %v1883, %v1885
    %v1887 = vrot.slane %v1874, %v1886
    %v1888 = vrot.slane %v1887, 7
    %v1889 = vrot.slane %v1888, 2
    %1891 = vst.msk [vmem:[#allocation5 + $0x2] sm:$0x1] %vm1878, %v1889
    %v1892 = vcombine.high %v1887, %v1887
    %1894 = vst.msk [vmem:[#allocation5 + $0x4] sm:$0x1] %vm1878, %v1892
    %v1895 = vrot.slane %v1892, 7
    %v1896 = vrot.slane %v1895, 2
    %1898 = vst.msk [vmem:[#allocation5 + $0x6] sm:$0x1] %vm1878, %v1896
    %v1899 = vcombine.high %v1874, %v1874
    %v1901 = vunpack.c.l.s4 1983009808
    %v1902 = vunpack.c.0.s8 %v1901
    %v1903 = vlaneseq
    %v1904 = vshrl.u32 %v1903, 7
    %v1905 = vsub.s32 %v1902, %v1904
    %v1906 = vrot.slane %v1899, %v1905
    %1908 = vst.msk [vmem:[#allocation5 + $0x8] sm:$0x1] %vm1878, %v1906
    %v1909 = vrot.slane %v1906, 7
    %v1910 = vrot.slane %v1909, 2
    %1912 = vst.msk [vmem:[#allocation5 + $0x1] sm:$0x1] %vm1878, %v1910
    %v1913 = vcombine.high %v1906, %v1906
    %1915 = vst.msk [vmem:[#allocation5 + $0x3] sm:$0x1] %vm1878, %v1913
    %v1916 = vrot.slane %v1913, 7
    %v1917 = vrot.slane %v1916, 2
    %1919 = vst.msk [vmem:[#allocation5 + $0x5] sm:$0x1] %vm1878, %v1917
    %1920 = vst.msk [vmem:[#allocation5 + $0x7] sm:$0x1] %vm1878, %v1875
    %v1923 = vunpack.c.l.s4 1983009808
    %v1924 = vunpack.c.0.s8 %v1923
    %v1925 = vlaneseq
    %v1926 = vshrl.u32 %v1925, 7
    %v1927 = vsub.s32 %v1924, %v1926
    %v1928 = vrot.slane %v1875, %v1927
    %v1929 = vrot.slane %v1928, 7
    %v1930 = vrot.slane %v1929, 2
    %1932 = vst.msk [vmem:[#allocation5 + $0x9] sm:$0x1] %vm1878, %v1930
    %v1933 = vld [vmem:[#allocation5] sm:$0xff]
    %v1934 = vld [vmem:[#allocation5 + $0x8] sm:$0x3]
    %v1935 = vld [vmem:[%s11] sm:$0xff]
    %v1936 = vld [vmem:[%s11 + $0x8] sm:$0xff]
    %v1937 = vld [vmem:[%s11 + $0x10] sm:$0xff]
    %v1938 = vld [vmem:[%s11 + $0x18] sm:$0xff]
    %v1939 = vld [vmem:[%s11 + $0x20] sm:$0xff]
    %v1940 = vld [vmem:[%s11 + $0x28] sm:$0xff]
    %v1941 = vld [vmem:[%s11 + $0x30] sm:$0xff]
    %v1942 = vld [vmem:[%s11 + $0x38] sm:$0xff]
    %v1943 = vld [vmem:[%s11 + $0x40] sm:$0xff]
    %v1944 = vld [vmem:[%s11 + $0x48] sm:$0xff]
    %v1945 = vld [vmem:[%s11 + $0x50] sm:$0xff]
    %v1946 = vld [vmem:[%s11 + $0x58] sm:$0xff]
    %v1947 = vld [vmem:[%s11 + $0x60] sm:$0xff]
    %v1948 = vld [vmem:[%s11 + $0x68] sm:$0xff]
    %v1949 = vld [vmem:[%s11 + $0x70] sm:$0xff]
    %v1950 = vld [vmem:[%s11 + $0x78] sm:$0xff]
    %v1951 = vld [vmem:[%s11 + $0x80] sm:$0xff]
    %v1952 = vld [vmem:[%s11 + $0x88] sm:$0xff]
    %v1953 = vld [vmem:[%s11 + $0x90] sm:$0xff]
    %v1954 = vld [vmem:[%s11 + $0x98] sm:$0xff]
    %v1955 = vld [vmem:[%s11 + $0xa0] sm:$0xff]
    %v1956 = vld [vmem:[%s11 + $0xa8] sm:$0xff]
    %v1957 = vld [vmem:[%s11 + $0xb0] sm:$0xff]
    %v1958 = vld [vmem:[%s11 + $0xb8] sm:$0xff]
    %v1959 = vld [vmem:[%s11 + $0xc0] sm:$0xff]
    %v1960 = vld [vmem:[%s11 + $0xc8] sm:$0xff]
    %v1961 = vld [vmem:[%s11 + $0xd0] sm:$0xff]
    %v1962 = vld [vmem:[%s11 + $0xd8] sm:$0xff]
    %v1963 = vld [vmem:[%s11 + $0xe0] sm:$0xff]
    %v1964 = vld [vmem:[%s11 + $0xe8] sm:$0xff]
    %v1965 = vld [vmem:[%s11 + $0xf0] sm:$0xff]
    %v1966 = vld [vmem:[%s11 + $0xf8] sm:$0xff]
    %v1967 = vld [vmem:[%s11 + $0x100] sm:$0xff]
    %v1968 = vld [vmem:[%s11 + $0x108] sm:$0xff]
    %v1969 = vld [vmem:[%s11 + $0x110] sm:$0xff]
    %v1970 = vld [vmem:[%s11 + $0x118] sm:$0xff]
    %v1971 = vld [vmem:[%s11 + $0x120] sm:$0xff]
    %v1972 = vld [vmem:[%s11 + $0x128] sm:$0xff]
    %v1973 = vld [vmem:[%s11 + $0x130] sm:$0xff]
    %v1974 = vld [vmem:[%s11 + $0x138] sm:$0xff]
    %v1975 = vld [vmem:[%s11 + $0x140] sm:$0xff]
    %v1976 = vld [vmem:[%s11 + $0x148] sm:$0xff]
    %v1977 = vld [vmem:[%s11 + $0x150] sm:$0xff]
    %v1978 = vld [vmem:[%s11 + $0x158] sm:$0xff]
    %v1979 = vld [vmem:[%s11 + $0x160] sm:$0xff]
    %v1980 = vld [vmem:[%s11 + $0x168] sm:$0xff]
    %v1981 = vld [vmem:[%s11 + $0x170] sm:$0xff]
    %v1982 = vld [vmem:[%s11 + $0x178] sm:$0xff]
    %v1983 = vld [vmem:[%s11 + $0x180] sm:$0xff]
    %v1984 = vld [vmem:[%s11 + $0x188] sm:$0xff]
    %v1985 = vld [vmem:[%s11 + $0x190] sm:$0xff]
    %v1986 = vld [vmem:[%s11 + $0x198] sm:$0xff]
    %v1987 = vld [vmem:[%s11 + $0x1a0] sm:$0xff]
    %v1988 = vld [vmem:[%s11 + $0x1a8] sm:$0xff]
    %v1989 = vld [vmem:[%s11 + $0x1b0] sm:$0xff]
    %v1990 = vld [vmem:[%s11 + $0x1b8] sm:$0xff]
    %v1991 = vld [vmem:[%s11 + $0x1c0] sm:$0xff]
    %v1992 = vld [vmem:[%s11 + $0x1c8] sm:$0xff]
    %v1993 = vld [vmem:[%s11 + $0x1d0] sm:$0xff]
    %v1994 = vld [vmem:[%s11 + $0x1d8] sm:$0xff]
    %v1995 = vld [vmem:[%s11 + $0x1e0] sm:$0xff]
    %v1996 = vld [vmem:[%s11 + $0x1e8] sm:$0xff]
    %v1997 = vld [vmem:[%s11 + $0x1f0] sm:$0xff]
    %v1998 = vld [vmem:[%s11 + $0x1f8] sm:$0xff]
    %v1999 = vld [vmem:[%s11 + $0x200] sm:$0xff]
    %v2000 = vld [vmem:[%s11 + $0x208] sm:$0xff]
    %v2001 = vld [vmem:[%s11 + $0x210] sm:$0xff]
    %v2002 = vld [vmem:[%s11 + $0x218] sm:$0xff]
    %v2003 = vld [vmem:[%s11 + $0x220] sm:$0xff]
    %v2004 = vld [vmem:[%s11 + $0x228] sm:$0xff]
    %v2005 = vld [vmem:[%s11 + $0x230] sm:$0xff]
    %v2006 = vld [vmem:[%s11 + $0x238] sm:$0xff]
    %v2007 = vld [vmem:[%s11 + $0x240] sm:$0xff]
    %v2008 = vld [vmem:[%s11 + $0x248] sm:$0xff]
    %v2009 = vld [vmem:[%s11 + $0x250] sm:$0xff]
    %v2010 = vld [vmem:[%s11 + $0x258] sm:$0xff]
    %v2011 = vld [vmem:[%s11 + $0x260] sm:$0xff]
    %v2012 = vld [vmem:[%s11 + $0x268] sm:$0xff]
    %v2013 = vld [vmem:[%s11 + $0x270] sm:$0xff]
    %v2014 = vld [vmem:[%s11 + $0x278] sm:$0xff]
    %v2015 = vld [vmem:[%s12] sm:$0x1]
    %v2017 = vlaneseq
    %v2018 = vshrl.u32 %v2017, 7
    %v2019 = vsub.s32 0, %v2018
    %v2020 = vrot.slane %v2015, %v2019
    %v2024 = vcombine.high %v1933, %v1933
    %v2026 = vunpack.c.l.s4 1983009808
    %v2027 = vunpack.c.0.s8 %v2026
    %v2028 = vlaneseq
    %v2029 = vshrl.u32 %v2028, 7
    %v2030 = vsub.s32 %v2027, %v2029
    %v2031 = vrot.slane %v1933, %v2030
    %v2033 = vunpack.c.l.s4 1983009808
    %v2034 = vunpack.c.0.s8 %v2033
    %v2035 = vlaneseq
    %v2036 = vshrl.u32 %v2035, 7
    %v2037 = vsub.s32 %v2034, %v2036
    %v2038 = vrot.slane %v2024, %v2037
    %v2039 = vcombine.high %v2031, %v2031
    %v2040 = vcombine.high %v2038, %v2038
    %v2042 = vunpack.c.l.s4 1983009808
    %v2043 = vunpack.c.0.s8 %v2042
    %v2044 = vlaneseq
    %v2045 = vshrl.u32 %v2044, 7
    %v2046 = vsub.s32 %v2043, %v2045
    %v2047 = vrot.slane %v1934, %v2046
    %2053 = vmatprep.subr.mxu0 0.0
    %2054 = vmatpush1.msra.mxu0 %v1950
    %2055 = vmatprep.subr.mxu0 0.0
    %2056 = vmatpush1.msra.mxu0 %v1949
    %2057 = vmatprep.subr.mxu0 0.0
    %2058 = vmatpush1.msra.mxu0 %v1948
    %2059 = vmatprep.subr.mxu0 0.0
    %2060 = vmatpush1.msra.mxu0 %v1947
    %2061 = vmatprep.subr.mxu0 0.0
    %2062 = vmatpush1.msra.mxu0 %v1946
    %2063 = vmatprep.subr.mxu0 0.0
    %2064 = vmatpush1.msra.mxu0 %v1945
    %2065 = vmatprep.subr.mxu0 0.0
    %2066 = vmatpush1.msra.mxu0 %v1944
    %2067 = vmatprep.subr.mxu0 0.0
    %2068 = vmatpush1.msra.mxu0 %v1943
    %2069 = vmatprep.subr.mxu0 0.0
    %2070 = vmatpush1.msra.mxu0 %v1942
    %2071 = vmatprep.subr.mxu0 0.0
    %2072 = vmatpush1.msra.mxu0 %v1941
    %2073 = vmatprep.subr.mxu0 0.0
    %2074 = vmatpush1.msra.mxu0 %v1940
    %2075 = vmatprep.subr.mxu0 0.0
    %2076 = vmatpush1.msra.mxu0 %v1939
    %2077 = vmatprep.subr.mxu0 0.0
    %2078 = vmatpush1.msra.mxu0 %v1938
    %2079 = vmatprep.subr.mxu0 0.0
    %2080 = vmatpush1.msra.mxu0 %v1937
    %2081 = vmatprep.subr.mxu0 0.0
    %2082 = vmatpush1.msra.mxu0 %v1936
    %2083 = vmatprep.subr.mxu0 0.0
    %2084 = vmatpush1.msra.mxu0 %v1935
    %2085 = vmatprep.subr.mxu0 0.0
    %2086 = vmatpush2.msra.mxu0 %v1966
    %2087 = vmatprep.subr.mxu0 0.0
    %2088 = vmatpush2.msra.mxu0 %v1965
    %2089 = vmatprep.subr.mxu0 0.0
    %2090 = vmatpush2.msra.mxu0 %v1964
    %2091 = vmatprep.subr.mxu0 0.0
    %2092 = vmatpush2.msra.mxu0 %v1963
    %2093 = vmatprep.subr.mxu0 0.0
    %2094 = vmatpush2.msra.mxu0 %v1962
    %2095 = vmatprep.subr.mxu0 0.0
    %2096 = vmatpush2.msra.mxu0 %v1961
    %2097 = vmatprep.subr.mxu0 0.0
    %2098 = vmatpush2.msra.mxu0 %v1960
    %2099 = vmatprep.subr.mxu0 0.0
    %2100 = vmatpush2.msra.mxu0 %v1959
    %2101 = vmatprep.subr.mxu0 0.0
    %2102 = vmatpush2.msra.mxu0 %v1958
    %2103 = vmatprep.subr.mxu0 0.0
    %2104 = vmatpush2.msra.mxu0 %v1957
    %2105 = vmatprep.subr.mxu0 0.0
    %2106 = vmatpush2.msra.mxu0 %v1956
    %2107 = vmatprep.subr.mxu0 0.0
    %2108 = vmatpush2.msra.mxu0 %v1955
    %2109 = vmatprep.subr.mxu0 0.0
    %2110 = vmatpush2.msra.mxu0 %v1954
    %2111 = vmatprep.subr.mxu0 0.0
    %2112 = vmatpush2.msra.mxu0 %v1953
    %2113 = vmatprep.subr.mxu0 0.0
    %2114 = vmatpush2.msra.mxu0 %v1952
    %2115 = vmatprep.subr.mxu0 0.0
    %2116 = vmatpush2.msra.mxu0 %v1951
    %2117 = vmatprep.mubr.f32.mxu0 %v2039
    %2118 = vmatmul.mubr.f32.gmra.mxu0 %v2031
    %v2119 = vpop.f32.mrf.mxu0
    %v2120 = vadd.f32 %v2020, %v2119
    %v2121 = vpop.f32.mrf.mxu0
    %2122 = vdwg.mxu0
    %2123 = vmatprep.subr.mxu0 0.0
    %2124 = vmatpush1.msra.mxu0 %v1982
    %2125 = vmatprep.subr.mxu0 0.0
    %2126 = vmatpush1.msra.mxu0 %v1981
    %2127 = vmatprep.subr.mxu0 0.0
    %2128 = vmatpush1.msra.mxu0 %v1980
    %2129 = vmatprep.subr.mxu0 0.0
    %2130 = vmatpush1.msra.mxu0 %v1979
    %2131 = vmatprep.subr.mxu0 0.0
    %2132 = vmatpush1.msra.mxu0 %v1978
    %2133 = vmatprep.subr.mxu0 0.0
    %2134 = vmatpush1.msra.mxu0 %v1977
    %2135 = vmatprep.subr.mxu0 0.0
    %2136 = vmatpush1.msra.mxu0 %v1976
    %2137 = vmatprep.subr.mxu0 0.0
    %2138 = vmatpush1.msra.mxu0 %v1975
    %2139 = vmatprep.subr.mxu0 0.0
    %2140 = vmatpush1.msra.mxu0 %v1974
    %2141 = vmatprep.subr.mxu0 0.0
    %2142 = vmatpush1.msra.mxu0 %v1973
    %2143 = vmatprep.subr.mxu0 0.0
    %2144 = vmatpush1.msra.mxu0 %v1972
    %2145 = vmatprep.subr.mxu0 0.0
    %2146 = vmatpush1.msra.mxu0 %v1971
    %2147 = vmatprep.subr.mxu0 0.0
    %2148 = vmatpush1.msra.mxu0 %v1970
    %2149 = vmatprep.subr.mxu0 0.0
    %2150 = vmatpush1.msra.mxu0 %v1969
    %2151 = vmatprep.subr.mxu0 0.0
    %2152 = vmatpush1.msra.mxu0 %v1968
    %2153 = vmatprep.subr.mxu0 0.0
    %2154 = vmatpush1.msra.mxu0 %v1967
    %2155 = vmatprep.subr.mxu0 0.0
    %2156 = vmatpush2.msra.mxu0 %v1998
    %2157 = vmatprep.subr.mxu0 0.0
    %2158 = vmatpush2.msra.mxu0 %v1997
    %2159 = vmatprep.subr.mxu0 0.0
    %2160 = vmatpush2.msra.mxu0 %v1996
    %2161 = vmatprep.subr.mxu0 0.0
    %2162 = vmatpush2.msra.mxu0 %v1995
    %2163 = vmatprep.subr.mxu0 0.0
    %2164 = vmatpush2.msra.mxu0 %v1994
    %2165 = vmatprep.subr.mxu0 0.0
    %2166 = vmatpush2.msra.mxu0 %v1993
    %2167 = vmatprep.subr.mxu0 0.0
    %2168 = vmatpush2.msra.mxu0 %v1992
    %2169 = vmatprep.subr.mxu0 0.0
    %2170 = vmatpush2.msra.mxu0 %v1991
    %2171 = vmatprep.subr.mxu0 0.0
    %2172 = vmatpush2.msra.mxu0 %v1990
    %2173 = vmatprep.subr.mxu0 0.0
    %2174 = vmatpush2.msra.mxu0 %v1989
    %2175 = vmatprep.subr.mxu0 0.0
    %2176 = vmatpush2.msra.mxu0 %v1988
    %2177 = vmatprep.subr.mxu0 0.0
    %2178 = vmatpush2.msra.mxu0 %v1987
    %2179 = vmatprep.subr.mxu0 0.0
    %2180 = vmatpush2.msra.mxu0 %v1986
    %2181 = vmatprep.subr.mxu0 0.0
    %2182 = vmatpush2.msra.mxu0 %v1985
    %2183 = vmatprep.subr.mxu0 0.0
    %2184 = vmatpush2.msra.mxu0 %v1984
    %2185 = vmatprep.subr.mxu0 0.0
    %2186 = vmatpush2.msra.mxu0 %v1983
    %2187 = vmatprep.mubr.f32.mxu0 %v2040
    %2188 = vmatmul.mubr.f32.gmra.mxu0 %v2038
    %v2189 = vpop.f32.mrf.mxu0
    %v2190 = vadd.f32 %v2120, %v2189
    %v2191 = vpop.f32.mrf.mxu0
    %2192 = vdwg.mxu0
    %2193 = vmatprep.subr.mxu0 0.0
    %2194 = vmatpush1.msra.mxu0 %v2014
    %2195 = vmatprep.subr.mxu0 0.0
    %2196 = vmatpush1.msra.mxu0 %v2013
    %2197 = vmatprep.subr.mxu0 0.0
    %2198 = vmatpush1.msra.mxu0 %v2012
    %2199 = vmatprep.subr.mxu0 0.0
    %2200 = vmatpush1.msra.mxu0 %v2011
    %2201 = vmatprep.subr.mxu0 0.0
    %2202 = vmatpush1.msra.mxu0 %v2010
    %2203 = vmatprep.subr.mxu0 0.0
    %2204 = vmatpush1.msra.mxu0 %v2009
    %2205 = vmatprep.subr.mxu0 0.0
    %2206 = vmatpush1.msra.mxu0 %v2008
    %2207 = vmatprep.subr.mxu0 0.0
    %2208 = vmatpush1.msra.mxu0 %v2007
    %2209 = vmatprep.subr.mxu0 0.0
    %2210 = vmatpush1.msra.mxu0 %v2006
    %2211 = vmatprep.subr.mxu0 0.0
    %2212 = vmatpush1.msra.mxu0 %v2005
    %2213 = vmatprep.subr.mxu0 0.0
    %2214 = vmatpush1.msra.mxu0 %v2004
    %2215 = vmatprep.subr.mxu0 0.0
    %2216 = vmatpush1.msra.mxu0 %v2003
    %2217 = vmatprep.subr.mxu0 0.0
    %2218 = vmatpush1.msra.mxu0 %v2002
    %2219 = vmatprep.subr.mxu0 0.0
    %2220 = vmatpush1.msra.mxu0 %v2001
    %2221 = vmatprep.subr.mxu0 0.0
    %2222 = vmatpush1.msra.mxu0 %v2000
    %2223 = vmatprep.subr.mxu0 0.0
    %2224 = vmatpush1.msra.mxu0 %v1999
    %2225 = vmatprep.subr.mxu0 0.0
    %2226 = vmatpush2.msra.mxu0 0.0
    %2227 = vmatprep.subr.mxu0 0.0
    %2228 = vmatpush2.msra.mxu0 0.0
    %2229 = vmatprep.subr.mxu0 0.0
    %2230 = vmatpush2.msra.mxu0 0.0
    %2231 = vmatprep.subr.mxu0 0.0
    %2232 = vmatpush2.msra.mxu0 0.0
    %2233 = vmatprep.subr.mxu0 0.0
    %2234 = vmatpush2.msra.mxu0 0.0
    %2235 = vmatprep.subr.mxu0 0.0
    %2236 = vmatpush2.msra.mxu0 0.0
    %2237 = vmatprep.subr.mxu0 0.0
    %2238 = vmatpush2.msra.mxu0 0.0
    %2239 = vmatprep.subr.mxu0 0.0
    %2240 = vmatpush2.msra.mxu0 0.0
    %2241 = vmatprep.subr.mxu0 0.0
    %2242 = vmatpush2.msra.mxu0 0.0
    %2243 = vmatprep.subr.mxu0 0.0
    %2244 = vmatpush2.msra.mxu0 0.0
    %2245 = vmatprep.subr.mxu0 0.0
    %2246 = vmatpush2.msra.mxu0 0.0
    %2247 = vmatprep.subr.mxu0 0.0
    %2248 = vmatpush2.msra.mxu0 0.0
    %2249 = vmatprep.subr.mxu0 0.0
    %2250 = vmatpush2.msra.mxu0 0.0
    %2251 = vmatprep.subr.mxu0 0.0
    %2252 = vmatpush2.msra.mxu0 0.0
    %2253 = vmatprep.subr.mxu0 0.0
    %2254 = vmatpush2.msra.mxu0 0.0
    %2255 = vmatprep.subr.mxu0 0.0
    %2256 = vmatpush2.msra.mxu0 0.0
    %2257 = vmatprep.mubr.f32.mxu0 0.0
    %2258 = vmatmul.mubr.f32.gmra.mxu0 %v2047
    %v2259 = vpop.f32.mrf.mxu0
    %v2260 = vadd.f32 %v2190, %v2259
    %v2261 = vpop.f32.mrf.mxu0
    %2262 = vdwg.mxu0
    %v2263 = vmax.f32 %v2260, 0.0
    %v2264 = vld [vmem:[%s13] sm:$0xff]
    %v2265 = vld [vmem:[%s13 + $0x8] sm:$0xff]
    %v2266 = vld [vmem:[%s13 + $0x10] sm:$0xff]
    %v2267 = vld [vmem:[%s13 + $0x18] sm:$0xff]
    %v2268 = vld [vmem:[%s13 + $0x20] sm:$0xff]
    %v2269 = vld [vmem:[%s13 + $0x28] sm:$0xff]
    %v2270 = vld [vmem:[%s13 + $0x30] sm:$0xff]
    %v2271 = vld [vmem:[%s13 + $0x38] sm:$0xff]
    %v2272 = vld [vmem:[%s13 + $0x40] sm:$0xff]
    %v2273 = vld [vmem:[%s13 + $0x48] sm:$0xff]
    %v2274 = vld [vmem:[%s13 + $0x50] sm:$0xff]
    %v2275 = vld [vmem:[%s13 + $0x58] sm:$0xff]
    %v2276 = vld [vmem:[%s13 + $0x60] sm:$0xff]
    %v2277 = vld [vmem:[%s13 + $0x68] sm:$0xff]
    %v2278 = vld [vmem:[%s13 + $0x70] sm:$0xff]
    %v2279 = vld [vmem:[%s14] sm:$0x1]
    %v2281 = vlaneseq
    %v2282 = vshrl.u32 %v2281, 7
    %v2283 = vsub.s32 0, %v2282
    %v2284 = vrot.slane %v2279, %v2283
    %vm2286 = vcmask 982016
    %v2288 = vsel %vm2286, %v2263, 0
    %2290 = vmatprep.subr.mxu0 0.0
    %2291 = vmatpush1.msra.mxu0 0.0
    %2292 = vmatprep.subr.mxu0 0.0
    %2293 = vmatpush1.msra.mxu0 %v2278
    %2294 = vmatprep.subr.mxu0 0.0
    %2295 = vmatpush1.msra.mxu0 %v2277
    %2296 = vmatprep.subr.mxu0 0.0
    %2297 = vmatpush1.msra.mxu0 %v2276
    %2298 = vmatprep.subr.mxu0 0.0
    %2299 = vmatpush1.msra.mxu0 %v2275
    %2300 = vmatprep.subr.mxu0 0.0
    %2301 = vmatpush1.msra.mxu0 %v2274
    %2302 = vmatprep.subr.mxu0 0.0
    %2303 = vmatpush1.msra.mxu0 %v2273
    %2304 = vmatprep.subr.mxu0 0.0
    %2305 = vmatpush1.msra.mxu0 %v2272
    %2306 = vmatprep.subr.mxu0 0.0
    %2307 = vmatpush1.msra.mxu0 %v2271
    %2308 = vmatprep.subr.mxu0 0.0
    %2309 = vmatpush1.msra.mxu0 %v2270
    %2310 = vmatprep.subr.mxu0 0.0
    %2311 = vmatpush1.msra.mxu0 %v2269
    %2312 = vmatprep.subr.mxu0 0.0
    %2313 = vmatpush1.msra.mxu0 %v2268
    %2314 = vmatprep.subr.mxu0 0.0
    %2315 = vmatpush1.msra.mxu0 %v2267
    %2316 = vmatprep.subr.mxu0 0.0
    %2317 = vmatpush1.msra.mxu0 %v2266
    %2318 = vmatprep.subr.mxu0 0.0
    %2319 = vmatpush1.msra.mxu0 %v2265
    %2320 = vmatprep.subr.mxu0 0.0
    %2321 = vmatpush1.msra.mxu0 %v2264
    %2322 = vmatprep.subr.mxu0 0.0
    %2323 = vmatpush2.msra.mxu0 0.0
    %2324 = vmatprep.subr.mxu0 0.0
    %2325 = vmatpush2.msra.mxu0 0.0
    %2326 = vmatprep.subr.mxu0 0.0
    %2327 = vmatpush2.msra.mxu0 0.0
    %2328 = vmatprep.subr.mxu0 0.0
    %2329 = vmatpush2.msra.mxu0 0.0
    %2330 = vmatprep.subr.mxu0 0.0
    %2331 = vmatpush2.msra.mxu0 0.0
    %2332 = vmatprep.subr.mxu0 0.0
    %2333 = vmatpush2.msra.mxu0 0.0
    %2334 = vmatprep.subr.mxu0 0.0
    %2335 = vmatpush2.msra.mxu0 0.0
    %2336 = vmatprep.subr.mxu0 0.0
    %2337 = vmatpush2.msra.mxu0 0.0
    %2338 = vmatprep.subr.mxu0 0.0
    %2339 = vmatpush2.msra.mxu0 0.0
    %2340 = vmatprep.subr.mxu0 0.0
    %2341 = vmatpush2.msra.mxu0 0.0
    %2342 = vmatprep.subr.mxu0 0.0
    %2343 = vmatpush2.msra.mxu0 0.0
    %2344 = vmatprep.subr.mxu0 0.0
    %2345 = vmatpush2.msra.mxu0 0.0
    %2346 = vmatprep.subr.mxu0 0.0
    %2347 = vmatpush2.msra.mxu0 0.0
    %2348 = vmatprep.subr.mxu0 0.0
    %2349 = vmatpush2.msra.mxu0 0.0
    %2350 = vmatprep.subr.mxu0 0.0
    %2351 = vmatpush2.msra.mxu0 0.0
    %2352 = vmatprep.subr.mxu0 0.0
    %2353 = vmatpush2.msra.mxu0 0.0
    %2354 = vmatprep.mubr.f32.mxu0 0.0
    %2355 = vmatmul.mubr.f32.gmra.mxu0 %v2288
    %v2356 = vpop.f32.mrf.mxu0
    %v2357 = vadd.f32 %v2284, %v2356
    %v2358 = vpop.f32.mrf.mxu0
    %2359 = vdwg.mxu0
    %v2360 = vmax.f32 %v2357, 0.0
    %v2361 = vld [vmem:[%s15] sm:$0xff]
    %v2362 = vld [vmem:[%s15 + $0x8] sm:$0xff]
    %v2363 = vld [vmem:[%s15 + $0x10] sm:$0xff]
    %v2364 = vld [vmem:[%s15 + $0x18] sm:$0xff]
    %v2365 = vld [vmem:[%s15 + $0x20] sm:$0xff]
    %v2366 = vld [vmem:[%s15 + $0x28] sm:$0xff]
    %v2367 = vld [vmem:[%s15 + $0x30] sm:$0xff]
    %v2368 = vld [vmem:[%s15 + $0x38] sm:$0xff]
    %v2369 = vld [vmem:[%s15 + $0x40] sm:$0xff]
    %v2370 = vld [vmem:[%s15 + $0x48] sm:$0xff]
    %v2371 = vld [vmem:[%s15 + $0x50] sm:$0xf]
    %v2372 = vld [vmem:[%s16] sm:$0x1]
    %v2374 = vlaneseq
    %v2375 = vshrl.u32 %v2374, 7
    %v2376 = vsub.s32 0, %v2375
    %v2377 = vrot.slane %v2372, %v2376
    %v2380 = vsel %vm739, %v2360, 0
    %v2383 = vsel %vm810, %v2371, 0
    %2385 = vmatprep.subr.mxu0 0.0
    %2386 = vmatpush1.msra.mxu0 0.0
    %2387 = vmatprep.subr.mxu0 0.0
    %2388 = vmatpush1.msra.mxu0 0.0
    %2389 = vmatprep.subr.mxu0 0.0
    %2390 = vmatpush1.msra.mxu0 0.0
    %2391 = vmatprep.subr.mxu0 0.0
    %2392 = vmatpush1.msra.mxu0 0.0
    %2393 = vmatprep.subr.mxu0 0.0
    %2394 = vmatpush1.msra.mxu0 0.0
    %2395 = vmatprep.subr.mxu0 0.0
    %2396 = vmatpush1.msra.mxu0 %v2383
    %2397 = vmatprep.subr.mxu0 0.0
    %2398 = vmatpush1.msra.mxu0 %v2370
    %2399 = vmatprep.subr.mxu0 0.0
    %2400 = vmatpush1.msra.mxu0 %v2369
    %2401 = vmatprep.subr.mxu0 0.0
    %2402 = vmatpush1.msra.mxu0 %v2368
    %2403 = vmatprep.subr.mxu0 0.0
    %2404 = vmatpush1.msra.mxu0 %v2367
    %2405 = vmatprep.subr.mxu0 0.0
    %2406 = vmatpush1.msra.mxu0 %v2366
    %2407 = vmatprep.subr.mxu0 0.0
    %2408 = vmatpush1.msra.mxu0 %v2365
    %2409 = vmatprep.subr.mxu0 0.0
    %2410 = vmatpush1.msra.mxu0 %v2364
    %2411 = vmatprep.subr.mxu0 0.0
    %2412 = vmatpush1.msra.mxu0 %v2363
    %2413 = vmatprep.subr.mxu0 0.0
    %2414 = vmatpush1.msra.mxu0 %v2362
    %2415 = vmatprep.subr.mxu0 0.0
    %2416 = vmatpush1.msra.mxu0 %v2361
    %2417 = vmatprep.subr.mxu0 0.0
    %2418 = vmatpush2.msra.mxu0 0.0
    %2419 = vmatprep.subr.mxu0 0.0
    %2420 = vmatpush2.msra.mxu0 0.0
    %2421 = vmatprep.subr.mxu0 0.0
    %2422 = vmatpush2.msra.mxu0 0.0
    %2423 = vmatprep.subr.mxu0 0.0
    %2424 = vmatpush2.msra.mxu0 0.0
    %2425 = vmatprep.subr.mxu0 0.0
    %2426 = vmatpush2.msra.mxu0 0.0
    %2427 = vmatprep.subr.mxu0 0.0
    %2428 = vmatpush2.msra.mxu0 0.0
    %2429 = vmatprep.subr.mxu0 0.0
    %2430 = vmatpush2.msra.mxu0 0.0
    %2431 = vmatprep.subr.mxu0 0.0
    %2432 = vmatpush2.msra.mxu0 0.0
    %2433 = vmatprep.subr.mxu0 0.0
    %2434 = vmatpush2.msra.mxu0 0.0
    %2435 = vmatprep.subr.mxu0 0.0
    %2436 = vmatpush2.msra.mxu0 0.0
    %2437 = vmatprep.subr.mxu0 0.0
    %2438 = vmatpush2.msra.mxu0 0.0
    %2439 = vmatprep.subr.mxu0 0.0
    %2440 = vmatpush2.msra.mxu0 0.0
    %2441 = vmatprep.subr.mxu0 0.0
    %2442 = vmatpush2.msra.mxu0 0.0
    %2443 = vmatprep.subr.mxu0 0.0
    %2444 = vmatpush2.msra.mxu0 0.0
    %2445 = vmatprep.subr.mxu0 0.0
    %2446 = vmatpush2.msra.mxu0 0.0
    %2447 = vmatprep.subr.mxu0 0.0
    %2448 = vmatpush2.msra.mxu0 0.0
    %2449 = vmatprep.mubr.f32.mxu0 0.0
    %2450 = vmatmul.mubr.f32.gmra.mxu0 %v2380
    %v2451 = vpop.f32.mrf.mxu0
    %v2452 = vadd.f32 %v2377, %v2451
    %v2453 = vpop.f32.mrf.mxu0
    %2454 = vdwg.mxu0
    %vm2455 = vcmask 74752
    %2456 = vst.msk [vmem:[#allocation6] sm:$0x3] %vm2455, %v2452
    // Predicated region
    $region70: #{_lambda_.1} parent=1 // pred_check
      _
    $region71: #{_lambda_.1} parent=1 // pred_check_branch
      %2458 = sbr.rel (0) target = $region73
    $region72: #{_lambda_.1} parent=1 // pred_region
      %s2460 = ssub.s32 32, 32
      %2461 = vsyncadd [#allocation7], %s2460
      %s2463 = sshll.u32 [#allocation6], 4
      %s2464 = int_to_ptr.vmem [resolvable:$true] %s2463
      %2466 = dma.vmem_to_hbm [thread:$0]  %s2464, 32, %s17, [#allocation7]
    $region73: #{_lambda_.1} parent=1 // pred_fallthru
      _
    // Predicated region
    $region74: #{_lambda_.1} parent=1 // pred_check
      _
    $region75: #{_lambda_.1} parent=1 // pred_check_branch
      %2468 = sbr.rel (0) target = $region77
    $region76: #{_lambda_.1} parent=1 // pred_region
      %2469 = dma.done [#allocation7], 32
    $region77: #{_lambda_.1} parent=1 // pred_fallthru
      _
    %2470 = vsyncpa [#allocation7], 1

</llo_original>
